<compile_context>
chip_gen: v6e
topology: v6e:2x2x1
jax: 0.10.0
libtpu: 0.0.40
codegen_flags: <defaults>
</compile_context>

<pallas_src>
import functools

import jax
import jax.numpy as jnp
from jax.experimental import pallas as pl
from jax.experimental.pallas import tpu as pltpu


# -----------------------------------------------------------------------------
# fused whole-forward kernel
# -----------------------------------------------------------------------------
_PARAM_ORDER = (
    # stacked DGCN layers (leading dim = num_dgcn = GNN - 1)
    "d_gc1w", "d_gc1b", "d_gc2w", "d_gc2b",
    "d_gc3w", "d_gc3b", "d_gc4w", "d_gc4b",
    "d_uwg", "d_uwf", "d_ub",
    "d_iwg", "d_iwf", "d_ib",
    # LastLayer (mean head only — inference path)
    "l_gc1w", "l_gc1b", "l_gc2w", "l_gc2b",
    "l_gc3w", "l_gc3b", "l_gc4w", "l_gc4b",
    "l_uwg", "l_uwf", "l_ub",
    "l_iwg", "l_iwf", "l_ib",
)


def _vbge_fused_kernel(
        ufea_ref, vfea_ref, uv_ref, vu_ref,
        d_gc1w, d_gc1b, d_gc2w, d_gc2b,
        d_gc3w, d_gc3b, d_gc4w, d_gc4b,
        d_uwg, d_uwf, d_ub, d_iwg, d_iwf, d_ib,
        l_gc1w, l_gc1b, l_gc2w, l_gc2b,
        l_gc3w, l_gc3b, l_gc4w, l_gc4b,
        l_uwg, l_uwf, l_ub, l_iwg, l_iwf, l_ib,
        user_out_ref, item_out_ref,
        *, alpha, num_dgcn, mm_dtype):
    """Entire singleVBGE forward; every intermediate stays in VMEM / vregs."""
    uv = uv_ref[...]            # (nu, nv)
    vu = vu_ref[...]            # (nv, nu)

    def dot(a, b):
        # MXU matmul; optionally bf16 operands, always f32 accumulation.
        return jnp.dot(a.astype(mm_dtype), b.astype(mm_dtype),
                       preferred_element_type=jnp.float32)

    def leaky(x):
        # LeakyReLU in f32 on the VPU (bias add already in f32).
        return jnp.where(x > 0, x, alpha * x)

    # ------------------------- stacked DGCN layers --------------------------
    def dgcn_body(l, carry):
        lu, lv = carry
        u_ho = leaky(dot(vu, dot(lu, d_gc1w[l])) + d_gc1b[l])      # (nv, H)
        i_ho = leaky(dot(uv, dot(lv, d_gc2w[l])) + d_gc2b[l])      # (nu, H)
        u_ho = leaky(dot(uv, dot(u_ho, d_gc3w[l])) + d_gc3b[l])    # (nu, F)
        i_ho = leaky(dot(vu, dot(i_ho, d_gc4w[l])) + d_gc4b[l])    # (nv, F)
        # union: Linear(concat([gcn_out, fea])) == gcn_out @ Wg + fea @ Wf + b
        lu_new = jnp.maximum(
            dot(u_ho, d_uwg[l]) + dot(lu, d_uwf[l]) + d_ub[l], 0.0)
        lv_new = jnp.maximum(
            dot(i_ho, d_iwg[l]) + dot(lv, d_iwf[l]) + d_ib[l], 0.0)
        return lu_new, lv_new

    lu, lv = jax.lax.fori_loop(0, num_dgcn, dgcn_body,
                               (ufea_ref[...], vfea_ref[...]))

    # ------------- LastLayer, mean head only (eval: sampled_z == mean) -------
    # user branch first; write its output before starting the item branch so
    # the user writeback DMA overlaps the item-branch matmuls.
    u_ho = leaky(dot(vu, dot(lu, l_gc1w[...])) + l_gc1b[...])       # (nv, H)
    u_mean = leaky(dot(uv, dot(u_ho, l_gc3w[...])) + l_gc3b[...])   # (nu, F)
    user_out_ref[...] = (dot(u_mean, l_uwg[...]) + dot(lu, l_uwf[...])
                         + l_ub[...])

    i_ho = leaky(dot(uv, dot(lv, l_gc2w[...])) + l_gc2b[...])       # (nu, H)
    i_mean = leaky(dot(vu, dot(i_ho, l_gc4w[...])) + l_gc4b[...])   # (nv, F)
    item_out_ref[...] = (dot(i_mean, l_iwg[...]) + dot(lv, l_iwf[...])
                         + l_ib[...])
    # TODO(synk): logstd heads, reparameterization noise and the kld_loss side
    # attribute are training-only and never returned by forward(); omitted.


# -----------------------------------------------------------------------------
# pallas_call wrapper (single call; whole-array VMEM blocks, no grid)
# -----------------------------------------------------------------------------
def _vmem():
    return pl.BlockSpec(memory_space=pltpu.MemorySpace.VMEM)


def _cost_estimate(nu, nv, feat, hid, num_dgcn, bytes_accessed):
    adj2 = 2 * nu * nv
    per_layer = (2 * nu * feat * hid + adj2 * hid        # gc1
                 + 2 * nv * feat * hid + adj2 * hid      # gc2
                 + 2 * nv * hid * feat + adj2 * feat     # gc3
                 + 2 * nu * hid * feat + adj2 * feat     # gc4
                 + 4 * nu * feat * feat                  # user union
                 + 4 * nv * feat * feat)                 # item union
    return pl.CostEstimate(flops=(num_dgcn + 1) * per_layer,
                           transcendentals=0,
                           bytes_accessed=bytes_accessed)


@functools.partial(jax.jit, static_argnames=("alpha", "matmul_dtype"))
def single_vbge_forward(params, ufea, vfea, UV_adj, VU_adj, *,
                        alpha, matmul_dtype=jnp.float32):
    nu, feat = ufea.shape
    nv = vfea.shape[0]
    num_dgcn = params["d_gc1w"].shape[0]
    hid = params["d_gc1w"].shape[-1]

    args = (ufea, vfea, UV_adj, VU_adj) + tuple(params[k] for k in _PARAM_ORDER)
    bytes_accessed = 4 * (sum(int(a.size) for a in args) + (nu + nv) * feat)

    return pl.pallas_call(
        functools.partial(_vbge_fused_kernel, alpha=float(alpha),
                          num_dgcn=num_dgcn, mm_dtype=matmul_dtype),
        out_shape=(jax.ShapeDtypeStruct((nu, feat), jnp.float32),
                   jax.ShapeDtypeStruct((nv, feat), jnp.float32)),
        in_specs=tuple(_vmem() for _ in args),
        out_specs=(_vmem(), _vmem()),
        compiler_params=pltpu.CompilerParams(
            vmem_limit_bytes=64 * 1024 * 1024),
        cost_estimate=_cost_estimate(nu, nv, feat, hid, num_dgcn,
                                     bytes_accessed),
    )(*args)


# -----------------------------------------------------------------------------
# parameter init (PyTorch-like raw layout) + one-time packing for the kernel
# -----------------------------------------------------------------------------
def _init_mat(key, shape, scale=0.1):
    return jax.random.normal(key, shape, jnp.float32) * scale


def init_gcn(key, nfeat, nhid):
    k1, k2 = jax.random.split(key)
    return {"w": _init_mat(k1, (nfeat, nhid)), "b": _init_mat(k2, (nhid,))}


def init_linear(key, in_f, out_f):
    k1, k2 = jax.random.split(key)
    # PyTorch nn.Linear weight layout: (out_features, in_features)
    return {"w": _init_mat(k1, (out_f, in_f)), "b": _init_mat(k2, (out_f,))}


def init_dgcn_layer(key, feat, hid):
    ks = jax.random.split(key, 6)
    return {
        "gc1": init_gcn(ks[0], feat, hid),
        "gc2": init_gcn(ks[1], feat, hid),
        "gc3": init_gcn(ks[2], hid, feat),
        "gc4": init_gcn(ks[3], hid, feat),
        "user_union": init_linear(ks[4], 2 * feat, feat),
        "item_union": init_linear(ks[5], 2 * feat, feat),
    }


def init_last_layer(key, feat, hid):
    ks = jax.random.split(key, 10)
    return {
        "gc1": init_gcn(ks[0], feat, hid),
        "gc2": init_gcn(ks[1], feat, hid),
        "gc3_mean": init_gcn(ks[2], hid, feat),
        "gc3_logstd": init_gcn(ks[3], hid, feat),
        "gc4_mean": init_gcn(ks[4], hid, feat),
        "gc4_logstd": init_gcn(ks[5], hid, feat),
        "user_union_mean": init_linear(ks[6], 2 * feat, feat),
        "user_union_logstd": init_linear(ks[7], 2 * feat, feat),
        "item_union_mean": init_linear(ks[8], 2 * feat, feat),
        "item_union_logstd": init_linear(ks[9], 2 * feat, feat),
    }


def init_raw_params(key, opt):
    n_layers = opt["GNN"]
    assert n_layers >= 2, "need >=1 DGCNLayer + LastLayer"
    keys = jax.random.split(key, n_layers)
    dgcn = [init_dgcn_layer(keys[i], opt["feature_dim"], opt["hidden_dim"])
            for i in range(n_layers - 1)]
    last = init_last_layer(keys[-1], opt["feature_dim"], opt["hidden_dim"])
    return {"dgcn": dgcn, "last": last}


def pack_params(raw, feat):
    """One-time packing: stack DGCN layers, split union Linears, drop logstd."""
    def split_union(lin):
        w, b = lin["w"], lin["b"]                       # (F, 2F), (F,)
        return w[:, :feat].T, w[:, feat:].T, b.reshape(1, -1)

    dgcn = raw["dgcn"]

    def stk(fn):
        return jnp.stack([fn(lp) for lp in dgcn], axis=0)

    packed = {
        "d_gc1w": stk(lambda lp: lp["gc1"]["w"]),
        "d_gc1b": stk(lambda lp: lp["gc1"]["b"].reshape(1, -1)),
        "d_gc2w": stk(lambda lp: lp["gc2"]["w"]),
        "d_gc2b": stk(lambda lp: lp["gc2"]["b"].reshape(1, -1)),
        "d_gc3w": stk(lambda lp: lp["gc3"]["w"]),
        "d_gc3b": stk(lambda lp: lp["gc3"]["b"].reshape(1, -1)),
        "d_gc4w": stk(lambda lp: lp["gc4"]["w"]),
        "d_gc4b": stk(lambda lp: lp["gc4"]["b"].reshape(1, -1)),
        "d_uwg": stk(lambda lp: split_union(lp["user_union"])[0]),
        "d_uwf": stk(lambda lp: split_union(lp["user_union"])[1]),
        "d_ub":  stk(lambda lp: split_union(lp["user_union"])[2]),
        "d_iwg": stk(lambda lp: split_union(lp["item_union"])[0]),
        "d_iwf": stk(lambda lp: split_union(lp["item_union"])[1]),
        "d_ib":  stk(lambda lp: split_union(lp["item_union"])[2]),
    }
    p = raw["last"]
    u_wg, u_wf, u_b = split_union(p["user_union_mean"])
    i_wg, i_wf, i_b = split_union(p["item_union_mean"])
    packed.update({
        "l_gc1w": p["gc1"]["w"], "l_gc1b": p["gc1"]["b"].reshape(1, -1),
        "l_gc2w": p["gc2"]["w"], "l_gc2b": p["gc2"]["b"].reshape(1, -1),
        "l_gc3w": p["gc3_mean"]["w"], "l_gc3b": p["gc3_mean"]["b"].reshape(1, -1),
        "l_gc4w": p["gc4_mean"]["w"], "l_gc4b": p["gc4_mean"]["b"].reshape(1, -1),
        "l_uwg": u_wg, "l_uwf": u_wf, "l_ub": u_b,
        "l_iwg": i_wg, "l_iwf": i_wf, "l_ib": i_b,
    })
    return packed


# -----------------------------------------------------------------------------
# plain-JAX reference (raw, unpacked params) for the correctness check
# -----------------------------------------------------------------------------
def _ref_gcn(x, adj, w, b, alpha):
    out = adj @ (x @ w) + b
    return jnp.where(out > 0, out, alpha * out)


def _ref_union(a, b_in, w_pt, bias, relu):
    out = jnp.concatenate([a, b_in], axis=1) @ w_pt.T + bias
    return jnp.maximum(out, 0.0) if relu else out


def reference_forward(raw, ufea, vfea, UV_adj, VU_adj, alpha):
    lu, lv = ufea, vfea
    for lp in raw["dgcn"]:
        u_ho = _ref_gcn(lu, VU_adj, lp["gc1"]["w"], lp["gc1"]["b"], alpha)
        i_ho = _ref_gcn(lv, UV_adj, lp["gc2"]["w"], lp["gc2"]["b"], alpha)
        u_ho = _ref_gcn(u_ho, UV_adj, lp["gc3"]["w"], lp["gc3"]["b"], alpha)
        i_ho = _ref_gcn(i_ho, VU_adj, lp["gc4"]["w"], lp["gc4"]["b"], alpha)
        lu_new = _ref_union(u_ho, lu, lp["user_union"]["w"],
                            lp["user_union"]["b"], True)
        lv_new = _ref_union(i_ho, lv, lp["item_union"]["w"],
                            lp["item_union"]["b"], True)
        lu, lv = lu_new, lv_new
    p = raw["last"]
    u_ho = _ref_gcn(lu, VU_adj, p["gc1"]["w"], p["gc1"]["b"], alpha)
    u_mean = _ref_gcn(u_ho, UV_adj, p["gc3_mean"]["w"], p["gc3_mean"]["b"], alpha)
    u_mean = _ref_union(u_mean, lu, p["user_union_mean"]["w"],
                        p["user_union_mean"]["b"], False)
    i_ho = _ref_gcn(lv, UV_adj, p["gc2"]["w"], p["gc2"]["b"], alpha)
    i_mean = _ref_gcn(i_ho, VU_adj, p["gc4_mean"]["w"], p["gc4_mean"]["b"], alpha)
    i_mean = _ref_union(i_mean, lv, p["item_union_mean"]["w"],
                        p["item_union_mean"]["b"], False)
    return u_mean, i_mean


# -----------------------------------------------------------------------------
# main
# -----------------------------------------------------------------------------
if __name__ == "__main__":
    opt = {"feature_dim": 32, "hidden_dim": 16, "GNN": 3,
           "dropout": 0.3, "leakey": 0.1}
    n_user, n_item = 16, 24

    key = jax.random.PRNGKey(0)
    k_param, k_u, k_v, k_uv = jax.random.split(key, 4)

    raw_params = init_raw_params(k_param, opt)
    params = pack_params(raw_params, opt["feature_dim"])   # packed once, host side

    ufea = jax.random.normal(k_u, (n_user, opt["feature_dim"]), jnp.float32)
    vfea = jax.random.normal(k_v, (n_item, opt["feature_dim"]), jnp.float32)

    # dense row-normalized bipartite adjacencies
    UV_raw = (jax.random.uniform(k_uv, (n_user, n_item)) > 0.5).astype(jnp.float32)
    VU_raw = UV_raw.T
    UV_adj = UV_raw / jnp.clip(UV_raw.sum(axis=1, keepdims=True), 1.0)
    VU_adj = VU_raw / jnp.clip(VU_raw.sum(axis=1, keepdims=True), 1.0)

    # exact (f32) path — used for the correctness check
    user_out, item_out = single_vbge_forward(params, ufea, vfea, UV_adj, VU_adj,
                                             alpha=opt["leakey"])
    jax.block_until_ready((user_out, item_out))

    assert user_out.shape == (n_user, opt["feature_dim"])
    assert item_out.shape == (n_item, opt["feature_dim"])
    assert user_out.dtype == jnp.float32 and item_out.dtype == jnp.float32

    ref_u, ref_i = reference_forward(raw_params, ufea, vfea, UV_adj, VU_adj,
                                     opt["leakey"])
    assert jnp.allclose(user_out, ref_u, atol=1e-3, rtol=1e-3)
    assert jnp.allclose(item_out, ref_i, atol=1e-3, rtol=1e-3)

    # bf16-MXU path (v6e / v7x recommendation): f32 accumulation, loose tol
    user_bf, item_bf = single_vbge_forward(params, ufea, vfea, UV_adj, VU_adj,
                                           alpha=opt["leakey"],
                                           matmul_dtype=jnp.bfloat16)
    jax.block_until_ready((user_bf, item_bf))
    assert jnp.allclose(user_bf, ref_u, atol=1e-1, rtol=1e-1)
    assert jnp.allclose(item_bf, ref_i, atol=1e-1, rtol=1e-1)

    print("KERNEL_OK")
</pallas_src>

<mosaic_0001>
module attributes {stable_mosaic.version = 11 : i64} {
  func.func @_vbge_fused_kernel(%arg0: memref<16x32xf32, #tpu.memory_space<vmem>>, %arg1: memref<24x32xf32, #tpu.memory_space<vmem>>, %arg2: memref<16x24xf32, #tpu.memory_space<vmem>>, %arg3: memref<24x16xf32, #tpu.memory_space<vmem>>, %arg4: memref<2x32x16xf32, #tpu.memory_space<vmem>>, %arg5: memref<2x1x16xf32, #tpu.memory_space<vmem>>, %arg6: memref<2x32x16xf32, #tpu.memory_space<vmem>>, %arg7: memref<2x1x16xf32, #tpu.memory_space<vmem>>, %arg8: memref<2x16x32xf32, #tpu.memory_space<vmem>>, %arg9: memref<2x1x32xf32, #tpu.memory_space<vmem>>, %arg10: memref<2x16x32xf32, #tpu.memory_space<vmem>>, %arg11: memref<2x1x32xf32, #tpu.memory_space<vmem>>, %arg12: memref<2x32x32xf32, #tpu.memory_space<vmem>>, %arg13: memref<2x32x32xf32, #tpu.memory_space<vmem>>, %arg14: memref<2x1x32xf32, #tpu.memory_space<vmem>>, %arg15: memref<2x32x32xf32, #tpu.memory_space<vmem>>, %arg16: memref<2x32x32xf32, #tpu.memory_space<vmem>>, %arg17: memref<2x1x32xf32, #tpu.memory_space<vmem>>, %arg18: memref<32x16xf32, #tpu.memory_space<vmem>>, %arg19: memref<1x16xf32, #tpu.memory_space<vmem>>, %arg20: memref<32x16xf32, #tpu.memory_space<vmem>>, %arg21: memref<1x16xf32, #tpu.memory_space<vmem>>, %arg22: memref<16x32xf32, #tpu.memory_space<vmem>>, %arg23: memref<1x32xf32, #tpu.memory_space<vmem>>, %arg24: memref<16x32xf32, #tpu.memory_space<vmem>>, %arg25: memref<1x32xf32, #tpu.memory_space<vmem>>, %arg26: memref<32x32xf32, #tpu.memory_space<vmem>>, %arg27: memref<32x32xf32, #tpu.memory_space<vmem>>, %arg28: memref<1x32xf32, #tpu.memory_space<vmem>>, %arg29: memref<32x32xf32, #tpu.memory_space<vmem>>, %arg30: memref<32x32xf32, #tpu.memory_space<vmem>>, %arg31: memref<1x32xf32, #tpu.memory_space<vmem>>, %arg32: memref<16x32xf32, #tpu.memory_space<vmem>>, %arg33: memref<24x32xf32, #tpu.memory_space<vmem>>) attributes {dimension_semantics = [], scalar_prefetch = 0 : i64, scratch_operands = 0 : i64, tpu.core_type = #tpu.core_type<tc>} {
    %c0 = arith.constant 0 : index
    %c0_0 = arith.constant 0 : index
    %0 = vector.load %arg2[%c0, %c0_0] : memref<16x24xf32, #tpu.memory_space<vmem>>, vector<16x24xf32>
    %c0_1 = arith.constant 0 : index
    %c0_2 = arith.constant 0 : index
    %1 = vector.load %arg3[%c0_1, %c0_2] : memref<24x16xf32, #tpu.memory_space<vmem>>, vector<24x16xf32>
    %c0_3 = arith.constant 0 : index
    %c0_4 = arith.constant 0 : index
    %2 = vector.load %arg0[%c0_3, %c0_4] : memref<16x32xf32, #tpu.memory_space<vmem>>, vector<16x32xf32>
    %c0_5 = arith.constant 0 : index
    %c0_6 = arith.constant 0 : index
    %3 = vector.load %arg1[%c0_5, %c0_6] : memref<24x32xf32, #tpu.memory_space<vmem>>, vector<24x32xf32>
    %c0_i32 = arith.constant 0 : i32
    %c2_i32 = arith.constant 2 : i32
    %4 = arith.addi %c0_i32, %c2_i32 : i32
    %c1_i32 = arith.constant 1 : i32
    %5:2 = scf.for %arg34 = %c0_i32 to %4 step %c1_i32 iter_args(%arg35 = %2, %arg36 = %3) -> (vector<16x32xf32>, vector<24x32xf32>)  : i32 {
      %68 = arith.index_cast %arg34 : i32 to index
      %c0_59 = arith.constant 0 : index
      %c0_60 = arith.constant 0 : index
      %69 = vector.load %arg4[%68, %c0_59, %c0_60] : memref<2x32x16xf32, #tpu.memory_space<vmem>>, vector<1x32x16xf32>
      %70 = vector.shape_cast %69 : vector<1x32x16xf32> to vector<32x16xf32>
      %cst_61 = arith.constant dense<0.000000e+00> : vector<16x16xf32>
      %71 = tpu.matmul %arg35, %70, %cst_61 {dimension_numbers = #tpu.dot_dimension_numbers<[1], [0], [0], [1], [0, 0, 1, 1], [], []>} : vector<16x32xf32>, vector<32x16xf32>, vector<16x16xf32> -> vector<16x16xf32>
      %cst_62 = arith.constant dense<0.000000e+00> : vector<24x16xf32>
      %72 = tpu.matmul %1, %71, %cst_62 {dimension_numbers = #tpu.dot_dimension_numbers<[1], [0], [0], [1], [0, 0, 1, 1], [], []>} : vector<24x16xf32>, vector<16x16xf32>, vector<24x16xf32> -> vector<24x16xf32>
      %73 = arith.index_cast %arg34 : i32 to index
      %c0_63 = arith.constant 0 : index
      %c0_64 = arith.constant 0 : index
      %74 = vector.load %arg5[%73, %c0_63, %c0_64] : memref<2x1x16xf32, #tpu.memory_space<vmem>>, vector<1x1x16xf32>
      %75 = vector.shape_cast %74 : vector<1x1x16xf32> to vector<1x16xf32>
      %76 = vector.broadcast %75 : vector<1x16xf32> to vector<24x16xf32>
      %77 = arith.addf %72, %76 : vector<24x16xf32>
      %cst_65 = arith.constant 0.000000e+00 : f32
      %78 = vector.broadcast %cst_65 : f32 to vector<24x16xf32>
      %79 = arith.cmpf ogt, %77, %78 : vector<24x16xf32>
      %cst_66 = arith.constant 1.000000e-01 : f32
      %80 = vector.broadcast %cst_66 : f32 to vector<24x16xf32>
      %81 = arith.mulf %80, %77 : vector<24x16xf32>
      %82 = arith.select %79, %77, %81 : vector<24x16xi1>, vector<24x16xf32>
      %83 = arith.index_cast %arg34 : i32 to index
      %c0_67 = arith.constant 0 : index
      %c0_68 = arith.constant 0 : index
      %84 = vector.load %arg6[%83, %c0_67, %c0_68] : memref<2x32x16xf32, #tpu.memory_space<vmem>>, vector<1x32x16xf32>
      %85 = vector.shape_cast %84 : vector<1x32x16xf32> to vector<32x16xf32>
      %cst_69 = arith.constant dense<0.000000e+00> : vector<24x16xf32>
      %86 = tpu.matmul %arg36, %85, %cst_69 {dimension_numbers = #tpu.dot_dimension_numbers<[1], [0], [0], [1], [0, 0, 1, 1], [], []>} : vector<24x32xf32>, vector<32x16xf32>, vector<24x16xf32> -> vector<24x16xf32>
      %cst_70 = arith.constant dense<0.000000e+00> : vector<16x16xf32>
      %87 = tpu.matmul %0, %86, %cst_70 {dimension_numbers = #tpu.dot_dimension_numbers<[1], [0], [0], [1], [0, 0, 1, 1], [], []>} : vector<16x24xf32>, vector<24x16xf32>, vector<16x16xf32> -> vector<16x16xf32>
      %88 = arith.index_cast %arg34 : i32 to index
      %c0_71 = arith.constant 0 : index
      %c0_72 = arith.constant 0 : index
      %89 = vector.load %arg7[%88, %c0_71, %c0_72] : memref<2x1x16xf32, #tpu.memory_space<vmem>>, vector<1x1x16xf32>
      %90 = vector.shape_cast %89 : vector<1x1x16xf32> to vector<1x16xf32>
      %91 = vector.broadcast %90 : vector<1x16xf32> to vector<16x16xf32>
      %92 = arith.addf %87, %91 : vector<16x16xf32>
      %cst_73 = arith.constant 0.000000e+00 : f32
      %93 = vector.broadcast %cst_73 : f32 to vector<16x16xf32>
      %94 = arith.cmpf ogt, %92, %93 : vector<16x16xf32>
      %cst_74 = arith.constant 1.000000e-01 : f32
      %95 = vector.broadcast %cst_74 : f32 to vector<16x16xf32>
      %96 = arith.mulf %95, %92 : vector<16x16xf32>
      %97 = arith.select %94, %92, %96 : vector<16x16xi1>, vector<16x16xf32>
      %98 = arith.index_cast %arg34 : i32 to index
      %c0_75 = arith.constant 0 : index
      %c0_76 = arith.constant 0 : index
      %99 = vector.load %arg8[%98, %c0_75, %c0_76] : memref<2x16x32xf32, #tpu.memory_space<vmem>>, vector<1x16x32xf32>
      %100 = vector.shape_cast %99 : vector<1x16x32xf32> to vector<16x32xf32>
      %cst_77 = arith.constant dense<0.000000e+00> : vector<24x32xf32>
      %101 = tpu.matmul %82, %100, %cst_77 {dimension_numbers = #tpu.dot_dimension_numbers<[1], [0], [0], [1], [0, 0, 1, 1], [], []>} : vector<24x16xf32>, vector<16x32xf32>, vector<24x32xf32> -> vector<24x32xf32>
      %cst_78 = arith.constant dense<0.000000e+00> : vector<16x32xf32>
      %102 = tpu.matmul %0, %101, %cst_78 {dimension_numbers = #tpu.dot_dimension_numbers<[1], [0], [0], [1], [0, 0, 1, 1], [], []>} : vector<16x24xf32>, vector<24x32xf32>, vector<16x32xf32> -> vector<16x32xf32>
      %103 = arith.index_cast %arg34 : i32 to index
      %c0_79 = arith.constant 0 : index
      %c0_80 = arith.constant 0 : index
      %104 = vector.load %arg9[%103, %c0_79, %c0_80] : memref<2x1x32xf32, #tpu.memory_space<vmem>>, vector<1x1x32xf32>
      %105 = vector.shape_cast %104 : vector<1x1x32xf32> to vector<1x32xf32>
      %106 = vector.broadcast %105 : vector<1x32xf32> to vector<16x32xf32>
      %107 = arith.addf %102, %106 : vector<16x32xf32>
      %cst_81 = arith.constant 0.000000e+00 : f32
      %108 = vector.broadcast %cst_81 : f32 to vector<16x32xf32>
      %109 = arith.cmpf ogt, %107, %108 : vector<16x32xf32>
      %cst_82 = arith.constant 1.000000e-01 : f32
      %110 = vector.broadcast %cst_82 : f32 to vector<16x32xf32>
      %111 = arith.mulf %110, %107 : vector<16x32xf32>
      %112 = arith.select %109, %107, %111 : vector<16x32xi1>, vector<16x32xf32>
      %113 = arith.index_cast %arg34 : i32 to index
      %c0_83 = arith.constant 0 : index
      %c0_84 = arith.constant 0 : index
      %114 = vector.load %arg10[%113, %c0_83, %c0_84] : memref<2x16x32xf32, #tpu.memory_space<vmem>>, vector<1x16x32xf32>
      %115 = vector.shape_cast %114 : vector<1x16x32xf32> to vector<16x32xf32>
      %cst_85 = arith.constant dense<0.000000e+00> : vector<16x32xf32>
      %116 = tpu.matmul %97, %115, %cst_85 {dimension_numbers = #tpu.dot_dimension_numbers<[1], [0], [0], [1], [0, 0, 1, 1], [], []>} : vector<16x16xf32>, vector<16x32xf32>, vector<16x32xf32> -> vector<16x32xf32>
      %cst_86 = arith.constant dense<0.000000e+00> : vector<24x32xf32>
      %117 = tpu.matmul %1, %116, %cst_86 {dimension_numbers = #tpu.dot_dimension_numbers<[1], [0], [0], [1], [0, 0, 1, 1], [], []>} : vector<24x16xf32>, vector<16x32xf32>, vector<24x32xf32> -> vector<24x32xf32>
      %118 = arith.index_cast %arg34 : i32 to index
      %c0_87 = arith.constant 0 : index
      %c0_88 = arith.constant 0 : index
      %119 = vector.load %arg11[%118, %c0_87, %c0_88] : memref<2x1x32xf32, #tpu.memory_space<vmem>>, vector<1x1x32xf32>
      %120 = vector.shape_cast %119 : vector<1x1x32xf32> to vector<1x32xf32>
      %121 = vector.broadcast %120 : vector<1x32xf32> to vector<24x32xf32>
      %122 = arith.addf %117, %121 : vector<24x32xf32>
      %cst_89 = arith.constant 0.000000e+00 : f32
      %123 = vector.broadcast %cst_89 : f32 to vector<24x32xf32>
      %124 = arith.cmpf ogt, %122, %123 : vector<24x32xf32>
      %cst_90 = arith.constant 1.000000e-01 : f32
      %125 = vector.broadcast %cst_90 : f32 to vector<24x32xf32>
      %126 = arith.mulf %125, %122 : vector<24x32xf32>
      %127 = arith.select %124, %122, %126 : vector<24x32xi1>, vector<24x32xf32>
      %128 = arith.index_cast %arg34 : i32 to index
      %c0_91 = arith.constant 0 : index
      %c0_92 = arith.constant 0 : index
      %129 = vector.load %arg12[%128, %c0_91, %c0_92] : memref<2x32x32xf32, #tpu.memory_space<vmem>>, vector<1x32x32xf32>
      %130 = vector.shape_cast %129 : vector<1x32x32xf32> to vector<32x32xf32>
      %cst_93 = arith.constant dense<0.000000e+00> : vector<16x32xf32>
      %131 = tpu.matmul %112, %130, %cst_93 {dimension_numbers = #tpu.dot_dimension_numbers<[1], [0], [0], [1], [0, 0, 1, 1], [], []>} : vector<16x32xf32>, vector<32x32xf32>, vector<16x32xf32> -> vector<16x32xf32>
      %132 = arith.index_cast %arg34 : i32 to index
      %c0_94 = arith.constant 0 : index
      %c0_95 = arith.constant 0 : index
      %133 = vector.load %arg13[%132, %c0_94, %c0_95] : memref<2x32x32xf32, #tpu.memory_space<vmem>>, vector<1x32x32xf32>
      %134 = vector.shape_cast %133 : vector<1x32x32xf32> to vector<32x32xf32>
      %cst_96 = arith.constant dense<0.000000e+00> : vector<16x32xf32>
      %135 = tpu.matmul %arg35, %134, %cst_96 {dimension_numbers = #tpu.dot_dimension_numbers<[1], [0], [0], [1], [0, 0, 1, 1], [], []>} : vector<16x32xf32>, vector<32x32xf32>, vector<16x32xf32> -> vector<16x32xf32>
      %136 = arith.addf %131, %135 : vector<16x32xf32>
      %137 = arith.index_cast %arg34 : i32 to index
      %c0_97 = arith.constant 0 : index
      %c0_98 = arith.constant 0 : index
      %138 = vector.load %arg14[%137, %c0_97, %c0_98] : memref<2x1x32xf32, #tpu.memory_space<vmem>>, vector<1x1x32xf32>
      %139 = vector.shape_cast %138 : vector<1x1x32xf32> to vector<1x32xf32>
      %140 = vector.broadcast %139 : vector<1x32xf32> to vector<16x32xf32>
      %141 = arith.addf %136, %140 : vector<16x32xf32>
      %cst_99 = arith.constant 0.000000e+00 : f32
      %142 = vector.broadcast %cst_99 : f32 to vector<16x32xf32>
      %143 = arith.maximumf %141, %142 : vector<16x32xf32>
      %144 = arith.index_cast %arg34 : i32 to index
      %c0_100 = arith.constant 0 : index
      %c0_101 = arith.constant 0 : index
      %145 = vector.load %arg15[%144, %c0_100, %c0_101] : memref<2x32x32xf32, #tpu.memory_space<vmem>>, vector<1x32x32xf32>
      %146 = vector.shape_cast %145 : vector<1x32x32xf32> to vector<32x32xf32>
      %cst_102 = arith.constant dense<0.000000e+00> : vector<24x32xf32>
      %147 = tpu.matmul %127, %146, %cst_102 {dimension_numbers = #tpu.dot_dimension_numbers<[1], [0], [0], [1], [0, 0, 1, 1], [], []>} : vector<24x32xf32>, vector<32x32xf32>, vector<24x32xf32> -> vector<24x32xf32>
      %148 = arith.index_cast %arg34 : i32 to index
      %c0_103 = arith.constant 0 : index
      %c0_104 = arith.constant 0 : index
      %149 = vector.load %arg16[%148, %c0_103, %c0_104] : memref<2x32x32xf32, #tpu.memory_space<vmem>>, vector<1x32x32xf32>
      %150 = vector.shape_cast %149 : vector<1x32x32xf32> to vector<32x32xf32>
      %cst_105 = arith.constant dense<0.000000e+00> : vector<24x32xf32>
      %151 = tpu.matmul %arg36, %150, %cst_105 {dimension_numbers = #tpu.dot_dimension_numbers<[1], [0], [0], [1], [0, 0, 1, 1], [], []>} : vector<24x32xf32>, vector<32x32xf32>, vector<24x32xf32> -> vector<24x32xf32>
      %152 = arith.addf %147, %151 : vector<24x32xf32>
      %153 = arith.index_cast %arg34 : i32 to index
      %c0_106 = arith.constant 0 : index
      %c0_107 = arith.constant 0 : index
      %154 = vector.load %arg17[%153, %c0_106, %c0_107] : memref<2x1x32xf32, #tpu.memory_space<vmem>>, vector<1x1x32xf32>
      %155 = vector.shape_cast %154 : vector<1x1x32xf32> to vector<1x32xf32>
      %156 = vector.broadcast %155 : vector<1x32xf32> to vector<24x32xf32>
      %157 = arith.addf %152, %156 : vector<24x32xf32>
      %cst_108 = arith.constant 0.000000e+00 : f32
      %158 = vector.broadcast %cst_108 : f32 to vector<24x32xf32>
      %159 = arith.maximumf %157, %158 : vector<24x32xf32>
      scf.yield %143, %159 : vector<16x32xf32>, vector<24x32xf32>
    }
    %c2_i32_7 = arith.constant 2 : i32
    %c0_8 = arith.constant 0 : index
    %c0_9 = arith.constant 0 : index
    %6 = vector.load %arg18[%c0_8, %c0_9] : memref<32x16xf32, #tpu.memory_space<vmem>>, vector<32x16xf32>
    %cst = arith.constant dense<0.000000e+00> : vector<16x16xf32>
    %7 = tpu.matmul %5#0, %6, %cst {dimension_numbers = #tpu.dot_dimension_numbers<[1], [0], [0], [1], [0, 0, 1, 1], [], []>} : vector<16x32xf32>, vector<32x16xf32>, vector<16x16xf32> -> vector<16x16xf32>
    %cst_10 = arith.constant dense<0.000000e+00> : vector<24x16xf32>
    %8 = tpu.matmul %1, %7, %cst_10 {dimension_numbers = #tpu.dot_dimension_numbers<[1], [0], [0], [1], [0, 0, 1, 1], [], []>} : vector<24x16xf32>, vector<16x16xf32>, vector<24x16xf32> -> vector<24x16xf32>
    %c0_11 = arith.constant 0 : index
    %c0_12 = arith.constant 0 : index
    %9 = vector.load %arg19[%c0_11, %c0_12] : memref<1x16xf32, #tpu.memory_space<vmem>>, vector<1x16xf32>
    %10 = vector.broadcast %9 : vector<1x16xf32> to vector<24x16xf32>
    %11 = arith.addf %8, %10 : vector<24x16xf32>
    %cst_13 = arith.constant 0.000000e+00 : f32
    %12 = vector.broadcast %cst_13 : f32 to vector<24x16xf32>
    %13 = arith.cmpf ogt, %11, %12 : vector<24x16xf32>
    %cst_14 = arith.constant 1.000000e-01 : f32
    %14 = vector.broadcast %cst_14 : f32 to vector<24x16xf32>
    %15 = arith.mulf %14, %11 : vector<24x16xf32>
    %16 = arith.select %13, %11, %15 : vector<24x16xi1>, vector<24x16xf32>
    %c0_15 = arith.constant 0 : index
    %c0_16 = arith.constant 0 : index
    %17 = vector.load %arg22[%c0_15, %c0_16] : memref<16x32xf32, #tpu.memory_space<vmem>>, vector<16x32xf32>
    %cst_17 = arith.constant dense<0.000000e+00> : vector<24x32xf32>
    %18 = tpu.matmul %16, %17, %cst_17 {dimension_numbers = #tpu.dot_dimension_numbers<[1], [0], [0], [1], [0, 0, 1, 1], [], []>} : vector<24x16xf32>, vector<16x32xf32>, vector<24x32xf32> -> vector<24x32xf32>
    %cst_18 = arith.constant dense<0.000000e+00> : vector<16x32xf32>
    %19 = tpu.matmul %0, %18, %cst_18 {dimension_numbers = #tpu.dot_dimension_numbers<[1], [0], [0], [1], [0, 0, 1, 1], [], []>} : vector<16x24xf32>, vector<24x32xf32>, vector<16x32xf32> -> vector<16x32xf32>
    %c0_19 = arith.constant 0 : index
    %c0_20 = arith.constant 0 : index
    %20 = vector.load %arg23[%c0_19, %c0_20] : memref<1x32xf32, #tpu.memory_space<vmem>>, vector<1x32xf32>
    %21 = vector.broadcast %20 : vector<1x32xf32> to vector<16x32xf32>
    %22 = arith.addf %19, %21 : vector<16x32xf32>
    %cst_21 = arith.constant 0.000000e+00 : f32
    %23 = vector.broadcast %cst_21 : f32 to vector<16x32xf32>
    %24 = arith.cmpf ogt, %22, %23 : vector<16x32xf32>
    %cst_22 = arith.constant 1.000000e-01 : f32
    %25 = vector.broadcast %cst_22 : f32 to vector<16x32xf32>
    %26 = arith.mulf %25, %22 : vector<16x32xf32>
    %27 = arith.select %24, %22, %26 : vector<16x32xi1>, vector<16x32xf32>
    %c0_23 = arith.constant 0 : index
    %c0_24 = arith.constant 0 : index
    %28 = vector.load %arg26[%c0_23, %c0_24] : memref<32x32xf32, #tpu.memory_space<vmem>>, vector<32x32xf32>
    %cst_25 = arith.constant dense<0.000000e+00> : vector<16x32xf32>
    %29 = tpu.matmul %27, %28, %cst_25 {dimension_numbers = #tpu.dot_dimension_numbers<[1], [0], [0], [1], [0, 0, 1, 1], [], []>} : vector<16x32xf32>, vector<32x32xf32>, vector<16x32xf32> -> vector<16x32xf32>
    %c0_26 = arith.constant 0 : index
    %c0_27 = arith.constant 0 : index
    %30 = vector.load %arg27[%c0_26, %c0_27] : memref<32x32xf32, #tpu.memory_space<vmem>>, vector<32x32xf32>
    %cst_28 = arith.constant dense<0.000000e+00> : vector<16x32xf32>
    %31 = tpu.matmul %5#0, %30, %cst_28 {dimension_numbers = #tpu.dot_dimension_numbers<[1], [0], [0], [1], [0, 0, 1, 1], [], []>} : vector<16x32xf32>, vector<32x32xf32>, vector<16x32xf32> -> vector<16x32xf32>
    %32 = arith.addf %29, %31 : vector<16x32xf32>
    %c0_29 = arith.constant 0 : index
    %c0_30 = arith.constant 0 : index
    %33 = vector.load %arg28[%c0_29, %c0_30] : memref<1x32xf32, #tpu.memory_space<vmem>>, vector<1x32xf32>
    %34 = vector.broadcast %33 : vector<1x32xf32> to vector<16x32xf32>
    %35 = arith.addf %32, %34 : vector<16x32xf32>
    %c0_31 = arith.constant 0 : index
    %c0_32 = arith.constant 0 : index
    %36 = vector.load %arg32[%c0_31, %c0_32] : memref<16x32xf32, #tpu.memory_space<vmem>>, vector<16x32xf32>
    tpu.vector_store %arg32[%c0_31, %c0_32], %35 {strides = array<i32>} : memref<16x32xf32, #tpu.memory_space<vmem>>, vector<16x32xf32>,
    %c0_33 = arith.constant 0 : index
    %c0_34 = arith.constant 0 : index
    %37 = vector.load %arg20[%c0_33, %c0_34] : memref<32x16xf32, #tpu.memory_space<vmem>>, vector<32x16xf32>
    %cst_35 = arith.constant dense<0.000000e+00> : vector<24x16xf32>
    %38 = tpu.matmul %5#1, %37, %cst_35 {dimension_numbers = #tpu.dot_dimension_numbers<[1], [0], [0], [1], [0, 0, 1, 1], [], []>} : vector<24x32xf32>, vector<32x16xf32>, vector<24x16xf32> -> vector<24x16xf32>
    %cst_36 = arith.constant dense<0.000000e+00> : vector<16x16xf32>
    %39 = tpu.matmul %0, %38, %cst_36 {dimension_numbers = #tpu.dot_dimension_numbers<[1], [0], [0], [1], [0, 0, 1, 1], [], []>} : vector<16x24xf32>, vector<24x16xf32>, vector<16x16xf32> -> vector<16x16xf32>
    %c0_37 = arith.constant 0 : index
    %c0_38 = arith.constant 0 : index
    %40 = vector.load %arg21[%c0_37, %c0_38] : memref<1x16xf32, #tpu.memory_space<vmem>>, vector<1x16xf32>
    %41 = vector.broadcast %40 : vector<1x16xf32> to vector<16x16xf32>
    %42 = arith.addf %39, %41 : vector<16x16xf32>
    %cst_39 = arith.constant 0.000000e+00 : f32
    %43 = vector.broadcast %cst_39 : f32 to vector<16x16xf32>
    %44 = arith.cmpf ogt, %42, %43 : vector<16x16xf32>
    %cst_40 = arith.constant 1.000000e-01 : f32
    %45 = vector.broadcast %cst_40 : f32 to vector<16x16xf32>
    %46 = arith.mulf %45, %42 : vector<16x16xf32>
    %47 = arith.select %44, %42, %46 : vector<16x16xi1>, vector<16x16xf32>
    %c0_41 = arith.constant 0 : index
    %c0_42 = arith.constant 0 : index
    %48 = vector.load %arg24[%c0_41, %c0_42] : memref<16x32xf32, #tpu.memory_space<vmem>>, vector<16x32xf32>
    %cst_43 = arith.constant dense<0.000000e+00> : vector<16x32xf32>
    %49 = tpu.matmul %47, %48, %cst_43 {dimension_numbers = #tpu.dot_dimension_numbers<[1], [0], [0], [1], [0, 0, 1, 1], [], []>} : vector<16x16xf32>, vector<16x32xf32>, vector<16x32xf32> -> vector<16x32xf32>
    %cst_44 = arith.constant dense<0.000000e+00> : vector<24x32xf32>
    %50 = tpu.matmul %1, %49, %cst_44 {dimension_numbers = #tpu.dot_dimension_numbers<[1], [0], [0], [1], [0, 0, 1, 1], [], []>} : vector<24x16xf32>, vector<16x32xf32>, vector<24x32xf32> -> vector<24x32xf32>
    %c0_45 = arith.constant 0 : index
    %c0_46 = arith.constant 0 : index
    %51 = vector.load %arg25[%c0_45, %c0_46] : memref<1x32xf32, #tpu.memory_space<vmem>>, vector<1x32xf32>
    %52 = vector.broadcast %51 : vector<1x32xf32> to vector<24x32xf32>
    %53 = arith.addf %50, %52 : vector<24x32xf32>
    %cst_47 = arith.constant 0.000000e+00 : f32
    %54 = vector.broadcast %cst_47 : f32 to vector<24x32xf32>
    %55 = arith.cmpf ogt, %53, %54 : vector<24x32xf32>
    %cst_48 = arith.constant 1.000000e-01 : f32
    %56 = vector.broadcast %cst_48 : f32 to vector<24x32xf32>
    %57 = arith.mulf %56, %53 : vector<24x32xf32>
    %58 = arith.select %55, %53, %57 : vector<24x32xi1>, vector<24x32xf32>
    %c0_49 = arith.constant 0 : index
    %c0_50 = arith.constant 0 : index
    %59 = vector.load %arg29[%c0_49, %c0_50] : memref<32x32xf32, #tpu.memory_space<vmem>>, vector<32x32xf32>
    %cst_51 = arith.constant dense<0.000000e+00> : vector<24x32xf32>
    %60 = tpu.matmul %58, %59, %cst_51 {dimension_numbers = #tpu.dot_dimension_numbers<[1], [0], [0], [1], [0, 0, 1, 1], [], []>} : vector<24x32xf32>, vector<32x32xf32>, vector<24x32xf32> -> vector<24x32xf32>
    %c0_52 = arith.constant 0 : index
    %c0_53 = arith.constant 0 : index
    %61 = vector.load %arg30[%c0_52, %c0_53] : memref<32x32xf32, #tpu.memory_space<vmem>>, vector<32x32xf32>
    %cst_54 = arith.constant dense<0.000000e+00> : vector<24x32xf32>
    %62 = tpu.matmul %5#1, %61, %cst_54 {dimension_numbers = #tpu.dot_dimension_numbers<[1], [0], [0], [1], [0, 0, 1, 1], [], []>} : vector<24x32xf32>, vector<32x32xf32>, vector<24x32xf32> -> vector<24x32xf32>
    %63 = arith.addf %60, %62 : vector<24x32xf32>
    %c0_55 = arith.constant 0 : index
    %c0_56 = arith.constant 0 : index
    %64 = vector.load %arg31[%c0_55, %c0_56] : memref<1x32xf32, #tpu.memory_space<vmem>>, vector<1x32xf32>
    %65 = vector.broadcast %64 : vector<1x32xf32> to vector<24x32xf32>
    %66 = arith.addf %63, %65 : vector<24x32xf32>
    %c0_57 = arith.constant 0 : index
    %c0_58 = arith.constant 0 : index
    %67 = vector.load %arg33[%c0_57, %c0_58] : memref<24x32xf32, #tpu.memory_space<vmem>>, vector<24x32xf32>
    tpu.vector_store %arg33[%c0_57, %c0_58], %66 {strides = array<i32>} : memref<24x32xf32, #tpu.memory_space<vmem>>, vector<24x32xf32>,
    return
  }
}

</mosaic_0001>

<llo_original>
// kernel: single_vbge_forward.1
$region0: #{single_vbge_forward.1}
  #allocation0 [shape = 'u32[]', space=smem, size = 0x4, offset = 0x4, fixed_abs, tag = 'smem constant byte address 0x4 - core index']
  #allocation1 [shape = 'u32[144,128]{1,0:T(1,128)}', space=vmem, size = 0x12000, scoped, tag = 'internal scratch']
  %s0 = inlined_call_operand.smem [shape: u32[34], index: -1, kind: input, shape index: {}]
  %s1 = sld [smem:[%s0]]
  %s2 = scalar_lea.smem %s0, 1
  %s3 = sld [smem:[%s2]]
  %s4 = scalar_lea.smem %s0, 2
  %s5 = sld [smem:[%s4]]
  %s6 = scalar_lea.smem %s0, 3
  %s7 = sld [smem:[%s6]]
  %s8 = scalar_lea.smem %s0, 4
  %s9 = sld [smem:[%s8]]
  %s10 = scalar_lea.smem %s0, 5
  %s11 = sld [smem:[%s10]]
  %s12 = scalar_lea.smem %s0, 6
  %s13 = sld [smem:[%s12]]
  %s14 = scalar_lea.smem %s0, 7
  %s15 = sld [smem:[%s14]]
  %s16 = scalar_lea.smem %s0, 8
  %s17 = sld [smem:[%s16]]
  %s18 = scalar_lea.smem %s0, 9
  %s19 = sld [smem:[%s18]]
  %s20 = scalar_lea.smem %s0, 10
  %s21 = sld [smem:[%s20]]
  %s22 = scalar_lea.smem %s0, 11
  %s23 = sld [smem:[%s22]]
  %s24 = scalar_lea.smem %s0, 12
  %s25 = sld [smem:[%s24]]
  %s26 = scalar_lea.smem %s0, 13
  %s27 = sld [smem:[%s26]]
  %s28 = scalar_lea.smem %s0, 14
  %s29 = sld [smem:[%s28]]
  %s30 = scalar_lea.smem %s0, 15
  %s31 = sld [smem:[%s30]]
  %s32 = scalar_lea.smem %s0, 16
  %s33 = sld [smem:[%s32]]
  %s34 = scalar_lea.smem %s0, 17
  %s35 = sld [smem:[%s34]]
  %s36 = scalar_lea.smem %s0, 18
  %s37 = sld [smem:[%s36]]
  %s38 = scalar_lea.smem %s0, 19
  %s39 = sld [smem:[%s38]]
  %s40 = scalar_lea.smem %s0, 20
  %s41 = sld [smem:[%s40]]
  %s42 = scalar_lea.smem %s0, 21
  %s43 = sld [smem:[%s42]]
  %s44 = scalar_lea.smem %s0, 22
  %s45 = sld [smem:[%s44]]
  %s46 = scalar_lea.smem %s0, 23
  %s47 = sld [smem:[%s46]]
  %s48 = scalar_lea.smem %s0, 24
  %s49 = sld [smem:[%s48]]
  %s50 = scalar_lea.smem %s0, 25
  %s51 = sld [smem:[%s50]]
  %s52 = scalar_lea.smem %s0, 26
  %s53 = sld [smem:[%s52]]
  %s54 = scalar_lea.smem %s0, 27
  %s55 = sld [smem:[%s54]]
  %s56 = scalar_lea.smem %s0, 28
  %s57 = sld [smem:[%s56]]
  %s58 = scalar_lea.smem %s0, 29
  %s59 = sld [smem:[%s58]]
  %s60 = scalar_lea.smem %s0, 30
  %s61 = sld [smem:[%s60]]
  %s62 = scalar_lea.smem %s0, 31
  %s63 = sld [smem:[%s62]]
  %s64 = scalar_lea.smem %s0, 32
  %s65 = sld [smem:[%s64]]
  %s66 = scalar_lea.smem %s0, 33
  %s67 = sld [smem:[%s66]]
  %68 = xla_tuple %s65, %s67
  %s69 = sld [smem:[#allocation0]]
  $region233: #{single_vbge_forward.1} parent=0
    _
  %s71 = ssub.s32 1, %s69
  %s72 = scalar_select 0, %s71, %s69
  $region1: #{single_vbge_forward.1} parent=0
    #allocation2 [shape = 'u8[8192]{0}', space=vmem, size = 0x2000, scoped, tag = 'input window, operand 0, single buffered']
    #allocation3 [shape = 's32[1]{0}', space=sflag, size = 0x4, scoped, tag = 'scoped memory for single_vbge_forward.1']
    #allocation4 [shape = 's32[1]{0}', space=sflag, size = 0x4, scoped, tag = 'scoped memory for single_vbge_forward.1']
    #allocation5 [shape = 'u8[8192]{0}', space=vmem, size = 0x2000, scoped, tag = 'input window, operand 2, single buffered']
    #allocation6 [shape = 's32[1]{0}', space=sflag, size = 0x4, scoped, tag = 'scoped memory for single_vbge_forward.1']
    #allocation7 [shape = 'u8[1024]{0}', space=vmem, size = 0x400, scoped, tag = 'input window, operand 5, single buffered']
    #allocation8 [shape = 'u8[1024]{0}', space=vmem, size = 0x400, scoped, tag = 'input window, operand 7, single buffered']
    #allocation9 [shape = 's32[1]{0}', space=sflag, size = 0x4, scoped, tag = 'scoped memory for single_vbge_forward.1']
    #allocation10 [shape = 'u8[16384]{0}', space=vmem, size = 0x4000, scoped, tag = 'input window, operand 8, single buffered']
    #allocation11 [shape = 'u8[1024]{0}', space=vmem, size = 0x400, scoped, tag = 'input window, operand 9, single buffered']
    #allocation12 [shape = 's32[1]{0}', space=sflag, size = 0x4, scoped, tag = 'scoped memory for single_vbge_forward.1']
    #allocation13 [shape = 'u8[16384]{0}', space=vmem, size = 0x4000, scoped, tag = 'input window, operand 10, single buffered']
    #allocation14 [shape = 'u8[1024]{0}', space=vmem, size = 0x400, scoped, tag = 'input window, operand 11, single buffered']
    #allocation15 [shape = 's32[1]{0}', space=sflag, size = 0x4, scoped, tag = 'scoped memory for single_vbge_forward.1']
    #allocation16 [shape = 'u8[1024]{0}', space=vmem, size = 0x400, scoped, tag = 'input window, operand 14, single buffered']
    #allocation17 [shape = 'u8[1024]{0}', space=vmem, size = 0x400, scoped, tag = 'input window, operand 17, single buffered']
    #allocation18 [shape = 's32[1]{0}', space=sflag, size = 0x4, scoped, tag = 'scoped memory for single_vbge_forward.1']
    #allocation19 [shape = 'u8[512]{0}', space=vmem, size = 0x400, scoped, tag = 'input window, operand 21, single buffered']
    #allocation20 [shape = 'u8[8192]{0}', space=vmem, size = 0x2000, scoped, tag = 'input window, operand 22, single buffered']
    #allocation21 [shape = 's32[1]{0}', space=sflag, size = 0x4, scoped, tag = 'scoped memory for single_vbge_forward.1']
    #allocation22 [shape = 'u8[512]{0}', space=vmem, size = 0x400, scoped, tag = 'input window, operand 23, single buffered']
    #allocation23 [shape = 'u8[8192]{0}', space=vmem, size = 0x2000, scoped, tag = 'input window, operand 24, single buffered']
    #allocation24 [shape = 's32[1]{0}', space=sflag, size = 0x4, scoped, tag = 'scoped memory for single_vbge_forward.1']
    #allocation25 [shape = 'u8[512]{0}', space=vmem, size = 0x400, scoped, tag = 'input window, operand 25, single buffered']
    #allocation26 [shape = 'u8[16384]{0}', space=vmem, size = 0x4000, scoped, tag = 'input window, operand 27, single buffered']
    #allocation27 [shape = 's32[1]{0}', space=sflag, size = 0x4, scoped, tag = 'scoped memory for single_vbge_forward.1']
    #allocation28 [shape = 'u8[512]{0}', space=vmem, size = 0x400, scoped, tag = 'input window, operand 28, single buffered']
    #allocation29 [shape = 'u8[16384]{0}', space=vmem, size = 0x4000, scoped, tag = 'input window, operand 29, single buffered']
    #allocation30 [shape = 's32[1]{0}', space=sflag, size = 0x4, scoped, tag = 'scoped memory for single_vbge_forward.1']
    #allocation31 [shape = 'u8[16384]{0}', space=vmem, size = 0x4000, scoped, tag = 'input window, operand 30, single buffered']
    #allocation32 [shape = 'u8[512]{0}', space=vmem, size = 0x400, scoped, tag = 'input window, operand 31, single buffered']
    #allocation33 [shape = 's32[1]{0}', space=sflag, size = 0x4, scoped, tag = 'scoped memory for single_vbge_forward.1']
    #allocation34 [shape = 'u8[8192]{0}', space=vmem, size = 0x2000, scoped, tag = 'output window, operand 0, single buffered']
    #allocation35 [shape = 'u8[12288]{0}', space=vmem, size = 0x3000, scoped, tag = 'output window, operand 1, single buffered']
    #allocation36 [shape = 's32[1]{0}', space=sflag, size = 0x4, scoped, tag = 'scoped memory for single_vbge_forward.1']
    %73 = vsyncpa [#allocation3], 0
    %74 = vsyncpa [#allocation6], 0
    %75 = vsyncpa [#allocation9], 0
    %76 = vsyncpa [#allocation12], 0
    %77 = vsyncpa [#allocation15], 0
    %78 = vsyncpa [#allocation18], 0
    %79 = vsyncpa [#allocation21], 0
    %80 = vsyncpa [#allocation24], 0
    %81 = vsyncpa [#allocation27], 0
    %82 = vsyncpa [#allocation30], 0
    %83 = vsyncpa [#allocation33], 0
    %84 = vsyncpa [#allocation4], 0
    %85 = vsyncpa [#allocation36], 0
    // Predicated region
    $region2: #{single_vbge_forward.1} parent=1 // pred_check
      _
    $region3: #{single_vbge_forward.1} parent=1 // pred_check_branch
      %87 = sbr.rel (0) target = $region5
    $region4: #{single_vbge_forward.1} parent=1 // pred_region
      %s89 = ssub.s32 256, 256
      %90 = vsyncadd [#allocation3], %s89
      %s91 = sshll.u32 [#allocation2], 4
      %s92 = int_to_ptr.vmem [resolvable:$true] %s91
      %97 = dma.hbm_to_vmem [thread:$0]  %s1, 256, %s92, [#allocation3], 128, 128, 8
    $region5: #{single_vbge_forward.1} parent=1 // pred_fallthru
      _
    // Predicated region
    $region6: #{single_vbge_forward.1} parent=1 // pred_check
      _
    $region7: #{single_vbge_forward.1} parent=1 // pred_check_branch
      %99 = sbr.rel (0) target = $region9
    $region8: #{single_vbge_forward.1} parent=1 // pred_region
      _
    $region9: #{single_vbge_forward.1} parent=1 // pred_fallthru
      _
    // Predicated region
    $region10: #{single_vbge_forward.1} parent=1 // pred_check
      _
    $region11: #{single_vbge_forward.1} parent=1 // pred_check_branch
      %101 = sbr.rel (0) target = $region13
    $region12: #{single_vbge_forward.1} parent=1 // pred_region
      %s103 = ssub.s32 256, 256
      %104 = vsyncadd [#allocation6], %s103
      %s105 = sshll.u32 [#allocation5], 4
      %s106 = int_to_ptr.vmem [resolvable:$true] %s105
      %111 = dma.hbm_to_vmem [thread:$0]  %s5, 256, %s106, [#allocation6], 128, 128, 8
    $region13: #{single_vbge_forward.1} parent=1 // pred_fallthru
      _
    // Predicated region
    $region14: #{single_vbge_forward.1} parent=1 // pred_check
      _
    $region15: #{single_vbge_forward.1} parent=1 // pred_check_branch
      %113 = sbr.rel (0) target = $region17
    $region16: #{single_vbge_forward.1} parent=1 // pred_region
      _
    $region17: #{single_vbge_forward.1} parent=1 // pred_fallthru
      _
    // Predicated region
    $region18: #{single_vbge_forward.1} parent=1 // pred_check
      _
    $region19: #{single_vbge_forward.1} parent=1 // pred_check_branch
      %115 = sbr.rel (0) target = $region21
    $region20: #{single_vbge_forward.1} parent=1 // pred_region
      _
    $region21: #{single_vbge_forward.1} parent=1 // pred_fallthru
      _
    // Predicated region
    $region22: #{single_vbge_forward.1} parent=1 // pred_check
      _
    $region23: #{single_vbge_forward.1} parent=1 // pred_check_branch
      %117 = sbr.rel (0) target = $region25
    $region24: #{single_vbge_forward.1} parent=1 // pred_region
      %s119 = ssub.s32 32, 32
      %120 = vsyncadd [#allocation6], %s119
      %s121 = sshll.u32 [#allocation7], 4
      %s122 = int_to_ptr.vmem [resolvable:$true] %s121
      %127 = dma.hbm_to_vmem [thread:$0]  %s11, 32, %s122, [#allocation6], 16, 16, 1
    $region25: #{single_vbge_forward.1} parent=1 // pred_fallthru
      _
    // Predicated region
    $region26: #{single_vbge_forward.1} parent=1 // pred_check
      _
    $region27: #{single_vbge_forward.1} parent=1 // pred_check_branch
      %129 = sbr.rel (0) target = $region29
    $region28: #{single_vbge_forward.1} parent=1 // pred_region
      _
    $region29: #{single_vbge_forward.1} parent=1 // pred_fallthru
      _
    // Predicated region
    $region30: #{single_vbge_forward.1} parent=1 // pred_check
      _
    $region31: #{single_vbge_forward.1} parent=1 // pred_check_branch
      %131 = sbr.rel (0) target = $region33
    $region32: #{single_vbge_forward.1} parent=1 // pred_region
      %s133 = ssub.s32 32, 32
      %134 = vsyncadd [#allocation9], %s133
      %s135 = sshll.u32 [#allocation8], 4
      %s136 = int_to_ptr.vmem [resolvable:$true] %s135
      %141 = dma.hbm_to_vmem [thread:$0]  %s15, 32, %s136, [#allocation9], 16, 16, 1
    $region33: #{single_vbge_forward.1} parent=1 // pred_fallthru
      _
    // Predicated region
    $region34: #{single_vbge_forward.1} parent=1 // pred_check
      _
    $region35: #{single_vbge_forward.1} parent=1 // pred_check_branch
      %143 = sbr.rel (0) target = $region37
    $region36: #{single_vbge_forward.1} parent=1 // pred_region
      %s145 = ssub.s32 512, 512
      %146 = vsyncadd [#allocation9], %s145
      %s147 = sshll.u32 [#allocation10], 4
      %s148 = int_to_ptr.vmem [resolvable:$true] %s147
      %153 = dma.hbm_to_vmem [thread:$0]  %s17, 512, %s148, [#allocation9], 128, 128, 8
    $region37: #{single_vbge_forward.1} parent=1 // pred_fallthru
      _
    // Predicated region
    $region38: #{single_vbge_forward.1} parent=1 // pred_check
      _
    $region39: #{single_vbge_forward.1} parent=1 // pred_check_branch
      %155 = sbr.rel (0) target = $region41
    $region40: #{single_vbge_forward.1} parent=1 // pred_region
      %s157 = ssub.s32 32, 32
      %158 = vsyncadd [#allocation12], %s157
      %s159 = sshll.u32 [#allocation11], 4
      %s160 = int_to_ptr.vmem [resolvable:$true] %s159
      %165 = dma.hbm_to_vmem [thread:$0]  %s19, 32, %s160, [#allocation12], 16, 16, 1
    $region41: #{single_vbge_forward.1} parent=1 // pred_fallthru
      _
    // Predicated region
    $region42: #{single_vbge_forward.1} parent=1 // pred_check
      _
    $region43: #{single_vbge_forward.1} parent=1 // pred_check_branch
      %167 = sbr.rel (0) target = $region45
    $region44: #{single_vbge_forward.1} parent=1 // pred_region
      %s169 = ssub.s32 512, 512
      %170 = vsyncadd [#allocation12], %s169
      %s171 = sshll.u32 [#allocation13], 4
      %s172 = int_to_ptr.vmem [resolvable:$true] %s171
      %177 = dma.hbm_to_vmem [thread:$0]  %s21, 512, %s172, [#allocation12], 128, 128, 8
    $region45: #{single_vbge_forward.1} parent=1 // pred_fallthru
      _
    // Predicated region
    $region46: #{single_vbge_forward.1} parent=1 // pred_check
      _
    $region47: #{single_vbge_forward.1} parent=1 // pred_check_branch
      %179 = sbr.rel (0) target = $region49
    $region48: #{single_vbge_forward.1} parent=1 // pred_region
      %s181 = ssub.s32 32, 32
      %182 = vsyncadd [#allocation15], %s181
      %s183 = sshll.u32 [#allocation14], 4
      %s184 = int_to_ptr.vmem [resolvable:$true] %s183
      %189 = dma.hbm_to_vmem [thread:$0]  %s23, 32, %s184, [#allocation15], 16, 16, 1
    $region49: #{single_vbge_forward.1} parent=1 // pred_fallthru
      _
    // Predicated region
    $region50: #{single_vbge_forward.1} parent=1 // pred_check
      _
    $region51: #{single_vbge_forward.1} parent=1 // pred_check_branch
      %191 = sbr.rel (0) target = $region53
    $region52: #{single_vbge_forward.1} parent=1 // pred_region
      _
    $region53: #{single_vbge_forward.1} parent=1 // pred_fallthru
      _
    // Predicated region
    $region54: #{single_vbge_forward.1} parent=1 // pred_check
      _
    $region55: #{single_vbge_forward.1} parent=1 // pred_check_branch
      %193 = sbr.rel (0) target = $region57
    $region56: #{single_vbge_forward.1} parent=1 // pred_region
      _
    $region57: #{single_vbge_forward.1} parent=1 // pred_fallthru
      _
    // Predicated region
    $region58: #{single_vbge_forward.1} parent=1 // pred_check
      _
    $region59: #{single_vbge_forward.1} parent=1 // pred_check_branch
      %195 = sbr.rel (0) target = $region61
    $region60: #{single_vbge_forward.1} parent=1 // pred_region
      %s197 = ssub.s32 32, 32
      %198 = vsyncadd [#allocation15], %s197
      %s199 = sshll.u32 [#allocation16], 4
      %s200 = int_to_ptr.vmem [resolvable:$true] %s199
      %205 = dma.hbm_to_vmem [thread:$0]  %s29, 32, %s200, [#allocation15], 16, 16, 1
    $region61: #{single_vbge_forward.1} parent=1 // pred_fallthru
      _
    // Predicated region
    $region62: #{single_vbge_forward.1} parent=1 // pred_check
      _
    $region63: #{single_vbge_forward.1} parent=1 // pred_check_branch
      %207 = sbr.rel (0) target = $region65
    $region64: #{single_vbge_forward.1} parent=1 // pred_region
      _
    $region65: #{single_vbge_forward.1} parent=1 // pred_fallthru
      _
    // Predicated region
    $region66: #{single_vbge_forward.1} parent=1 // pred_check
      _
    $region67: #{single_vbge_forward.1} parent=1 // pred_check_branch
      %209 = sbr.rel (0) target = $region69
    $region68: #{single_vbge_forward.1} parent=1 // pred_region
      _
    $region69: #{single_vbge_forward.1} parent=1 // pred_fallthru
      _
    // Predicated region
    $region70: #{single_vbge_forward.1} parent=1 // pred_check
      _
    $region71: #{single_vbge_forward.1} parent=1 // pred_check_branch
      %211 = sbr.rel (0) target = $region73
    $region72: #{single_vbge_forward.1} parent=1 // pred_region
      %s213 = ssub.s32 32, 32
      %214 = vsyncadd [#allocation18], %s213
      %s215 = sshll.u32 [#allocation17], 4
      %s216 = int_to_ptr.vmem [resolvable:$true] %s215
      %221 = dma.hbm_to_vmem [thread:$0]  %s35, 32, %s216, [#allocation18], 16, 16, 1
    $region73: #{single_vbge_forward.1} parent=1 // pred_fallthru
      _
    // Predicated region
    $region74: #{single_vbge_forward.1} parent=1 // pred_check
      _
    $region75: #{single_vbge_forward.1} parent=1 // pred_check_branch
      %223 = sbr.rel (0) target = $region77
    $region76: #{single_vbge_forward.1} parent=1 // pred_region
      _
    $region77: #{single_vbge_forward.1} parent=1 // pred_fallthru
      _
    // Predicated region
    $region78: #{single_vbge_forward.1} parent=1 // pred_check
      _
    $region79: #{single_vbge_forward.1} parent=1 // pred_check_branch
      %225 = sbr.rel (0) target = $region81
    $region80: #{single_vbge_forward.1} parent=1 // pred_region
      _
    $region81: #{single_vbge_forward.1} parent=1 // pred_fallthru
      _
    // Predicated region
    $region82: #{single_vbge_forward.1} parent=1 // pred_check
      _
    $region83: #{single_vbge_forward.1} parent=1 // pred_check_branch
      %227 = sbr.rel (0) target = $region85
    $region84: #{single_vbge_forward.1} parent=1 // pred_region
      _
    $region85: #{single_vbge_forward.1} parent=1 // pred_fallthru
      _
    // Predicated region
    $region86: #{single_vbge_forward.1} parent=1 // pred_check
      _
    $region87: #{single_vbge_forward.1} parent=1 // pred_check_branch
      %229 = sbr.rel (0) target = $region89
    $region88: #{single_vbge_forward.1} parent=1 // pred_region
      %s231 = ssub.s32 16, 16
      %232 = vsyncadd [#allocation18], %s231
      %s234 = sshll.u32 [#allocation19], 4
      %s235 = int_to_ptr.vmem [resolvable:$true] %s234
      %237 = dma.hbm_to_vmem [thread:$0]  %s43, 16, %s235, [#allocation18]
    $region89: #{single_vbge_forward.1} parent=1 // pred_fallthru
      _
    // Predicated region
    $region90: #{single_vbge_forward.1} parent=1 // pred_check
      _
    $region91: #{single_vbge_forward.1} parent=1 // pred_check_branch
      %239 = sbr.rel (0) target = $region93
    $region92: #{single_vbge_forward.1} parent=1 // pred_region
      %s241 = ssub.s32 256, 256
      %242 = vsyncadd [#allocation21], %s241
      %s243 = sshll.u32 [#allocation20], 4
      %s244 = int_to_ptr.vmem [resolvable:$true] %s243
      %249 = dma.hbm_to_vmem [thread:$0]  %s45, 256, %s244, [#allocation21], 128, 128, 8
    $region93: #{single_vbge_forward.1} parent=1 // pred_fallthru
      _
    // Predicated region
    $region94: #{single_vbge_forward.1} parent=1 // pred_check
      _
    $region95: #{single_vbge_forward.1} parent=1 // pred_check_branch
      %251 = sbr.rel (0) target = $region97
    $region96: #{single_vbge_forward.1} parent=1 // pred_region
      %s253 = ssub.s32 16, 16
      %254 = vsyncadd [#allocation21], %s253
      %s256 = sshll.u32 [#allocation22], 4
      %s257 = int_to_ptr.vmem [resolvable:$true] %s256
      %259 = dma.hbm_to_vmem [thread:$0]  %s47, 16, %s257, [#allocation21]
    $region97: #{single_vbge_forward.1} parent=1 // pred_fallthru
      _
    // Predicated region
    $region98: #{single_vbge_forward.1} parent=1 // pred_check
      _
    $region99: #{single_vbge_forward.1} parent=1 // pred_check_branch
      %261 = sbr.rel (0) target = $region101
    $region100: #{single_vbge_forward.1} parent=1 // pred_region
      %s263 = ssub.s32 256, 256
      %264 = vsyncadd [#allocation24], %s263
      %s265 = sshll.u32 [#allocation23], 4
      %s266 = int_to_ptr.vmem [resolvable:$true] %s265
      %271 = dma.hbm_to_vmem [thread:$0]  %s49, 256, %s266, [#allocation24], 128, 128, 8
    $region101: #{single_vbge_forward.1} parent=1 // pred_fallthru
      _
    // Predicated region
    $region102: #{single_vbge_forward.1} parent=1 // pred_check
      _
    $region103: #{single_vbge_forward.1} parent=1 // pred_check_branch
      %273 = sbr.rel (0) target = $region105
    $region104: #{single_vbge_forward.1} parent=1 // pred_region
      %s275 = ssub.s32 16, 16
      %276 = vsyncadd [#allocation24], %s275
      %s278 = sshll.u32 [#allocation25], 4
      %s279 = int_to_ptr.vmem [resolvable:$true] %s278
      %281 = dma.hbm_to_vmem [thread:$0]  %s51, 16, %s279, [#allocation24]
    $region105: #{single_vbge_forward.1} parent=1 // pred_fallthru
      _
    // Predicated region
    $region106: #{single_vbge_forward.1} parent=1 // pred_check
      _
    $region107: #{single_vbge_forward.1} parent=1 // pred_check_branch
      %283 = sbr.rel (0) target = $region109
    $region108: #{single_vbge_forward.1} parent=1 // pred_region
      _
    $region109: #{single_vbge_forward.1} parent=1 // pred_fallthru
      _
    // Predicated region
    $region110: #{single_vbge_forward.1} parent=1 // pred_check
      _
    $region111: #{single_vbge_forward.1} parent=1 // pred_check_branch
      %285 = sbr.rel (0) target = $region113
    $region112: #{single_vbge_forward.1} parent=1 // pred_region
      %s287 = ssub.s32 512, 512
      %288 = vsyncadd [#allocation27], %s287
      %s289 = sshll.u32 [#allocation26], 4
      %s290 = int_to_ptr.vmem [resolvable:$true] %s289
      %295 = dma.hbm_to_vmem [thread:$0]  %s55, 512, %s290, [#allocation27], 128, 128, 8
    $region113: #{single_vbge_forward.1} parent=1 // pred_fallthru
      _
    // Predicated region
    $region114: #{single_vbge_forward.1} parent=1 // pred_check
      _
    $region115: #{single_vbge_forward.1} parent=1 // pred_check_branch
      %297 = sbr.rel (0) target = $region117
    $region116: #{single_vbge_forward.1} parent=1 // pred_region
      %s299 = ssub.s32 16, 16
      %300 = vsyncadd [#allocation27], %s299
      %s302 = sshll.u32 [#allocation28], 4
      %s303 = int_to_ptr.vmem [resolvable:$true] %s302
      %305 = dma.hbm_to_vmem [thread:$0]  %s57, 16, %s303, [#allocation27]
    $region117: #{single_vbge_forward.1} parent=1 // pred_fallthru
      _
    // Predicated region
    $region118: #{single_vbge_forward.1} parent=1 // pred_check
      _
    $region119: #{single_vbge_forward.1} parent=1 // pred_check_branch
      %307 = sbr.rel (0) target = $region121
    $region120: #{single_vbge_forward.1} parent=1 // pred_region
      %s309 = ssub.s32 512, 512
      %310 = vsyncadd [#allocation30], %s309
      %s311 = sshll.u32 [#allocation29], 4
      %s312 = int_to_ptr.vmem [resolvable:$true] %s311
      %317 = dma.hbm_to_vmem [thread:$0]  %s59, 512, %s312, [#allocation30], 128, 128, 8
    $region121: #{single_vbge_forward.1} parent=1 // pred_fallthru
      _
    // Predicated region
    $region122: #{single_vbge_forward.1} parent=1 // pred_check
      _
    $region123: #{single_vbge_forward.1} parent=1 // pred_check_branch
      %319 = sbr.rel (0) target = $region125
    $region124: #{single_vbge_forward.1} parent=1 // pred_region
      %s321 = ssub.s32 512, 512
      %322 = vsyncadd [#allocation30], %s321
      %s323 = sshll.u32 [#allocation31], 4
      %s324 = int_to_ptr.vmem [resolvable:$true] %s323
      %329 = dma.hbm_to_vmem [thread:$0]  %s61, 512, %s324, [#allocation30], 128, 128, 8
    $region125: #{single_vbge_forward.1} parent=1 // pred_fallthru
      _
    // Predicated region
    $region126: #{single_vbge_forward.1} parent=1 // pred_check
      _
    $region127: #{single_vbge_forward.1} parent=1 // pred_check_branch
      %331 = sbr.rel (0) target = $region129
    $region128: #{single_vbge_forward.1} parent=1 // pred_region
      %s333 = ssub.s32 16, 16
      %334 = vsyncadd [#allocation33], %s333
      %s336 = sshll.u32 [#allocation32], 4
      %s337 = int_to_ptr.vmem [resolvable:$true] %s336
      %339 = dma.hbm_to_vmem [thread:$0]  %s63, 16, %s337, [#allocation33]
    $region129: #{single_vbge_forward.1} parent=1 // pred_fallthru
      _
    // Predicated region
    $region130: #{single_vbge_forward.1} parent=1 // pred_check
      _
    $region131: #{single_vbge_forward.1} parent=1 // pred_check_branch
      %341 = sbr.rel (0) target = $region133
    $region132: #{single_vbge_forward.1} parent=1 // pred_region
      %342 = dma.done [#allocation3], 256
    $region133: #{single_vbge_forward.1} parent=1 // pred_fallthru
      _
    // Predicated region
    $region134: #{single_vbge_forward.1} parent=1 // pred_check
      _
    $region135: #{single_vbge_forward.1} parent=1 // pred_check_branch
      %344 = sbr.rel (0) target = $region137
    $region136: #{single_vbge_forward.1} parent=1 // pred_region
      %345 = dma.done [#allocation6], 256
    $region137: #{single_vbge_forward.1} parent=1 // pred_fallthru
      _
    // Predicated region
    $region138: #{single_vbge_forward.1} parent=1 // pred_check
      _
    $region139: #{single_vbge_forward.1} parent=1 // pred_check_branch
      %347 = sbr.rel (0) target = $region141
    $region140: #{single_vbge_forward.1} parent=1 // pred_region
      %348 = dma.done [#allocation6], 32
    $region141: #{single_vbge_forward.1} parent=1 // pred_fallthru
      _
    // Predicated region
    $region142: #{single_vbge_forward.1} parent=1 // pred_check
      _
    $region143: #{single_vbge_forward.1} parent=1 // pred_check_branch
      %350 = sbr.rel (0) target = $region145
    $region144: #{single_vbge_forward.1} parent=1 // pred_region
      %351 = dma.done [#allocation9], 32
    $region145: #{single_vbge_forward.1} parent=1 // pred_fallthru
      _
    // Predicated region
    $region146: #{single_vbge_forward.1} parent=1 // pred_check
      _
    $region147: #{single_vbge_forward.1} parent=1 // pred_check_branch
      %353 = sbr.rel (0) target = $region149
    $region148: #{single_vbge_forward.1} parent=1 // pred_region
      %354 = dma.done [#allocation9], 512
    $region149: #{single_vbge_forward.1} parent=1 // pred_fallthru
      _
    // Predicated region
    $region150: #{single_vbge_forward.1} parent=1 // pred_check
      _
    $region151: #{single_vbge_forward.1} parent=1 // pred_check_branch
      %356 = sbr.rel (0) target = $region153
    $region152: #{single_vbge_forward.1} parent=1 // pred_region
      %357 = dma.done [#allocation12], 32
    $region153: #{single_vbge_forward.1} parent=1 // pred_fallthru
      _
    // Predicated region
    $region154: #{single_vbge_forward.1} parent=1 // pred_check
      _
    $region155: #{single_vbge_forward.1} parent=1 // pred_check_branch
      %359 = sbr.rel (0) target = $region157
    $region156: #{single_vbge_forward.1} parent=1 // pred_region
      %360 = dma.done [#allocation12], 512
    $region157: #{single_vbge_forward.1} parent=1 // pred_fallthru
      _
    // Predicated region
    $region158: #{single_vbge_forward.1} parent=1 // pred_check
      _
    $region159: #{single_vbge_forward.1} parent=1 // pred_check_branch
      %362 = sbr.rel (0) target = $region161
    $region160: #{single_vbge_forward.1} parent=1 // pred_region
      %363 = dma.done [#allocation15], 32
    $region161: #{single_vbge_forward.1} parent=1 // pred_fallthru
      _
    // Predicated region
    $region162: #{single_vbge_forward.1} parent=1 // pred_check
      _
    $region163: #{single_vbge_forward.1} parent=1 // pred_check_branch
      %365 = sbr.rel (0) target = $region165
    $region164: #{single_vbge_forward.1} parent=1 // pred_region
      %366 = dma.done [#allocation15], 32
    $region165: #{single_vbge_forward.1} parent=1 // pred_fallthru
      _
    // Predicated region
    $region166: #{single_vbge_forward.1} parent=1 // pred_check
      _
    $region167: #{single_vbge_forward.1} parent=1 // pred_check_branch
      %368 = sbr.rel (0) target = $region169
    $region168: #{single_vbge_forward.1} parent=1 // pred_region
      %369 = dma.done [#allocation18], 32
    $region169: #{single_vbge_forward.1} parent=1 // pred_fallthru
      _
    // Predicated region
    $region170: #{single_vbge_forward.1} parent=1 // pred_check
      _
    $region171: #{single_vbge_forward.1} parent=1 // pred_check_branch
      %371 = sbr.rel (0) target = $region173
    $region172: #{single_vbge_forward.1} parent=1 // pred_region
      %372 = dma.done [#allocation18], 16
    $region173: #{single_vbge_forward.1} parent=1 // pred_fallthru
      _
    // Predicated region
    $region174: #{single_vbge_forward.1} parent=1 // pred_check
      _
    $region175: #{single_vbge_forward.1} parent=1 // pred_check_branch
      %374 = sbr.rel (0) target = $region177
    $region176: #{single_vbge_forward.1} parent=1 // pred_region
      %375 = dma.done [#allocation21], 256
    $region177: #{single_vbge_forward.1} parent=1 // pred_fallthru
      _
    // Predicated region
    $region178: #{single_vbge_forward.1} parent=1 // pred_check
      _
    $region179: #{single_vbge_forward.1} parent=1 // pred_check_branch
      %377 = sbr.rel (0) target = $region181
    $region180: #{single_vbge_forward.1} parent=1 // pred_region
      %378 = dma.done [#allocation21], 16
    $region181: #{single_vbge_forward.1} parent=1 // pred_fallthru
      _
    // Predicated region
    $region182: #{single_vbge_forward.1} parent=1 // pred_check
      _
    $region183: #{single_vbge_forward.1} parent=1 // pred_check_branch
      %380 = sbr.rel (0) target = $region185
    $region184: #{single_vbge_forward.1} parent=1 // pred_region
      %381 = dma.done [#allocation24], 256
    $region185: #{single_vbge_forward.1} parent=1 // pred_fallthru
      _
    // Predicated region
    $region186: #{single_vbge_forward.1} parent=1 // pred_check
      _
    $region187: #{single_vbge_forward.1} parent=1 // pred_check_branch
      %383 = sbr.rel (0) target = $region189
    $region188: #{single_vbge_forward.1} parent=1 // pred_region
      %384 = dma.done [#allocation24], 16
    $region189: #{single_vbge_forward.1} parent=1 // pred_fallthru
      _
    // Predicated region
    $region190: #{single_vbge_forward.1} parent=1 // pred_check
      _
    $region191: #{single_vbge_forward.1} parent=1 // pred_check_branch
      %386 = sbr.rel (0) target = $region193
    $region192: #{single_vbge_forward.1} parent=1 // pred_region
      %387 = dma.done [#allocation27], 512
    $region193: #{single_vbge_forward.1} parent=1 // pred_fallthru
      _
    // Predicated region
    $region194: #{single_vbge_forward.1} parent=1 // pred_check
      _
    $region195: #{single_vbge_forward.1} parent=1 // pred_check_branch
      %389 = sbr.rel (0) target = $region197
    $region196: #{single_vbge_forward.1} parent=1 // pred_region
      %390 = dma.done [#allocation27], 16
    $region197: #{single_vbge_forward.1} parent=1 // pred_fallthru
      _
    // Predicated region
    $region198: #{single_vbge_forward.1} parent=1 // pred_check
      _
    $region199: #{single_vbge_forward.1} parent=1 // pred_check_branch
      %392 = sbr.rel (0) target = $region201
    $region200: #{single_vbge_forward.1} parent=1 // pred_region
      %393 = dma.done [#allocation30], 512
    $region201: #{single_vbge_forward.1} parent=1 // pred_fallthru
      _
    // Predicated region
    $region202: #{single_vbge_forward.1} parent=1 // pred_check
      _
    $region203: #{single_vbge_forward.1} parent=1 // pred_check_branch
      %395 = sbr.rel (0) target = $region205
    $region204: #{single_vbge_forward.1} parent=1 // pred_region
      %396 = dma.done [#allocation30], 512
    $region205: #{single_vbge_forward.1} parent=1 // pred_fallthru
      _
    // Predicated region
    $region206: #{single_vbge_forward.1} parent=1 // pred_check
      _
    $region207: #{single_vbge_forward.1} parent=1 // pred_check_branch
      %398 = sbr.rel (0) target = $region209
    $region208: #{single_vbge_forward.1} parent=1 // pred_region
      %399 = dma.done [#allocation33], 16
    $region209: #{single_vbge_forward.1} parent=1 // pred_fallthru
      _
    %v400 = vld [vmem:[#allocation5] sm:$0xff]
    %v401 = vld [vmem:[#allocation5 + $0x8] sm:$0xff]
    %v402 = vld [vmem:[%s7] sm:$0xff]
    %v403 = vld [vmem:[%s7 + $0x8] sm:$0xff]
    %v404 = vld [vmem:[%s7 + $0x10] sm:$0xff]
    %v405 = vld [vmem:[#allocation2] sm:$0xff]
    %v406 = vld [vmem:[#allocation2 + $0x8] sm:$0xff]
    %v407 = vld [vmem:[%s3] sm:$0xff]
    %v408 = vld [vmem:[%s3 + $0x8] sm:$0xff]
    %v409 = vld [vmem:[%s3 + $0x10] sm:$0xff]
    loop: start=0, step=1, limit=2
    $region210: #{single_vbge_forward.1} parent=1 // loop_pre_header
      _
    $region211: #{single_vbge_forward.1} parent=1 // loop_header
      %s411 = sphi 0, %s415
      %p412 = scmp.ge.s32.totalorder %s411, 2
      %v416 = vphi %v405, %v1345
      %v417 = vphi %v406, %v1346
      %v418 = vphi %v407, %v1537
      %v419 = vphi %v408, %v1538
      %v420 = vphi %v409, %v1539
    $region212: #{single_vbge_forward.1} parent=1 // loop_header_branch
      %414 = sbr.rel (%p412) target = $region216
    $region213: #{single_vbge_forward.1} parent=1 // loop_body
      %s421 = smul.u32 %s411, 32
      %s422 = scalar_lea.vmem %s9, %s421
      %v423 = vld [vmem:[%s422] sm:$0xff]
      %v424 = vld [vmem:[%s422 + $0x8] sm:$0xff]
      %v425 = vld [vmem:[%s422 + $0x10] sm:$0xff]
      %v426 = vld [vmem:[%s422 + $0x18] sm:$0xff]
      %vm427 = vcmask 261120
      %v429 = vsel %vm427, %v416, 0
      %v432 = vsel %vm427, %v417, 0
      %434 = vmatprep.subr.mxu0 0.0
      %435 = vmatpush1.msra.mxu0 0.0
      %436 = vmatprep.subr.mxu0 0.0
      %437 = vmatpush1.msra.mxu0 0.0
      %438 = vmatprep.subr.mxu0 0.0
      %439 = vmatpush1.msra.mxu0 0.0
      %440 = vmatprep.subr.mxu0 0.0
      %441 = vmatpush1.msra.mxu0 0.0
      %442 = vmatprep.subr.mxu0 0.0
      %443 = vmatpush1.msra.mxu0 0.0
      %444 = vmatprep.subr.mxu0 0.0
      %445 = vmatpush1.msra.mxu0 0.0
      %446 = vmatprep.subr.mxu0 0.0
      %447 = vmatpush1.msra.mxu0 0.0
      %448 = vmatprep.subr.mxu0 0.0
      %449 = vmatpush1.msra.mxu0 0.0
      %450 = vmatprep.subr.mxu0 0.0
      %451 = vmatpush1.msra.mxu0 0.0
      %452 = vmatprep.subr.mxu0 0.0
      %453 = vmatpush1.msra.mxu0 0.0
      %454 = vmatprep.subr.mxu0 0.0
      %455 = vmatpush1.msra.mxu0 0.0
      %456 = vmatprep.subr.mxu0 0.0
      %457 = vmatpush1.msra.mxu0 0.0
      %458 = vmatprep.subr.mxu0 0.0
      %459 = vmatpush1.msra.mxu0 %v426
      %460 = vmatprep.subr.mxu0 0.0
      %461 = vmatpush1.msra.mxu0 %v425
      %462 = vmatprep.subr.mxu0 0.0
      %463 = vmatpush1.msra.mxu0 %v424
      %464 = vmatprep.subr.mxu0 0.0
      %465 = vmatpush1.msra.mxu0 %v423
      %466 = vmatprep.subr.mxu0 0.0
      %467 = vmatpush2.msra.mxu0 0.0
      %468 = vmatprep.subr.mxu0 0.0
      %469 = vmatpush2.msra.mxu0 0.0
      %470 = vmatprep.subr.mxu0 0.0
      %471 = vmatpush2.msra.mxu0 0.0
      %472 = vmatprep.subr.mxu0 0.0
      %473 = vmatpush2.msra.mxu0 0.0
      %474 = vmatprep.subr.mxu0 0.0
      %475 = vmatpush2.msra.mxu0 0.0
      %476 = vmatprep.subr.mxu0 0.0
      %477 = vmatpush2.msra.mxu0 0.0
      %478 = vmatprep.subr.mxu0 0.0
      %479 = vmatpush2.msra.mxu0 0.0
      %480 = vmatprep.subr.mxu0 0.0
      %481 = vmatpush2.msra.mxu0 0.0
      %482 = vmatprep.subr.mxu0 0.0
      %483 = vmatpush2.msra.mxu0 0.0
      %484 = vmatprep.subr.mxu0 0.0
      %485 = vmatpush2.msra.mxu0 0.0
      %486 = vmatprep.subr.mxu0 0.0
      %487 = vmatpush2.msra.mxu0 0.0
      %488 = vmatprep.subr.mxu0 0.0
      %489 = vmatpush2.msra.mxu0 0.0
      %490 = vmatprep.subr.mxu0 0.0
      %491 = vmatpush2.msra.mxu0 0.0
      %492 = vmatprep.subr.mxu0 0.0
      %493 = vmatpush2.msra.mxu0 0.0
      %494 = vmatprep.subr.mxu0 0.0
      %495 = vmatpush2.msra.mxu0 0.0
      %496 = vmatprep.subr.mxu0 0.0
      %497 = vmatpush2.msra.mxu0 0.0
      %498 = vmatprep.mubr.f32.mxu0 0.0
      %499 = vmatmul.mubr.f32.gmra.mxu0 %v429
      %v500 = vpop.f32.mrf.mxu0
      %v501 = vadd.f32 0.0, %v500
      %v502 = vpop.f32.mrf.mxu0
      %503 = vmatprep.mubr.f32.mxu0 0.0
      %504 = vmatmul.mubr.f32.gmra.mxu0 %v432
      %v505 = vpop.f32.mrf.mxu0
      %v506 = vadd.f32 0.0, %v505
      %v507 = vpop.f32.mrf.mxu0
      %508 = vdwg.mxu0
      %s509 = scalar_lea.vmem [#allocation7], %s411
      %v510 = vld [vmem:[%s509] sm:$0x1]
      %v512 = vlaneseq
      %v513 = vshrl.u32 %v512, 7
      %v514 = vsub.s32 0, %v513
      %v515 = vrot.slane %v510, %v514
      %vm517 = vcmask 130048
      %v519 = vsel %vm517, %v402, 0
      %v522 = vsel %vm517, %v403, 0
      %v525 = vsel %vm517, %v404, 0
      %527 = vmatprep.subr.mxu0 0.0
      %528 = vmatpush1.msra.mxu0 0.0
      %529 = vmatprep.subr.mxu0 0.0
      %530 = vmatpush1.msra.mxu0 0.0
      %531 = vmatprep.subr.mxu0 0.0
      %532 = vmatpush1.msra.mxu0 0.0
      %533 = vmatprep.subr.mxu0 0.0
      %534 = vmatpush1.msra.mxu0 0.0
      %535 = vmatprep.subr.mxu0 0.0
      %536 = vmatpush1.msra.mxu0 0.0
      %537 = vmatprep.subr.mxu0 0.0
      %538 = vmatpush1.msra.mxu0 0.0
      %539 = vmatprep.subr.mxu0 0.0
      %540 = vmatpush1.msra.mxu0 0.0
      %541 = vmatprep.subr.mxu0 0.0
      %542 = vmatpush1.msra.mxu0 0.0
      %543 = vmatprep.subr.mxu0 0.0
      %544 = vmatpush1.msra.mxu0 0.0
      %545 = vmatprep.subr.mxu0 0.0
      %546 = vmatpush1.msra.mxu0 0.0
      %547 = vmatprep.subr.mxu0 0.0
      %548 = vmatpush1.msra.mxu0 0.0
      %549 = vmatprep.subr.mxu0 0.0
      %550 = vmatpush1.msra.mxu0 0.0
      %551 = vmatprep.subr.mxu0 0.0
      %552 = vmatpush1.msra.mxu0 0.0
      %553 = vmatprep.subr.mxu0 0.0
      %554 = vmatpush1.msra.mxu0 0.0
      %555 = vmatprep.subr.mxu0 0.0
      %556 = vmatpush1.msra.mxu0 %v506
      %557 = vmatprep.subr.mxu0 0.0
      %558 = vmatpush1.msra.mxu0 %v501
      %559 = vmatprep.subr.mxu0 0.0
      %560 = vmatpush2.msra.mxu0 0.0
      %561 = vmatprep.subr.mxu0 0.0
      %562 = vmatpush2.msra.mxu0 0.0
      %563 = vmatprep.subr.mxu0 0.0
      %564 = vmatpush2.msra.mxu0 0.0
      %565 = vmatprep.subr.mxu0 0.0
      %566 = vmatpush2.msra.mxu0 0.0
      %567 = vmatprep.subr.mxu0 0.0
      %568 = vmatpush2.msra.mxu0 0.0
      %569 = vmatprep.subr.mxu0 0.0
      %570 = vmatpush2.msra.mxu0 0.0
      %571 = vmatprep.subr.mxu0 0.0
      %572 = vmatpush2.msra.mxu0 0.0
      %573 = vmatprep.subr.mxu0 0.0
      %574 = vmatpush2.msra.mxu0 0.0
      %575 = vmatprep.subr.mxu0 0.0
      %576 = vmatpush2.msra.mxu0 0.0
      %577 = vmatprep.subr.mxu0 0.0
      %578 = vmatpush2.msra.mxu0 0.0
      %579 = vmatprep.subr.mxu0 0.0
      %580 = vmatpush2.msra.mxu0 0.0
      %581 = vmatprep.subr.mxu0 0.0
      %582 = vmatpush2.msra.mxu0 0.0
      %583 = vmatprep.subr.mxu0 0.0
      %584 = vmatpush2.msra.mxu0 0.0
      %585 = vmatprep.subr.mxu0 0.0
      %586 = vmatpush2.msra.mxu0 0.0
      %587 = vmatprep.subr.mxu0 0.0
      %588 = vmatpush2.msra.mxu0 0.0
      %589 = vmatprep.subr.mxu0 0.0
      %590 = vmatpush2.msra.mxu0 0.0
      %591 = vmatprep.mubr.f32.mxu0 0.0
      %592 = vmatmul.mubr.f32.gmra.mxu0 %v519
      %v593 = vpop.f32.mrf.mxu0
      %v594 = vadd.f32 %v515, %v593
      %v595 = vpop.f32.mrf.mxu0
      %596 = vmatprep.mubr.f32.mxu0 0.0
      %597 = vmatmul.mubr.f32.gmra.mxu0 %v522
      %v598 = vpop.f32.mrf.mxu0
      %v599 = vadd.f32 %v515, %v598
      %v600 = vpop.f32.mrf.mxu0
      %601 = vmatprep.mubr.f32.mxu0 0.0
      %602 = vmatmul.mubr.f32.gmra.mxu0 %v525
      %v603 = vpop.f32.mrf.mxu0
      %v604 = vadd.f32 %v515, %v603
      %v605 = vpop.f32.mrf.mxu0
      %606 = vdwg.mxu0
      %vm607 = vcmp.gt.f32.partialorder %v594, 0.0
      %vm608 = vcmp.gt.f32.partialorder %v599, 0.0
      %vm609 = vcmp.gt.f32.partialorder %v604, 0.0
      %v610 = vmul.f32 %v594, 0.1
      %v611 = vmul.f32 %v599, 0.1
      %v612 = vmul.f32 %v604, 0.1
      %v613 = vsel %vm607, %v594, %v610
      %v614 = vsel %vm608, %v599, %v611
      %v615 = vsel %vm609, %v604, %v612
      %s616 = scalar_lea.vmem %s13, %s421
      %v617 = vld [vmem:[%s616] sm:$0xff]
      %v618 = vld [vmem:[%s616 + $0x8] sm:$0xff]
      %v619 = vld [vmem:[%s616 + $0x10] sm:$0xff]
      %v620 = vld [vmem:[%s616 + $0x18] sm:$0xff]
      %v622 = vsel %vm427, %v418, 0
      %v625 = vsel %vm427, %v419, 0
      %v628 = vsel %vm427, %v420, 0
      %630 = vmatprep.subr.mxu0 0.0
      %631 = vmatpush1.msra.mxu0 0.0
      %632 = vmatprep.subr.mxu0 0.0
      %633 = vmatpush1.msra.mxu0 0.0
      %634 = vmatprep.subr.mxu0 0.0
      %635 = vmatpush1.msra.mxu0 0.0
      %636 = vmatprep.subr.mxu0 0.0
      %637 = vmatpush1.msra.mxu0 0.0
      %638 = vmatprep.subr.mxu0 0.0
      %639 = vmatpush1.msra.mxu0 0.0
      %640 = vmatprep.subr.mxu0 0.0
      %641 = vmatpush1.msra.mxu0 0.0
      %642 = vmatprep.subr.mxu0 0.0
      %643 = vmatpush1.msra.mxu0 0.0
      %644 = vmatprep.subr.mxu0 0.0
      %645 = vmatpush1.msra.mxu0 0.0
      %646 = vmatprep.subr.mxu0 0.0
      %647 = vmatpush1.msra.mxu0 0.0
      %648 = vmatprep.subr.mxu0 0.0
      %649 = vmatpush1.msra.mxu0 0.0
      %650 = vmatprep.subr.mxu0 0.0
      %651 = vmatpush1.msra.mxu0 0.0
      %652 = vmatprep.subr.mxu0 0.0
      %653 = vmatpush1.msra.mxu0 0.0
      %654 = vmatprep.subr.mxu0 0.0
      %655 = vmatpush1.msra.mxu0 %v620
      %656 = vmatprep.subr.mxu0 0.0
      %657 = vmatpush1.msra.mxu0 %v619
      %658 = vmatprep.subr.mxu0 0.0
      %659 = vmatpush1.msra.mxu0 %v618
      %660 = vmatprep.subr.mxu0 0.0
      %661 = vmatpush1.msra.mxu0 %v617
      %662 = vmatprep.subr.mxu0 0.0
      %663 = vmatpush2.msra.mxu0 0.0
      %664 = vmatprep.subr.mxu0 0.0
      %665 = vmatpush2.msra.mxu0 0.0
      %666 = vmatprep.subr.mxu0 0.0
      %667 = vmatpush2.msra.mxu0 0.0
      %668 = vmatprep.subr.mxu0 0.0
      %669 = vmatpush2.msra.mxu0 0.0
      %670 = vmatprep.subr.mxu0 0.0
      %671 = vmatpush2.msra.mxu0 0.0
      %672 = vmatprep.subr.mxu0 0.0
      %673 = vmatpush2.msra.mxu0 0.0
      %674 = vmatprep.subr.mxu0 0.0
      %675 = vmatpush2.msra.mxu0 0.0
      %676 = vmatprep.subr.mxu0 0.0
      %677 = vmatpush2.msra.mxu0 0.0
      %678 = vmatprep.subr.mxu0 0.0
      %679 = vmatpush2.msra.mxu0 0.0
      %680 = vmatprep.subr.mxu0 0.0
      %681 = vmatpush2.msra.mxu0 0.0
      %682 = vmatprep.subr.mxu0 0.0
      %683 = vmatpush2.msra.mxu0 0.0
      %684 = vmatprep.subr.mxu0 0.0
      %685 = vmatpush2.msra.mxu0 0.0
      %686 = vmatprep.subr.mxu0 0.0
      %687 = vmatpush2.msra.mxu0 0.0
      %688 = vmatprep.subr.mxu0 0.0
      %689 = vmatpush2.msra.mxu0 0.0
      %690 = vmatprep.subr.mxu0 0.0
      %691 = vmatpush2.msra.mxu0 0.0
      %692 = vmatprep.subr.mxu0 0.0
      %693 = vmatpush2.msra.mxu0 0.0
      %694 = vmatprep.mubr.f32.mxu0 0.0
      %695 = vmatmul.mubr.f32.gmra.mxu0 %v622
      %v696 = vpop.f32.mrf.mxu0
      %v697 = vadd.f32 0.0, %v696
      %v698 = vpop.f32.mrf.mxu0
      %699 = vmatprep.mubr.f32.mxu0 0.0
      %700 = vmatmul.mubr.f32.gmra.mxu0 %v625
      %v701 = vpop.f32.mrf.mxu0
      %v702 = vadd.f32 0.0, %v701
      %v703 = vpop.f32.mrf.mxu0
      %704 = vmatprep.mubr.f32.mxu0 0.0
      %705 = vmatmul.mubr.f32.gmra.mxu0 %v628
      %v706 = vpop.f32.mrf.mxu0
      %v707 = vadd.f32 0.0, %v706
      %v708 = vpop.f32.mrf.mxu0
      %709 = vdwg.mxu0
      %s710 = scalar_lea.vmem [#allocation8], %s411
      %v711 = vld [vmem:[%s710] sm:$0x1]
      %v713 = vlaneseq
      %v714 = vshrl.u32 %v713, 7
      %v715 = vsub.s32 0, %v714
      %v716 = vrot.slane %v711, %v715
      %vm718 = vcmask 195584
      %v720 = vsel %vm718, %v400, 0
      %v723 = vsel %vm718, %v401, 0
      %725 = vmatprep.subr.mxu0 0.0
      %726 = vmatpush1.msra.mxu0 0.0
      %727 = vmatprep.subr.mxu0 0.0
      %728 = vmatpush1.msra.mxu0 0.0
      %729 = vmatprep.subr.mxu0 0.0
      %730 = vmatpush1.msra.mxu0 0.0
      %731 = vmatprep.subr.mxu0 0.0
      %732 = vmatpush1.msra.mxu0 0.0
      %733 = vmatprep.subr.mxu0 0.0
      %734 = vmatpush1.msra.mxu0 0.0
      %735 = vmatprep.subr.mxu0 0.0
      %736 = vmatpush1.msra.mxu0 0.0
      %737 = vmatprep.subr.mxu0 0.0
      %738 = vmatpush1.msra.mxu0 0.0
      %739 = vmatprep.subr.mxu0 0.0
      %740 = vmatpush1.msra.mxu0 0.0
      %741 = vmatprep.subr.mxu0 0.0
      %742 = vmatpush1.msra.mxu0 0.0
      %743 = vmatprep.subr.mxu0 0.0
      %744 = vmatpush1.msra.mxu0 0.0
      %745 = vmatprep.subr.mxu0 0.0
      %746 = vmatpush1.msra.mxu0 0.0
      %747 = vmatprep.subr.mxu0 0.0
      %748 = vmatpush1.msra.mxu0 0.0
      %749 = vmatprep.subr.mxu0 0.0
      %750 = vmatpush1.msra.mxu0 0.0
      %751 = vmatprep.subr.mxu0 0.0
      %752 = vmatpush1.msra.mxu0 %v707
      %753 = vmatprep.subr.mxu0 0.0
      %754 = vmatpush1.msra.mxu0 %v702
      %755 = vmatprep.subr.mxu0 0.0
      %756 = vmatpush1.msra.mxu0 %v697
      %757 = vmatprep.subr.mxu0 0.0
      %758 = vmatpush2.msra.mxu0 0.0
      %759 = vmatprep.subr.mxu0 0.0
      %760 = vmatpush2.msra.mxu0 0.0
      %761 = vmatprep.subr.mxu0 0.0
      %762 = vmatpush2.msra.mxu0 0.0
      %763 = vmatprep.subr.mxu0 0.0
      %764 = vmatpush2.msra.mxu0 0.0
      %765 = vmatprep.subr.mxu0 0.0
      %766 = vmatpush2.msra.mxu0 0.0
      %767 = vmatprep.subr.mxu0 0.0
      %768 = vmatpush2.msra.mxu0 0.0
      %769 = vmatprep.subr.mxu0 0.0
      %770 = vmatpush2.msra.mxu0 0.0
      %771 = vmatprep.subr.mxu0 0.0
      %772 = vmatpush2.msra.mxu0 0.0
      %773 = vmatprep.subr.mxu0 0.0
      %774 = vmatpush2.msra.mxu0 0.0
      %775 = vmatprep.subr.mxu0 0.0
      %776 = vmatpush2.msra.mxu0 0.0
      %777 = vmatprep.subr.mxu0 0.0
      %778 = vmatpush2.msra.mxu0 0.0
      %779 = vmatprep.subr.mxu0 0.0
      %780 = vmatpush2.msra.mxu0 0.0
      %781 = vmatprep.subr.mxu0 0.0
      %782 = vmatpush2.msra.mxu0 0.0
      %783 = vmatprep.subr.mxu0 0.0
      %784 = vmatpush2.msra.mxu0 0.0
      %785 = vmatprep.subr.mxu0 0.0
      %786 = vmatpush2.msra.mxu0 0.0
      %787 = vmatprep.subr.mxu0 0.0
      %788 = vmatpush2.msra.mxu0 0.0
      %789 = vmatprep.mubr.f32.mxu0 0.0
      %790 = vmatmul.mubr.f32.gmra.mxu0 %v720
      %v791 = vpop.f32.mrf.mxu0
      %v792 = vadd.f32 %v716, %v791
      %v793 = vpop.f32.mrf.mxu0
      %794 = vmatprep.mubr.f32.mxu0 0.0
      %795 = vmatmul.mubr.f32.gmra.mxu0 %v723
      %v796 = vpop.f32.mrf.mxu0
      %v797 = vadd.f32 %v716, %v796
      %v798 = vpop.f32.mrf.mxu0
      %799 = vdwg.mxu0
      %vm800 = vcmp.gt.f32.partialorder %v792, 0.0
      %vm801 = vcmp.gt.f32.partialorder %v797, 0.0
      %v802 = vmul.f32 %v792, 0.1
      %v803 = vmul.f32 %v797, 0.1
      %v804 = vsel %vm800, %v792, %v802
      %v805 = vsel %vm801, %v797, %v803
      %s806 = smul.u32 %s411, 16
      %s807 = scalar_lea.vmem [#allocation10], %s806
      %v808 = vld [vmem:[%s807] sm:$0xff]
      %v809 = vld [vmem:[%s807 + $0x8] sm:$0xff]
      %v811 = vsel %vm517, %v613, 0
      %v814 = vsel %vm517, %v614, 0
      %v817 = vsel %vm517, %v615, 0
      %819 = vmatprep.subr.mxu0 0.0
      %820 = vmatpush1.msra.mxu0 0.0
      %821 = vmatprep.subr.mxu0 0.0
      %822 = vmatpush1.msra.mxu0 0.0
      %823 = vmatprep.subr.mxu0 0.0
      %824 = vmatpush1.msra.mxu0 0.0
      %825 = vmatprep.subr.mxu0 0.0
      %826 = vmatpush1.msra.mxu0 0.0
      %827 = vmatprep.subr.mxu0 0.0
      %828 = vmatpush1.msra.mxu0 0.0
      %829 = vmatprep.subr.mxu0 0.0
      %830 = vmatpush1.msra.mxu0 0.0
      %831 = vmatprep.subr.mxu0 0.0
      %832 = vmatpush1.msra.mxu0 0.0
      %833 = vmatprep.subr.mxu0 0.0
      %834 = vmatpush1.msra.mxu0 0.0
      %835 = vmatprep.subr.mxu0 0.0
      %836 = vmatpush1.msra.mxu0 0.0
      %837 = vmatprep.subr.mxu0 0.0
      %838 = vmatpush1.msra.mxu0 0.0
      %839 = vmatprep.subr.mxu0 0.0
      %840 = vmatpush1.msra.mxu0 0.0
      %841 = vmatprep.subr.mxu0 0.0
      %842 = vmatpush1.msra.mxu0 0.0
      %843 = vmatprep.subr.mxu0 0.0
      %844 = vmatpush1.msra.mxu0 0.0
      %845 = vmatprep.subr.mxu0 0.0
      %846 = vmatpush1.msra.mxu0 0.0
      %847 = vmatprep.subr.mxu0 0.0
      %848 = vmatpush1.msra.mxu0 %v809
      %849 = vmatprep.subr.mxu0 0.0
      %850 = vmatpush1.msra.mxu0 %v808
      %851 = vmatprep.subr.mxu0 0.0
      %852 = vmatpush2.msra.mxu0 0.0
      %853 = vmatprep.subr.mxu0 0.0
      %854 = vmatpush2.msra.mxu0 0.0
      %855 = vmatprep.subr.mxu0 0.0
      %856 = vmatpush2.msra.mxu0 0.0
      %857 = vmatprep.subr.mxu0 0.0
      %858 = vmatpush2.msra.mxu0 0.0
      %859 = vmatprep.subr.mxu0 0.0
      %860 = vmatpush2.msra.mxu0 0.0
      %861 = vmatprep.subr.mxu0 0.0
      %862 = vmatpush2.msra.mxu0 0.0
      %863 = vmatprep.subr.mxu0 0.0
      %864 = vmatpush2.msra.mxu0 0.0
      %865 = vmatprep.subr.mxu0 0.0
      %866 = vmatpush2.msra.mxu0 0.0
      %867 = vmatprep.subr.mxu0 0.0
      %868 = vmatpush2.msra.mxu0 0.0
      %869 = vmatprep.subr.mxu0 0.0
      %870 = vmatpush2.msra.mxu0 0.0
      %871 = vmatprep.subr.mxu0 0.0
      %872 = vmatpush2.msra.mxu0 0.0
      %873 = vmatprep.subr.mxu0 0.0
      %874 = vmatpush2.msra.mxu0 0.0
      %875 = vmatprep.subr.mxu0 0.0
      %876 = vmatpush2.msra.mxu0 0.0
      %877 = vmatprep.subr.mxu0 0.0
      %878 = vmatpush2.msra.mxu0 0.0
      %879 = vmatprep.subr.mxu0 0.0
      %880 = vmatpush2.msra.mxu0 0.0
      %881 = vmatprep.subr.mxu0 0.0
      %882 = vmatpush2.msra.mxu0 0.0
      %883 = vmatprep.mubr.f32.mxu0 0.0
      %884 = vmatmul.mubr.f32.gmra.mxu0 %v811
      %v885 = vpop.f32.mrf.mxu0
      %v886 = vadd.f32 0.0, %v885
      %v887 = vpop.f32.mrf.mxu0
      %888 = vmatprep.mubr.f32.mxu0 0.0
      %889 = vmatmul.mubr.f32.gmra.mxu0 %v814
      %v890 = vpop.f32.mrf.mxu0
      %v891 = vadd.f32 0.0, %v890
      %v892 = vpop.f32.mrf.mxu0
      %893 = vmatprep.mubr.f32.mxu0 0.0
      %894 = vmatmul.mubr.f32.gmra.mxu0 %v817
      %v895 = vpop.f32.mrf.mxu0
      %v896 = vadd.f32 0.0, %v895
      %v897 = vpop.f32.mrf.mxu0
      %898 = vdwg.mxu0
      %s899 = scalar_lea.vmem [#allocation11], %s411
      %v900 = vld [vmem:[%s899] sm:$0x1]
      %v902 = vlaneseq
      %v903 = vshrl.u32 %v902, 7
      %v904 = vsub.s32 0, %v903
      %v905 = vrot.slane %v900, %v904
      %907 = vmatprep.subr.mxu0 0.0
      %908 = vmatpush1.msra.mxu0 0.0
      %909 = vmatprep.subr.mxu0 0.0
      %910 = vmatpush1.msra.mxu0 0.0
      %911 = vmatprep.subr.mxu0 0.0
      %912 = vmatpush1.msra.mxu0 0.0
      %913 = vmatprep.subr.mxu0 0.0
      %914 = vmatpush1.msra.mxu0 0.0
      %915 = vmatprep.subr.mxu0 0.0
      %916 = vmatpush1.msra.mxu0 0.0
      %917 = vmatprep.subr.mxu0 0.0
      %918 = vmatpush1.msra.mxu0 0.0
      %919 = vmatprep.subr.mxu0 0.0
      %920 = vmatpush1.msra.mxu0 0.0
      %921 = vmatprep.subr.mxu0 0.0
      %922 = vmatpush1.msra.mxu0 0.0
      %923 = vmatprep.subr.mxu0 0.0
      %924 = vmatpush1.msra.mxu0 0.0
      %925 = vmatprep.subr.mxu0 0.0
      %926 = vmatpush1.msra.mxu0 0.0
      %927 = vmatprep.subr.mxu0 0.0
      %928 = vmatpush1.msra.mxu0 0.0
      %929 = vmatprep.subr.mxu0 0.0
      %930 = vmatpush1.msra.mxu0 0.0
      %931 = vmatprep.subr.mxu0 0.0
      %932 = vmatpush1.msra.mxu0 0.0
      %933 = vmatprep.subr.mxu0 0.0
      %934 = vmatpush1.msra.mxu0 %v896
      %935 = vmatprep.subr.mxu0 0.0
      %936 = vmatpush1.msra.mxu0 %v891
      %937 = vmatprep.subr.mxu0 0.0
      %938 = vmatpush1.msra.mxu0 %v886
      %939 = vmatprep.subr.mxu0 0.0
      %940 = vmatpush2.msra.mxu0 0.0
      %941 = vmatprep.subr.mxu0 0.0
      %942 = vmatpush2.msra.mxu0 0.0
      %943 = vmatprep.subr.mxu0 0.0
      %944 = vmatpush2.msra.mxu0 0.0
      %945 = vmatprep.subr.mxu0 0.0
      %946 = vmatpush2.msra.mxu0 0.0
      %947 = vmatprep.subr.mxu0 0.0
      %948 = vmatpush2.msra.mxu0 0.0
      %949 = vmatprep.subr.mxu0 0.0
      %950 = vmatpush2.msra.mxu0 0.0
      %951 = vmatprep.subr.mxu0 0.0
      %952 = vmatpush2.msra.mxu0 0.0
      %953 = vmatprep.subr.mxu0 0.0
      %954 = vmatpush2.msra.mxu0 0.0
      %955 = vmatprep.subr.mxu0 0.0
      %956 = vmatpush2.msra.mxu0 0.0
      %957 = vmatprep.subr.mxu0 0.0
      %958 = vmatpush2.msra.mxu0 0.0
      %959 = vmatprep.subr.mxu0 0.0
      %960 = vmatpush2.msra.mxu0 0.0
      %961 = vmatprep.subr.mxu0 0.0
      %962 = vmatpush2.msra.mxu0 0.0
      %963 = vmatprep.subr.mxu0 0.0
      %964 = vmatpush2.msra.mxu0 0.0
      %965 = vmatprep.subr.mxu0 0.0
      %966 = vmatpush2.msra.mxu0 0.0
      %967 = vmatprep.subr.mxu0 0.0
      %968 = vmatpush2.msra.mxu0 0.0
      %969 = vmatprep.subr.mxu0 0.0
      %970 = vmatpush2.msra.mxu0 0.0
      %971 = vmatprep.mubr.f32.mxu0 0.0
      %972 = vmatmul.mubr.f32.gmra.mxu0 %v720
      %v973 = vpop.f32.mrf.mxu0
      %v974 = vadd.f32 %v905, %v973
      %v975 = vpop.f32.mrf.mxu0
      %976 = vmatprep.mubr.f32.mxu0 0.0
      %977 = vmatmul.mubr.f32.gmra.mxu0 %v723
      %v978 = vpop.f32.mrf.mxu0
      %v979 = vadd.f32 %v905, %v978
      %v980 = vpop.f32.mrf.mxu0
      %981 = vdwg.mxu0
      %vm982 = vcmp.gt.f32.partialorder %v974, 0.0
      %vm983 = vcmp.gt.f32.partialorder %v979, 0.0
      %v984 = vmul.f32 %v974, 0.1
      %v985 = vmul.f32 %v979, 0.1
      %v986 = vsel %vm982, %v974, %v984
      %v987 = vsel %vm983, %v979, %v985
      %s988 = scalar_lea.vmem [#allocation13], %s806
      %v989 = vld [vmem:[%s988] sm:$0xff]
      %v990 = vld [vmem:[%s988 + $0x8] sm:$0xff]
      %v992 = vsel %vm517, %v804, 0
      %v995 = vsel %vm517, %v805, 0
      %997 = vmatprep.subr.mxu0 0.0
      %998 = vmatpush1.msra.mxu0 0.0
      %999 = vmatprep.subr.mxu0 0.0
      %1000 = vmatpush1.msra.mxu0 0.0
      %1001 = vmatprep.subr.mxu0 0.0
      %1002 = vmatpush1.msra.mxu0 0.0
      %1003 = vmatprep.subr.mxu0 0.0
      %1004 = vmatpush1.msra.mxu0 0.0
      %1005 = vmatprep.subr.mxu0 0.0
      %1006 = vmatpush1.msra.mxu0 0.0
      %1007 = vmatprep.subr.mxu0 0.0
      %1008 = vmatpush1.msra.mxu0 0.0
      %1009 = vmatprep.subr.mxu0 0.0
      %1010 = vmatpush1.msra.mxu0 0.0
      %1011 = vmatprep.subr.mxu0 0.0
      %1012 = vmatpush1.msra.mxu0 0.0
      %1013 = vmatprep.subr.mxu0 0.0
      %1014 = vmatpush1.msra.mxu0 0.0
      %1015 = vmatprep.subr.mxu0 0.0
      %1016 = vmatpush1.msra.mxu0 0.0
      %1017 = vmatprep.subr.mxu0 0.0
      %1018 = vmatpush1.msra.mxu0 0.0
      %1019 = vmatprep.subr.mxu0 0.0
      %1020 = vmatpush1.msra.mxu0 0.0
      %1021 = vmatprep.subr.mxu0 0.0
      %1022 = vmatpush1.msra.mxu0 0.0
      %1023 = vmatprep.subr.mxu0 0.0
      %1024 = vmatpush1.msra.mxu0 0.0
      %1025 = vmatprep.subr.mxu0 0.0
      %1026 = vmatpush1.msra.mxu0 %v990
      %1027 = vmatprep.subr.mxu0 0.0
      %1028 = vmatpush1.msra.mxu0 %v989
      %1029 = vmatprep.subr.mxu0 0.0
      %1030 = vmatpush2.msra.mxu0 0.0
      %1031 = vmatprep.subr.mxu0 0.0
      %1032 = vmatpush2.msra.mxu0 0.0
      %1033 = vmatprep.subr.mxu0 0.0
      %1034 = vmatpush2.msra.mxu0 0.0
      %1035 = vmatprep.subr.mxu0 0.0
      %1036 = vmatpush2.msra.mxu0 0.0
      %1037 = vmatprep.subr.mxu0 0.0
      %1038 = vmatpush2.msra.mxu0 0.0
      %1039 = vmatprep.subr.mxu0 0.0
      %1040 = vmatpush2.msra.mxu0 0.0
      %1041 = vmatprep.subr.mxu0 0.0
      %1042 = vmatpush2.msra.mxu0 0.0
      %1043 = vmatprep.subr.mxu0 0.0
      %1044 = vmatpush2.msra.mxu0 0.0
      %1045 = vmatprep.subr.mxu0 0.0
      %1046 = vmatpush2.msra.mxu0 0.0
      %1047 = vmatprep.subr.mxu0 0.0
      %1048 = vmatpush2.msra.mxu0 0.0
      %1049 = vmatprep.subr.mxu0 0.0
      %1050 = vmatpush2.msra.mxu0 0.0
      %1051 = vmatprep.subr.mxu0 0.0
      %1052 = vmatpush2.msra.mxu0 0.0
      %1053 = vmatprep.subr.mxu0 0.0
      %1054 = vmatpush2.msra.mxu0 0.0
      %1055 = vmatprep.subr.mxu0 0.0
      %1056 = vmatpush2.msra.mxu0 0.0
      %1057 = vmatprep.subr.mxu0 0.0
      %1058 = vmatpush2.msra.mxu0 0.0
      %1059 = vmatprep.subr.mxu0 0.0
      %1060 = vmatpush2.msra.mxu0 0.0
      %1061 = vmatprep.mubr.f32.mxu0 0.0
      %1062 = vmatmul.mubr.f32.gmra.mxu0 %v992
      %v1063 = vpop.f32.mrf.mxu0
      %v1064 = vadd.f32 0.0, %v1063
      %v1065 = vpop.f32.mrf.mxu0
      %1066 = vmatprep.mubr.f32.mxu0 0.0
      %1067 = vmatmul.mubr.f32.gmra.mxu0 %v995
      %v1068 = vpop.f32.mrf.mxu0
      %v1069 = vadd.f32 0.0, %v1068
      %v1070 = vpop.f32.mrf.mxu0
      %1071 = vdwg.mxu0
      %s1072 = scalar_lea.vmem [#allocation14], %s411
      %v1073 = vld [vmem:[%s1072] sm:$0x1]
      %v1075 = vlaneseq
      %v1076 = vshrl.u32 %v1075, 7
      %v1077 = vsub.s32 0, %v1076
      %v1078 = vrot.slane %v1073, %v1077
      %1080 = vmatprep.subr.mxu0 0.0
      %1081 = vmatpush1.msra.mxu0 0.0
      %1082 = vmatprep.subr.mxu0 0.0
      %1083 = vmatpush1.msra.mxu0 0.0
      %1084 = vmatprep.subr.mxu0 0.0
      %1085 = vmatpush1.msra.mxu0 0.0
      %1086 = vmatprep.subr.mxu0 0.0
      %1087 = vmatpush1.msra.mxu0 0.0
      %1088 = vmatprep.subr.mxu0 0.0
      %1089 = vmatpush1.msra.mxu0 0.0
      %1090 = vmatprep.subr.mxu0 0.0
      %1091 = vmatpush1.msra.mxu0 0.0
      %1092 = vmatprep.subr.mxu0 0.0
      %1093 = vmatpush1.msra.mxu0 0.0
      %1094 = vmatprep.subr.mxu0 0.0
      %1095 = vmatpush1.msra.mxu0 0.0
      %1096 = vmatprep.subr.mxu0 0.0
      %1097 = vmatpush1.msra.mxu0 0.0
      %1098 = vmatprep.subr.mxu0 0.0
      %1099 = vmatpush1.msra.mxu0 0.0
      %1100 = vmatprep.subr.mxu0 0.0
      %1101 = vmatpush1.msra.mxu0 0.0
      %1102 = vmatprep.subr.mxu0 0.0
      %1103 = vmatpush1.msra.mxu0 0.0
      %1104 = vmatprep.subr.mxu0 0.0
      %1105 = vmatpush1.msra.mxu0 0.0
      %1106 = vmatprep.subr.mxu0 0.0
      %1107 = vmatpush1.msra.mxu0 0.0
      %1108 = vmatprep.subr.mxu0 0.0
      %1109 = vmatpush1.msra.mxu0 %v1069
      %1110 = vmatprep.subr.mxu0 0.0
      %1111 = vmatpush1.msra.mxu0 %v1064
      %1112 = vmatprep.subr.mxu0 0.0
      %1113 = vmatpush2.msra.mxu0 0.0
      %1114 = vmatprep.subr.mxu0 0.0
      %1115 = vmatpush2.msra.mxu0 0.0
      %1116 = vmatprep.subr.mxu0 0.0
      %1117 = vmatpush2.msra.mxu0 0.0
      %1118 = vmatprep.subr.mxu0 0.0
      %1119 = vmatpush2.msra.mxu0 0.0
      %1120 = vmatprep.subr.mxu0 0.0
      %1121 = vmatpush2.msra.mxu0 0.0
      %1122 = vmatprep.subr.mxu0 0.0
      %1123 = vmatpush2.msra.mxu0 0.0
      %1124 = vmatprep.subr.mxu0 0.0
      %1125 = vmatpush2.msra.mxu0 0.0
      %1126 = vmatprep.subr.mxu0 0.0
      %1127 = vmatpush2.msra.mxu0 0.0
      %1128 = vmatprep.subr.mxu0 0.0
      %1129 = vmatpush2.msra.mxu0 0.0
      %1130 = vmatprep.subr.mxu0 0.0
      %1131 = vmatpush2.msra.mxu0 0.0
      %1132 = vmatprep.subr.mxu0 0.0
      %1133 = vmatpush2.msra.mxu0 0.0
      %1134 = vmatprep.subr.mxu0 0.0
      %1135 = vmatpush2.msra.mxu0 0.0
      %1136 = vmatprep.subr.mxu0 0.0
      %1137 = vmatpush2.msra.mxu0 0.0
      %1138 = vmatprep.subr.mxu0 0.0
      %1139 = vmatpush2.msra.mxu0 0.0
      %1140 = vmatprep.subr.mxu0 0.0
      %1141 = vmatpush2.msra.mxu0 0.0
      %1142 = vmatprep.subr.mxu0 0.0
      %1143 = vmatpush2.msra.mxu0 0.0
      %1144 = vmatprep.mubr.f32.mxu0 0.0
      %1145 = vmatmul.mubr.f32.gmra.mxu0 %v519
      %v1146 = vpop.f32.mrf.mxu0
      %v1147 = vadd.f32 %v1078, %v1146
      %v1148 = vpop.f32.mrf.mxu0
      %1149 = vmatprep.mubr.f32.mxu0 0.0
      %1150 = vmatmul.mubr.f32.gmra.mxu0 %v522
      %v1151 = vpop.f32.mrf.mxu0
      %v1152 = vadd.f32 %v1078, %v1151
      %v1153 = vpop.f32.mrf.mxu0
      %1154 = vmatprep.mubr.f32.mxu0 0.0
      %1155 = vmatmul.mubr.f32.gmra.mxu0 %v525
      %v1156 = vpop.f32.mrf.mxu0
      %v1157 = vadd.f32 %v1078, %v1156
      %v1158 = vpop.f32.mrf.mxu0
      %1159 = vdwg.mxu0
      %vm1160 = vcmp.gt.f32.partialorder %v1147, 0.0
      %vm1161 = vcmp.gt.f32.partialorder %v1152, 0.0
      %vm1162 = vcmp.gt.f32.partialorder %v1157, 0.0
      %v1163 = vmul.f32 %v1147, 0.1
      %v1164 = vmul.f32 %v1152, 0.1
      %v1165 = vmul.f32 %v1157, 0.1
      %v1166 = vsel %vm1160, %v1147, %v1163
      %v1167 = vsel %vm1161, %v1152, %v1164
      %v1168 = vsel %vm1162, %v1157, %v1165
      %s1169 = scalar_lea.vmem %s25, %s421
      %v1170 = vld [vmem:[%s1169] sm:$0xff]
      %v1171 = vld [vmem:[%s1169 + $0x8] sm:$0xff]
      %v1172 = vld [vmem:[%s1169 + $0x10] sm:$0xff]
      %v1173 = vld [vmem:[%s1169 + $0x18] sm:$0xff]
      %s1174 = scalar_lea.vmem %s27, %s421
      %v1175 = vld [vmem:[%s1174] sm:$0xff]
      %v1176 = vld [vmem:[%s1174 + $0x8] sm:$0xff]
      %v1177 = vld [vmem:[%s1174 + $0x10] sm:$0xff]
      %v1178 = vld [vmem:[%s1174 + $0x18] sm:$0xff]
      %1179 = vmatprep.subr.mxu0 0.0
      %1180 = vmatpush1.msra.mxu0 0.0
      %1181 = vmatprep.subr.mxu0 0.0
      %1182 = vmatpush1.msra.mxu0 0.0
      %1183 = vmatprep.subr.mxu0 0.0
      %1184 = vmatpush1.msra.mxu0 0.0
      %1185 = vmatprep.subr.mxu0 0.0
      %1186 = vmatpush1.msra.mxu0 0.0
      %1187 = vmatprep.subr.mxu0 0.0
      %1188 = vmatpush1.msra.mxu0 0.0
      %1189 = vmatprep.subr.mxu0 0.0
      %1190 = vmatpush1.msra.mxu0 0.0
      %1191 = vmatprep.subr.mxu0 0.0
      %1192 = vmatpush1.msra.mxu0 0.0
      %1193 = vmatprep.subr.mxu0 0.0
      %1194 = vmatpush1.msra.mxu0 0.0
      %1195 = vmatprep.subr.mxu0 0.0
      %1196 = vmatpush1.msra.mxu0 0.0
      %1197 = vmatprep.subr.mxu0 0.0
      %1198 = vmatpush1.msra.mxu0 0.0
      %1199 = vmatprep.subr.mxu0 0.0
      %1200 = vmatpush1.msra.mxu0 0.0
      %1201 = vmatprep.subr.mxu0 0.0
      %1202 = vmatpush1.msra.mxu0 0.0
      %1203 = vmatprep.subr.mxu0 0.0
      %1204 = vmatpush1.msra.mxu0 %v1178
      %1205 = vmatprep.subr.mxu0 0.0
      %1206 = vmatpush1.msra.mxu0 %v1177
      %1207 = vmatprep.subr.mxu0 0.0
      %1208 = vmatpush1.msra.mxu0 %v1176
      %1209 = vmatprep.subr.mxu0 0.0
      %1210 = vmatpush1.msra.mxu0 %v1175
      %1211 = vmatprep.subr.mxu0 0.0
      %1212 = vmatpush2.msra.mxu0 0.0
      %1213 = vmatprep.subr.mxu0 0.0
      %1214 = vmatpush2.msra.mxu0 0.0
      %1215 = vmatprep.subr.mxu0 0.0
      %1216 = vmatpush2.msra.mxu0 0.0
      %1217 = vmatprep.subr.mxu0 0.0
      %1218 = vmatpush2.msra.mxu0 0.0
      %1219 = vmatprep.subr.mxu0 0.0
      %1220 = vmatpush2.msra.mxu0 0.0
      %1221 = vmatprep.subr.mxu0 0.0
      %1222 = vmatpush2.msra.mxu0 0.0
      %1223 = vmatprep.subr.mxu0 0.0
      %1224 = vmatpush2.msra.mxu0 0.0
      %1225 = vmatprep.subr.mxu0 0.0
      %1226 = vmatpush2.msra.mxu0 0.0
      %1227 = vmatprep.subr.mxu0 0.0
      %1228 = vmatpush2.msra.mxu0 0.0
      %1229 = vmatprep.subr.mxu0 0.0
      %1230 = vmatpush2.msra.mxu0 0.0
      %1231 = vmatprep.subr.mxu0 0.0
      %1232 = vmatpush2.msra.mxu0 0.0
      %1233 = vmatprep.subr.mxu0 0.0
      %1234 = vmatpush2.msra.mxu0 0.0
      %1235 = vmatprep.subr.mxu0 0.0
      %1236 = vmatpush2.msra.mxu0 0.0
      %1237 = vmatprep.subr.mxu0 0.0
      %1238 = vmatpush2.msra.mxu0 0.0
      %1239 = vmatprep.subr.mxu0 0.0
      %1240 = vmatpush2.msra.mxu0 0.0
      %1241 = vmatprep.subr.mxu0 0.0
      %1242 = vmatpush2.msra.mxu0 0.0
      %1243 = vmatprep.mubr.f32.mxu0 0.0
      %1244 = vmatmul.mubr.f32.gmra.mxu0 %v429
      %v1245 = vpop.f32.mrf.mxu0
      %v1246 = vadd.f32 0.0, %v1245
      %v1247 = vpop.f32.mrf.mxu0
      %1248 = vmatprep.mubr.f32.mxu0 0.0
      %1249 = vmatmul.mubr.f32.gmra.mxu0 %v432
      %v1250 = vpop.f32.mrf.mxu0
      %v1251 = vadd.f32 0.0, %v1250
      %v1252 = vpop.f32.mrf.mxu0
      %1253 = vdwg.mxu0
      %v1255 = vsel %vm427, %v986, 0
      %v1258 = vsel %vm427, %v987, 0
      %1260 = vmatprep.subr.mxu0 0.0
      %1261 = vmatpush1.msra.mxu0 0.0
      %1262 = vmatprep.subr.mxu0 0.0
      %1263 = vmatpush1.msra.mxu0 0.0
      %1264 = vmatprep.subr.mxu0 0.0
      %1265 = vmatpush1.msra.mxu0 0.0
      %1266 = vmatprep.subr.mxu0 0.0
      %1267 = vmatpush1.msra.mxu0 0.0
      %1268 = vmatprep.subr.mxu0 0.0
      %1269 = vmatpush1.msra.mxu0 0.0
      %1270 = vmatprep.subr.mxu0 0.0
      %1271 = vmatpush1.msra.mxu0 0.0
      %1272 = vmatprep.subr.mxu0 0.0
      %1273 = vmatpush1.msra.mxu0 0.0
      %1274 = vmatprep.subr.mxu0 0.0
      %1275 = vmatpush1.msra.mxu0 0.0
      %1276 = vmatprep.subr.mxu0 0.0
      %1277 = vmatpush1.msra.mxu0 0.0
      %1278 = vmatprep.subr.mxu0 0.0
      %1279 = vmatpush1.msra.mxu0 0.0
      %1280 = vmatprep.subr.mxu0 0.0
      %1281 = vmatpush1.msra.mxu0 0.0
      %1282 = vmatprep.subr.mxu0 0.0
      %1283 = vmatpush1.msra.mxu0 0.0
      %1284 = vmatprep.subr.mxu0 0.0
      %1285 = vmatpush1.msra.mxu0 %v1173
      %1286 = vmatprep.subr.mxu0 0.0
      %1287 = vmatpush1.msra.mxu0 %v1172
      %1288 = vmatprep.subr.mxu0 0.0
      %1289 = vmatpush1.msra.mxu0 %v1171
      %1290 = vmatprep.subr.mxu0 0.0
      %1291 = vmatpush1.msra.mxu0 %v1170
      %1292 = vmatprep.subr.mxu0 0.0
      %1293 = vmatpush2.msra.mxu0 0.0
      %1294 = vmatprep.subr.mxu0 0.0
      %1295 = vmatpush2.msra.mxu0 0.0
      %1296 = vmatprep.subr.mxu0 0.0
      %1297 = vmatpush2.msra.mxu0 0.0
      %1298 = vmatprep.subr.mxu0 0.0
      %1299 = vmatpush2.msra.mxu0 0.0
      %1300 = vmatprep.subr.mxu0 0.0
      %1301 = vmatpush2.msra.mxu0 0.0
      %1302 = vmatprep.subr.mxu0 0.0
      %1303 = vmatpush2.msra.mxu0 0.0
      %1304 = vmatprep.subr.mxu0 0.0
      %1305 = vmatpush2.msra.mxu0 0.0
      %1306 = vmatprep.subr.mxu0 0.0
      %1307 = vmatpush2.msra.mxu0 0.0
      %1308 = vmatprep.subr.mxu0 0.0
      %1309 = vmatpush2.msra.mxu0 0.0
      %1310 = vmatprep.subr.mxu0 0.0
      %1311 = vmatpush2.msra.mxu0 0.0
      %1312 = vmatprep.subr.mxu0 0.0
      %1313 = vmatpush2.msra.mxu0 0.0
      %1314 = vmatprep.subr.mxu0 0.0
      %1315 = vmatpush2.msra.mxu0 0.0
      %1316 = vmatprep.subr.mxu0 0.0
      %1317 = vmatpush2.msra.mxu0 0.0
      %1318 = vmatprep.subr.mxu0 0.0
      %1319 = vmatpush2.msra.mxu0 0.0
      %1320 = vmatprep.subr.mxu0 0.0
      %1321 = vmatpush2.msra.mxu0 0.0
      %1322 = vmatprep.subr.mxu0 0.0
      %1323 = vmatpush2.msra.mxu0 0.0
      %1324 = vmatprep.mubr.f32.mxu0 0.0
      %1325 = vmatmul.mubr.f32.gmra.mxu0 %v1255
      %v1326 = vpop.f32.mrf.mxu0
      %v1327 = vadd.f32 %v1246, %v1326
      %v1328 = vpop.f32.mrf.mxu0
      %1329 = vmatprep.mubr.f32.mxu0 0.0
      %1330 = vmatmul.mubr.f32.gmra.mxu0 %v1258
      %v1331 = vpop.f32.mrf.mxu0
      %v1332 = vadd.f32 %v1251, %v1331
      %v1333 = vpop.f32.mrf.mxu0
      %1334 = vdwg.mxu0
      %s1335 = scalar_lea.vmem [#allocation16], %s411
      %v1336 = vld [vmem:[%s1335] sm:$0x1]
      %v1338 = vlaneseq
      %v1339 = vshrl.u32 %v1338, 7
      %v1340 = vsub.s32 0, %v1339
      %v1341 = vrot.slane %v1336, %v1340
      %v1343 = vadd.f32 %v1327, %v1341
      %v1344 = vadd.f32 %v1332, %v1341
      %v1345 = vmax.f32 %v1343, 0.0
      %v1346 = vmax.f32 %v1344, 0.0
      %s1347 = scalar_lea.vmem %s31, %s421
      %v1348 = vld [vmem:[%s1347] sm:$0xff]
      %v1349 = vld [vmem:[%s1347 + $0x8] sm:$0xff]
      %v1350 = vld [vmem:[%s1347 + $0x10] sm:$0xff]
      %v1351 = vld [vmem:[%s1347 + $0x18] sm:$0xff]
      %s1352 = scalar_lea.vmem %s33, %s421
      %v1353 = vld [vmem:[%s1352] sm:$0xff]
      %v1354 = vld [vmem:[%s1352 + $0x8] sm:$0xff]
      %v1355 = vld [vmem:[%s1352 + $0x10] sm:$0xff]
      %v1356 = vld [vmem:[%s1352 + $0x18] sm:$0xff]
      %1357 = vmatprep.subr.mxu0 0.0
      %1358 = vmatpush1.msra.mxu0 0.0
      %1359 = vmatprep.subr.mxu0 0.0
      %1360 = vmatpush1.msra.mxu0 0.0
      %1361 = vmatprep.subr.mxu0 0.0
      %1362 = vmatpush1.msra.mxu0 0.0
      %1363 = vmatprep.subr.mxu0 0.0
      %1364 = vmatpush1.msra.mxu0 0.0
      %1365 = vmatprep.subr.mxu0 0.0
      %1366 = vmatpush1.msra.mxu0 0.0
      %1367 = vmatprep.subr.mxu0 0.0
      %1368 = vmatpush1.msra.mxu0 0.0
      %1369 = vmatprep.subr.mxu0 0.0
      %1370 = vmatpush1.msra.mxu0 0.0
      %1371 = vmatprep.subr.mxu0 0.0
      %1372 = vmatpush1.msra.mxu0 0.0
      %1373 = vmatprep.subr.mxu0 0.0
      %1374 = vmatpush1.msra.mxu0 0.0
      %1375 = vmatprep.subr.mxu0 0.0
      %1376 = vmatpush1.msra.mxu0 0.0
      %1377 = vmatprep.subr.mxu0 0.0
      %1378 = vmatpush1.msra.mxu0 0.0
      %1379 = vmatprep.subr.mxu0 0.0
      %1380 = vmatpush1.msra.mxu0 0.0
      %1381 = vmatprep.subr.mxu0 0.0
      %1382 = vmatpush1.msra.mxu0 %v1356
      %1383 = vmatprep.subr.mxu0 0.0
      %1384 = vmatpush1.msra.mxu0 %v1355
      %1385 = vmatprep.subr.mxu0 0.0
      %1386 = vmatpush1.msra.mxu0 %v1354
      %1387 = vmatprep.subr.mxu0 0.0
      %1388 = vmatpush1.msra.mxu0 %v1353
      %1389 = vmatprep.subr.mxu0 0.0
      %1390 = vmatpush2.msra.mxu0 0.0
      %1391 = vmatprep.subr.mxu0 0.0
      %1392 = vmatpush2.msra.mxu0 0.0
      %1393 = vmatprep.subr.mxu0 0.0
      %1394 = vmatpush2.msra.mxu0 0.0
      %1395 = vmatprep.subr.mxu0 0.0
      %1396 = vmatpush2.msra.mxu0 0.0
      %1397 = vmatprep.subr.mxu0 0.0
      %1398 = vmatpush2.msra.mxu0 0.0
      %1399 = vmatprep.subr.mxu0 0.0
      %1400 = vmatpush2.msra.mxu0 0.0
      %1401 = vmatprep.subr.mxu0 0.0
      %1402 = vmatpush2.msra.mxu0 0.0
      %1403 = vmatprep.subr.mxu0 0.0
      %1404 = vmatpush2.msra.mxu0 0.0
      %1405 = vmatprep.subr.mxu0 0.0
      %1406 = vmatpush2.msra.mxu0 0.0
      %1407 = vmatprep.subr.mxu0 0.0
      %1408 = vmatpush2.msra.mxu0 0.0
      %1409 = vmatprep.subr.mxu0 0.0
      %1410 = vmatpush2.msra.mxu0 0.0
      %1411 = vmatprep.subr.mxu0 0.0
      %1412 = vmatpush2.msra.mxu0 0.0
      %1413 = vmatprep.subr.mxu0 0.0
      %1414 = vmatpush2.msra.mxu0 0.0
      %1415 = vmatprep.subr.mxu0 0.0
      %1416 = vmatpush2.msra.mxu0 0.0
      %1417 = vmatprep.subr.mxu0 0.0
      %1418 = vmatpush2.msra.mxu0 0.0
      %1419 = vmatprep.subr.mxu0 0.0
      %1420 = vmatpush2.msra.mxu0 0.0
      %1421 = vmatprep.mubr.f32.mxu0 0.0
      %1422 = vmatmul.mubr.f32.gmra.mxu0 %v622
      %v1423 = vpop.f32.mrf.mxu0
      %v1424 = vadd.f32 0.0, %v1423
      %v1425 = vpop.f32.mrf.mxu0
      %1426 = vmatprep.mubr.f32.mxu0 0.0
      %1427 = vmatmul.mubr.f32.gmra.mxu0 %v625
      %v1428 = vpop.f32.mrf.mxu0
      %v1429 = vadd.f32 0.0, %v1428
      %v1430 = vpop.f32.mrf.mxu0
      %1431 = vmatprep.mubr.f32.mxu0 0.0
      %1432 = vmatmul.mubr.f32.gmra.mxu0 %v628
      %v1433 = vpop.f32.mrf.mxu0
      %v1434 = vadd.f32 0.0, %v1433
      %v1435 = vpop.f32.mrf.mxu0
      %1436 = vdwg.mxu0
      %v1438 = vsel %vm427, %v1166, 0
      %v1441 = vsel %vm427, %v1167, 0
      %v1444 = vsel %vm427, %v1168, 0
      %1446 = vmatprep.subr.mxu0 0.0
      %1447 = vmatpush1.msra.mxu0 0.0
      %1448 = vmatprep.subr.mxu0 0.0
      %1449 = vmatpush1.msra.mxu0 0.0
      %1450 = vmatprep.subr.mxu0 0.0
      %1451 = vmatpush1.msra.mxu0 0.0
      %1452 = vmatprep.subr.mxu0 0.0
      %1453 = vmatpush1.msra.mxu0 0.0
      %1454 = vmatprep.subr.mxu0 0.0
      %1455 = vmatpush1.msra.mxu0 0.0
      %1456 = vmatprep.subr.mxu0 0.0
      %1457 = vmatpush1.msra.mxu0 0.0
      %1458 = vmatprep.subr.mxu0 0.0
      %1459 = vmatpush1.msra.mxu0 0.0
      %1460 = vmatprep.subr.mxu0 0.0
      %1461 = vmatpush1.msra.mxu0 0.0
      %1462 = vmatprep.subr.mxu0 0.0
      %1463 = vmatpush1.msra.mxu0 0.0
      %1464 = vmatprep.subr.mxu0 0.0
      %1465 = vmatpush1.msra.mxu0 0.0
      %1466 = vmatprep.subr.mxu0 0.0
      %1467 = vmatpush1.msra.mxu0 0.0
      %1468 = vmatprep.subr.mxu0 0.0
      %1469 = vmatpush1.msra.mxu0 0.0
      %1470 = vmatprep.subr.mxu0 0.0
      %1471 = vmatpush1.msra.mxu0 %v1351
      %1472 = vmatprep.subr.mxu0 0.0
      %1473 = vmatpush1.msra.mxu0 %v1350
      %1474 = vmatprep.subr.mxu0 0.0
      %1475 = vmatpush1.msra.mxu0 %v1349
      %1476 = vmatprep.subr.mxu0 0.0
      %1477 = vmatpush1.msra.mxu0 %v1348
      %1478 = vmatprep.subr.mxu0 0.0
      %1479 = vmatpush2.msra.mxu0 0.0
      %1480 = vmatprep.subr.mxu0 0.0
      %1481 = vmatpush2.msra.mxu0 0.0
      %1482 = vmatprep.subr.mxu0 0.0
      %1483 = vmatpush2.msra.mxu0 0.0
      %1484 = vmatprep.subr.mxu0 0.0
      %1485 = vmatpush2.msra.mxu0 0.0
      %1486 = vmatprep.subr.mxu0 0.0
      %1487 = vmatpush2.msra.mxu0 0.0
      %1488 = vmatprep.subr.mxu0 0.0
      %1489 = vmatpush2.msra.mxu0 0.0
      %1490 = vmatprep.subr.mxu0 0.0
      %1491 = vmatpush2.msra.mxu0 0.0
      %1492 = vmatprep.subr.mxu0 0.0
      %1493 = vmatpush2.msra.mxu0 0.0
      %1494 = vmatprep.subr.mxu0 0.0
      %1495 = vmatpush2.msra.mxu0 0.0
      %1496 = vmatprep.subr.mxu0 0.0
      %1497 = vmatpush2.msra.mxu0 0.0
      %1498 = vmatprep.subr.mxu0 0.0
      %1499 = vmatpush2.msra.mxu0 0.0
      %1500 = vmatprep.subr.mxu0 0.0
      %1501 = vmatpush2.msra.mxu0 0.0
      %1502 = vmatprep.subr.mxu0 0.0
      %1503 = vmatpush2.msra.mxu0 0.0
      %1504 = vmatprep.subr.mxu0 0.0
      %1505 = vmatpush2.msra.mxu0 0.0
      %1506 = vmatprep.subr.mxu0 0.0
      %1507 = vmatpush2.msra.mxu0 0.0
      %1508 = vmatprep.subr.mxu0 0.0
      %1509 = vmatpush2.msra.mxu0 0.0
      %1510 = vmatprep.mubr.f32.mxu0 0.0
      %1511 = vmatmul.mubr.f32.gmra.mxu0 %v1438
      %v1512 = vpop.f32.mrf.mxu0
      %v1513 = vadd.f32 %v1424, %v1512
      %v1514 = vpop.f32.mrf.mxu0
      %1515 = vmatprep.mubr.f32.mxu0 0.0
      %1516 = vmatmul.mubr.f32.gmra.mxu0 %v1441
      %v1517 = vpop.f32.mrf.mxu0
      %v1518 = vadd.f32 %v1429, %v1517
      %v1519 = vpop.f32.mrf.mxu0
      %1520 = vmatprep.mubr.f32.mxu0 0.0
      %1521 = vmatmul.mubr.f32.gmra.mxu0 %v1444
      %v1522 = vpop.f32.mrf.mxu0
      %v1523 = vadd.f32 %v1434, %v1522
      %v1524 = vpop.f32.mrf.mxu0
      %1525 = vdwg.mxu0
      %s1526 = scalar_lea.vmem [#allocation17], %s411
      %v1527 = vld [vmem:[%s1526] sm:$0x1]
      %v1529 = vlaneseq
      %v1530 = vshrl.u32 %v1529, 7
      %v1531 = vsub.s32 0, %v1530
      %v1532 = vrot.slane %v1527, %v1531
      %v1534 = vadd.f32 %v1513, %v1532
      %v1535 = vadd.f32 %v1518, %v1532
      %v1536 = vadd.f32 %v1523, %v1532
      %v1537 = vmax.f32 %v1534, 0.0
      %v1538 = vmax.f32 %v1535, 0.0
      %v1539 = vmax.f32 %v1536, 0.0
    $region214: #{single_vbge_forward.1} parent=1 // loop_footer
      %s415 = sadd.s32 1, %s411
    $region215: #{single_vbge_forward.1} parent=1 // loop_footer_branch
      %410 = sbr.rel target = $region211
    $region216: #{single_vbge_forward.1} parent=1 // loop_exit
      _
    %v1540 = vld [vmem:[%s37] sm:$0xff]
    %v1541 = vld [vmem:[%s37 + $0x8] sm:$0xff]
    %v1542 = vld [vmem:[%s37 + $0x10] sm:$0xff]
    %v1543 = vld [vmem:[%s37 + $0x18] sm:$0xff]
    %vm1544 = vcmask 261120
    %v1546 = vsel %vm1544, %v416, 0
    %v1549 = vsel %vm1544, %v417, 0
    %1551 = vmatprep.subr.mxu0 0.0
    %1552 = vmatpush1.msra.mxu0 0.0
    %1553 = vmatprep.subr.mxu0 0.0
    %1554 = vmatpush1.msra.mxu0 0.0
    %1555 = vmatprep.subr.mxu0 0.0
    %1556 = vmatpush1.msra.mxu0 0.0
    %1557 = vmatprep.subr.mxu0 0.0
    %1558 = vmatpush1.msra.mxu0 0.0
    %1559 = vmatprep.subr.mxu0 0.0
    %1560 = vmatpush1.msra.mxu0 0.0
    %1561 = vmatprep.subr.mxu0 0.0
    %1562 = vmatpush1.msra.mxu0 0.0
    %1563 = vmatprep.subr.mxu0 0.0
    %1564 = vmatpush1.msra.mxu0 0.0
    %1565 = vmatprep.subr.mxu0 0.0
    %1566 = vmatpush1.msra.mxu0 0.0
    %1567 = vmatprep.subr.mxu0 0.0
    %1568 = vmatpush1.msra.mxu0 0.0
    %1569 = vmatprep.subr.mxu0 0.0
    %1570 = vmatpush1.msra.mxu0 0.0
    %1571 = vmatprep.subr.mxu0 0.0
    %1572 = vmatpush1.msra.mxu0 0.0
    %1573 = vmatprep.subr.mxu0 0.0
    %1574 = vmatpush1.msra.mxu0 0.0
    %1575 = vmatprep.subr.mxu0 0.0
    %1576 = vmatpush1.msra.mxu0 %v1543
    %1577 = vmatprep.subr.mxu0 0.0
    %1578 = vmatpush1.msra.mxu0 %v1542
    %1579 = vmatprep.subr.mxu0 0.0
    %1580 = vmatpush1.msra.mxu0 %v1541
    %1581 = vmatprep.subr.mxu0 0.0
    %1582 = vmatpush1.msra.mxu0 %v1540
    %1583 = vmatprep.subr.mxu0 0.0
    %1584 = vmatpush2.msra.mxu0 0.0
    %1585 = vmatprep.subr.mxu0 0.0
    %1586 = vmatpush2.msra.mxu0 0.0
    %1587 = vmatprep.subr.mxu0 0.0
    %1588 = vmatpush2.msra.mxu0 0.0
    %1589 = vmatprep.subr.mxu0 0.0
    %1590 = vmatpush2.msra.mxu0 0.0
    %1591 = vmatprep.subr.mxu0 0.0
    %1592 = vmatpush2.msra.mxu0 0.0
    %1593 = vmatprep.subr.mxu0 0.0
    %1594 = vmatpush2.msra.mxu0 0.0
    %1595 = vmatprep.subr.mxu0 0.0
    %1596 = vmatpush2.msra.mxu0 0.0
    %1597 = vmatprep.subr.mxu0 0.0
    %1598 = vmatpush2.msra.mxu0 0.0
    %1599 = vmatprep.subr.mxu0 0.0
    %1600 = vmatpush2.msra.mxu0 0.0
    %1601 = vmatprep.subr.mxu0 0.0
    %1602 = vmatpush2.msra.mxu0 0.0
    %1603 = vmatprep.subr.mxu0 0.0
    %1604 = vmatpush2.msra.mxu0 0.0
    %1605 = vmatprep.subr.mxu0 0.0
    %1606 = vmatpush2.msra.mxu0 0.0
    %1607 = vmatprep.subr.mxu0 0.0
    %1608 = vmatpush2.msra.mxu0 0.0
    %1609 = vmatprep.subr.mxu0 0.0
    %1610 = vmatpush2.msra.mxu0 0.0
    %1611 = vmatprep.subr.mxu0 0.0
    %1612 = vmatpush2.msra.mxu0 0.0
    %1613 = vmatprep.subr.mxu0 0.0
    %1614 = vmatpush2.msra.mxu0 0.0
    %1615 = vmatprep.mubr.f32.mxu0 0.0
    %1616 = vmatmul.mubr.f32.gmra.mxu0 %v1546
    %v1617 = vpop.f32.mrf.mxu0
    %v1618 = vadd.f32 0.0, %v1617
    %v1619 = vpop.f32.mrf.mxu0
    %1620 = vmatprep.mubr.f32.mxu0 0.0
    %1621 = vmatmul.mubr.f32.gmra.mxu0 %v1549
    %v1622 = vpop.f32.mrf.mxu0
    %v1623 = vadd.f32 0.0, %v1622
    %v1624 = vpop.f32.mrf.mxu0
    %1625 = vdwg.mxu0
    %v1626 = vld [vmem:[%s39] sm:$0x1]
    %v1628 = vlaneseq
    %v1629 = vshrl.u32 %v1628, 7
    %v1630 = vsub.s32 0, %v1629
    %v1631 = vrot.slane %v1626, %v1630
    %vm1633 = vcmask 130048
    %v1635 = vsel %vm1633, %v402, 0
    %v1638 = vsel %vm1633, %v403, 0
    %v1641 = vsel %vm1633, %v404, 0
    %1643 = vmatprep.subr.mxu0 0.0
    %1644 = vmatpush1.msra.mxu0 0.0
    %1645 = vmatprep.subr.mxu0 0.0
    %1646 = vmatpush1.msra.mxu0 0.0
    %1647 = vmatprep.subr.mxu0 0.0
    %1648 = vmatpush1.msra.mxu0 0.0
    %1649 = vmatprep.subr.mxu0 0.0
    %1650 = vmatpush1.msra.mxu0 0.0
    %1651 = vmatprep.subr.mxu0 0.0
    %1652 = vmatpush1.msra.mxu0 0.0
    %1653 = vmatprep.subr.mxu0 0.0
    %1654 = vmatpush1.msra.mxu0 0.0
    %1655 = vmatprep.subr.mxu0 0.0
    %1656 = vmatpush1.msra.mxu0 0.0
    %1657 = vmatprep.subr.mxu0 0.0
    %1658 = vmatpush1.msra.mxu0 0.0
    %1659 = vmatprep.subr.mxu0 0.0
    %1660 = vmatpush1.msra.mxu0 0.0
    %1661 = vmatprep.subr.mxu0 0.0
    %1662 = vmatpush1.msra.mxu0 0.0
    %1663 = vmatprep.subr.mxu0 0.0
    %1664 = vmatpush1.msra.mxu0 0.0
    %1665 = vmatprep.subr.mxu0 0.0
    %1666 = vmatpush1.msra.mxu0 0.0
    %1667 = vmatprep.subr.mxu0 0.0
    %1668 = vmatpush1.msra.mxu0 0.0
    %1669 = vmatprep.subr.mxu0 0.0
    %1670 = vmatpush1.msra.mxu0 0.0
    %1671 = vmatprep.subr.mxu0 0.0
    %1672 = vmatpush1.msra.mxu0 %v1623
    %1673 = vmatprep.subr.mxu0 0.0
    %1674 = vmatpush1.msra.mxu0 %v1618
    %1675 = vmatprep.subr.mxu0 0.0
    %1676 = vmatpush2.msra.mxu0 0.0
    %1677 = vmatprep.subr.mxu0 0.0
    %1678 = vmatpush2.msra.mxu0 0.0
    %1679 = vmatprep.subr.mxu0 0.0
    %1680 = vmatpush2.msra.mxu0 0.0
    %1681 = vmatprep.subr.mxu0 0.0
    %1682 = vmatpush2.msra.mxu0 0.0
    %1683 = vmatprep.subr.mxu0 0.0
    %1684 = vmatpush2.msra.mxu0 0.0
    %1685 = vmatprep.subr.mxu0 0.0
    %1686 = vmatpush2.msra.mxu0 0.0
    %1687 = vmatprep.subr.mxu0 0.0
    %1688 = vmatpush2.msra.mxu0 0.0
    %1689 = vmatprep.subr.mxu0 0.0
    %1690 = vmatpush2.msra.mxu0 0.0
    %1691 = vmatprep.subr.mxu0 0.0
    %1692 = vmatpush2.msra.mxu0 0.0
    %1693 = vmatprep.subr.mxu0 0.0
    %1694 = vmatpush2.msra.mxu0 0.0
    %1695 = vmatprep.subr.mxu0 0.0
    %1696 = vmatpush2.msra.mxu0 0.0
    %1697 = vmatprep.subr.mxu0 0.0
    %1698 = vmatpush2.msra.mxu0 0.0
    %1699 = vmatprep.subr.mxu0 0.0
    %1700 = vmatpush2.msra.mxu0 0.0
    %1701 = vmatprep.subr.mxu0 0.0
    %1702 = vmatpush2.msra.mxu0 0.0
    %1703 = vmatprep.subr.mxu0 0.0
    %1704 = vmatpush2.msra.mxu0 0.0
    %1705 = vmatprep.subr.mxu0 0.0
    %1706 = vmatpush2.msra.mxu0 0.0
    %1707 = vmatprep.mubr.f32.mxu0 0.0
    %1708 = vmatmul.mubr.f32.gmra.mxu0 %v1635
    %v1709 = vpop.f32.mrf.mxu0
    %v1710 = vadd.f32 %v1631, %v1709
    %v1711 = vpop.f32.mrf.mxu0
    %1712 = vmatprep.mubr.f32.mxu0 0.0
    %1713 = vmatmul.mubr.f32.gmra.mxu0 %v1638
    %v1714 = vpop.f32.mrf.mxu0
    %v1715 = vadd.f32 %v1631, %v1714
    %v1716 = vpop.f32.mrf.mxu0
    %1717 = vmatprep.mubr.f32.mxu0 0.0
    %1718 = vmatmul.mubr.f32.gmra.mxu0 %v1641
    %v1719 = vpop.f32.mrf.mxu0
    %v1720 = vadd.f32 %v1631, %v1719
    %v1721 = vpop.f32.mrf.mxu0
    %1722 = vdwg.mxu0
    %vm1723 = vcmp.gt.f32.partialorder %v1710, 0.0
    %vm1724 = vcmp.gt.f32.partialorder %v1715, 0.0
    %vm1725 = vcmp.gt.f32.partialorder %v1720, 0.0
    %v1726 = vmul.f32 %v1710, 0.1
    %v1727 = vmul.f32 %v1715, 0.1
    %v1728 = vmul.f32 %v1720, 0.1
    %v1729 = vsel %vm1723, %v1710, %v1726
    %v1730 = vsel %vm1724, %v1715, %v1727
    %v1731 = vsel %vm1725, %v1720, %v1728
    %v1732 = vld [vmem:[#allocation20] sm:$0xff]
    %v1733 = vld [vmem:[#allocation20 + $0x8] sm:$0xff]
    %v1735 = vsel %vm1633, %v1729, 0
    %v1738 = vsel %vm1633, %v1730, 0
    %v1741 = vsel %vm1633, %v1731, 0
    %1743 = vmatprep.subr.mxu0 0.0
    %1744 = vmatpush1.msra.mxu0 0.0
    %1745 = vmatprep.subr.mxu0 0.0
    %1746 = vmatpush1.msra.mxu0 0.0
    %1747 = vmatprep.subr.mxu0 0.0
    %1748 = vmatpush1.msra.mxu0 0.0
    %1749 = vmatprep.subr.mxu0 0.0
    %1750 = vmatpush1.msra.mxu0 0.0
    %1751 = vmatprep.subr.mxu0 0.0
    %1752 = vmatpush1.msra.mxu0 0.0
    %1753 = vmatprep.subr.mxu0 0.0
    %1754 = vmatpush1.msra.mxu0 0.0
    %1755 = vmatprep.subr.mxu0 0.0
    %1756 = vmatpush1.msra.mxu0 0.0
    %1757 = vmatprep.subr.mxu0 0.0
    %1758 = vmatpush1.msra.mxu0 0.0
    %1759 = vmatprep.subr.mxu0 0.0
    %1760 = vmatpush1.msra.mxu0 0.0
    %1761 = vmatprep.subr.mxu0 0.0
    %1762 = vmatpush1.msra.mxu0 0.0
    %1763 = vmatprep.subr.mxu0 0.0
    %1764 = vmatpush1.msra.mxu0 0.0
    %1765 = vmatprep.subr.mxu0 0.0
    %1766 = vmatpush1.msra.mxu0 0.0
    %1767 = vmatprep.subr.mxu0 0.0
    %1768 = vmatpush1.msra.mxu0 0.0
    %1769 = vmatprep.subr.mxu0 0.0
    %1770 = vmatpush1.msra.mxu0 0.0
    %1771 = vmatprep.subr.mxu0 0.0
    %1772 = vmatpush1.msra.mxu0 %v1733
    %1773 = vmatprep.subr.mxu0 0.0
    %1774 = vmatpush1.msra.mxu0 %v1732
    %1775 = vmatprep.subr.mxu0 0.0
    %1776 = vmatpush2.msra.mxu0 0.0
    %1777 = vmatprep.subr.mxu0 0.0
    %1778 = vmatpush2.msra.mxu0 0.0
    %1779 = vmatprep.subr.mxu0 0.0
    %1780 = vmatpush2.msra.mxu0 0.0
    %1781 = vmatprep.subr.mxu0 0.0
    %1782 = vmatpush2.msra.mxu0 0.0
    %1783 = vmatprep.subr.mxu0 0.0
    %1784 = vmatpush2.msra.mxu0 0.0
    %1785 = vmatprep.subr.mxu0 0.0
    %1786 = vmatpush2.msra.mxu0 0.0
    %1787 = vmatprep.subr.mxu0 0.0
    %1788 = vmatpush2.msra.mxu0 0.0
    %1789 = vmatprep.subr.mxu0 0.0
    %1790 = vmatpush2.msra.mxu0 0.0
    %1791 = vmatprep.subr.mxu0 0.0
    %1792 = vmatpush2.msra.mxu0 0.0
    %1793 = vmatprep.subr.mxu0 0.0
    %1794 = vmatpush2.msra.mxu0 0.0
    %1795 = vmatprep.subr.mxu0 0.0
    %1796 = vmatpush2.msra.mxu0 0.0
    %1797 = vmatprep.subr.mxu0 0.0
    %1798 = vmatpush2.msra.mxu0 0.0
    %1799 = vmatprep.subr.mxu0 0.0
    %1800 = vmatpush2.msra.mxu0 0.0
    %1801 = vmatprep.subr.mxu0 0.0
    %1802 = vmatpush2.msra.mxu0 0.0
    %1803 = vmatprep.subr.mxu0 0.0
    %1804 = vmatpush2.msra.mxu0 0.0
    %1805 = vmatprep.subr.mxu0 0.0
    %1806 = vmatpush2.msra.mxu0 0.0
    %1807 = vmatprep.mubr.f32.mxu0 0.0
    %1808 = vmatmul.mubr.f32.gmra.mxu0 %v1735
    %v1809 = vpop.f32.mrf.mxu0
    %v1810 = vadd.f32 0.0, %v1809
    %v1811 = vpop.f32.mrf.mxu0
    %1812 = vmatprep.mubr.f32.mxu0 0.0
    %1813 = vmatmul.mubr.f32.gmra.mxu0 %v1738
    %v1814 = vpop.f32.mrf.mxu0
    %v1815 = vadd.f32 0.0, %v1814
    %v1816 = vpop.f32.mrf.mxu0
    %1817 = vmatprep.mubr.f32.mxu0 0.0
    %1818 = vmatmul.mubr.f32.gmra.mxu0 %v1741
    %v1819 = vpop.f32.mrf.mxu0
    %v1820 = vadd.f32 0.0, %v1819
    %v1821 = vpop.f32.mrf.mxu0
    %1822 = vdwg.mxu0
    %v1823 = vld [vmem:[#allocation22] sm:$0x1]
    %v1825 = vlaneseq
    %v1826 = vshrl.u32 %v1825, 7
    %v1827 = vsub.s32 0, %v1826
    %v1828 = vrot.slane %v1823, %v1827
    %vm1830 = vcmask 195584
    %v1832 = vsel %vm1830, %v400, 0
    %v1835 = vsel %vm1830, %v401, 0
    %1837 = vmatprep.subr.mxu0 0.0
    %1838 = vmatpush1.msra.mxu0 0.0
    %1839 = vmatprep.subr.mxu0 0.0
    %1840 = vmatpush1.msra.mxu0 0.0
    %1841 = vmatprep.subr.mxu0 0.0
    %1842 = vmatpush1.msra.mxu0 0.0
    %1843 = vmatprep.subr.mxu0 0.0
    %1844 = vmatpush1.msra.mxu0 0.0
    %1845 = vmatprep.subr.mxu0 0.0
    %1846 = vmatpush1.msra.mxu0 0.0
    %1847 = vmatprep.subr.mxu0 0.0
    %1848 = vmatpush1.msra.mxu0 0.0
    %1849 = vmatprep.subr.mxu0 0.0
    %1850 = vmatpush1.msra.mxu0 0.0
    %1851 = vmatprep.subr.mxu0 0.0
    %1852 = vmatpush1.msra.mxu0 0.0
    %1853 = vmatprep.subr.mxu0 0.0
    %1854 = vmatpush1.msra.mxu0 0.0
    %1855 = vmatprep.subr.mxu0 0.0
    %1856 = vmatpush1.msra.mxu0 0.0
    %1857 = vmatprep.subr.mxu0 0.0
    %1858 = vmatpush1.msra.mxu0 0.0
    %1859 = vmatprep.subr.mxu0 0.0
    %1860 = vmatpush1.msra.mxu0 0.0
    %1861 = vmatprep.subr.mxu0 0.0
    %1862 = vmatpush1.msra.mxu0 0.0
    %1863 = vmatprep.subr.mxu0 0.0
    %1864 = vmatpush1.msra.mxu0 %v1820
    %1865 = vmatprep.subr.mxu0 0.0
    %1866 = vmatpush1.msra.mxu0 %v1815
    %1867 = vmatprep.subr.mxu0 0.0
    %1868 = vmatpush1.msra.mxu0 %v1810
    %1869 = vmatprep.subr.mxu0 0.0
    %1870 = vmatpush2.msra.mxu0 0.0
    %1871 = vmatprep.subr.mxu0 0.0
    %1872 = vmatpush2.msra.mxu0 0.0
    %1873 = vmatprep.subr.mxu0 0.0
    %1874 = vmatpush2.msra.mxu0 0.0
    %1875 = vmatprep.subr.mxu0 0.0
    %1876 = vmatpush2.msra.mxu0 0.0
    %1877 = vmatprep.subr.mxu0 0.0
    %1878 = vmatpush2.msra.mxu0 0.0
    %1879 = vmatprep.subr.mxu0 0.0
    %1880 = vmatpush2.msra.mxu0 0.0
    %1881 = vmatprep.subr.mxu0 0.0
    %1882 = vmatpush2.msra.mxu0 0.0
    %1883 = vmatprep.subr.mxu0 0.0
    %1884 = vmatpush2.msra.mxu0 0.0
    %1885 = vmatprep.subr.mxu0 0.0
    %1886 = vmatpush2.msra.mxu0 0.0
    %1887 = vmatprep.subr.mxu0 0.0
    %1888 = vmatpush2.msra.mxu0 0.0
    %1889 = vmatprep.subr.mxu0 0.0
    %1890 = vmatpush2.msra.mxu0 0.0
    %1891 = vmatprep.subr.mxu0 0.0
    %1892 = vmatpush2.msra.mxu0 0.0
    %1893 = vmatprep.subr.mxu0 0.0
    %1894 = vmatpush2.msra.mxu0 0.0
    %1895 = vmatprep.subr.mxu0 0.0
    %1896 = vmatpush2.msra.mxu0 0.0
    %1897 = vmatprep.subr.mxu0 0.0
    %1898 = vmatpush2.msra.mxu0 0.0
    %1899 = vmatprep.subr.mxu0 0.0
    %1900 = vmatpush2.msra.mxu0 0.0
    %1901 = vmatprep.mubr.f32.mxu0 0.0
    %1902 = vmatmul.mubr.f32.gmra.mxu0 %v1832
    %v1903 = vpop.f32.mrf.mxu0
    %v1904 = vadd.f32 %v1828, %v1903
    %v1905 = vpop.f32.mrf.mxu0
    %1906 = vmatprep.mubr.f32.mxu0 0.0
    %1907 = vmatmul.mubr.f32.gmra.mxu0 %v1835
    %v1908 = vpop.f32.mrf.mxu0
    %v1909 = vadd.f32 %v1828, %v1908
    %v1910 = vpop.f32.mrf.mxu0
    %1911 = vdwg.mxu0
    %vm1912 = vcmp.gt.f32.partialorder %v1904, 0.0
    %vm1913 = vcmp.gt.f32.partialorder %v1909, 0.0
    %v1914 = vmul.f32 %v1904, 0.1
    %v1915 = vmul.f32 %v1909, 0.1
    %v1916 = vsel %vm1912, %v1904, %v1914
    %v1917 = vsel %vm1913, %v1909, %v1915
    %v1918 = vld [vmem:[%s53] sm:$0xff]
    %v1919 = vld [vmem:[%s53 + $0x8] sm:$0xff]
    %v1920 = vld [vmem:[%s53 + $0x10] sm:$0xff]
    %v1921 = vld [vmem:[%s53 + $0x18] sm:$0xff]
    %v1922 = vld [vmem:[#allocation26] sm:$0xff]
    %v1923 = vld [vmem:[#allocation26 + $0x8] sm:$0xff]
    %v1924 = vld [vmem:[#allocation26 + $0x10] sm:$0xff]
    %v1925 = vld [vmem:[#allocation26 + $0x18] sm:$0xff]
    %1926 = vmatprep.subr.mxu0 0.0
    %1927 = vmatpush1.msra.mxu0 0.0
    %1928 = vmatprep.subr.mxu0 0.0
    %1929 = vmatpush1.msra.mxu0 0.0
    %1930 = vmatprep.subr.mxu0 0.0
    %1931 = vmatpush1.msra.mxu0 0.0
    %1932 = vmatprep.subr.mxu0 0.0
    %1933 = vmatpush1.msra.mxu0 0.0
    %1934 = vmatprep.subr.mxu0 0.0
    %1935 = vmatpush1.msra.mxu0 0.0
    %1936 = vmatprep.subr.mxu0 0.0
    %1937 = vmatpush1.msra.mxu0 0.0
    %1938 = vmatprep.subr.mxu0 0.0
    %1939 = vmatpush1.msra.mxu0 0.0
    %1940 = vmatprep.subr.mxu0 0.0
    %1941 = vmatpush1.msra.mxu0 0.0
    %1942 = vmatprep.subr.mxu0 0.0
    %1943 = vmatpush1.msra.mxu0 0.0
    %1944 = vmatprep.subr.mxu0 0.0
    %1945 = vmatpush1.msra.mxu0 0.0
    %1946 = vmatprep.subr.mxu0 0.0
    %1947 = vmatpush1.msra.mxu0 0.0
    %1948 = vmatprep.subr.mxu0 0.0
    %1949 = vmatpush1.msra.mxu0 0.0
    %1950 = vmatprep.subr.mxu0 0.0
    %1951 = vmatpush1.msra.mxu0 %v1925
    %1952 = vmatprep.subr.mxu0 0.0
    %1953 = vmatpush1.msra.mxu0 %v1924
    %1954 = vmatprep.subr.mxu0 0.0
    %1955 = vmatpush1.msra.mxu0 %v1923
    %1956 = vmatprep.subr.mxu0 0.0
    %1957 = vmatpush1.msra.mxu0 %v1922
    %1958 = vmatprep.subr.mxu0 0.0
    %1959 = vmatpush2.msra.mxu0 0.0
    %1960 = vmatprep.subr.mxu0 0.0
    %1961 = vmatpush2.msra.mxu0 0.0
    %1962 = vmatprep.subr.mxu0 0.0
    %1963 = vmatpush2.msra.mxu0 0.0
    %1964 = vmatprep.subr.mxu0 0.0
    %1965 = vmatpush2.msra.mxu0 0.0
    %1966 = vmatprep.subr.mxu0 0.0
    %1967 = vmatpush2.msra.mxu0 0.0
    %1968 = vmatprep.subr.mxu0 0.0
    %1969 = vmatpush2.msra.mxu0 0.0
    %1970 = vmatprep.subr.mxu0 0.0
    %1971 = vmatpush2.msra.mxu0 0.0
    %1972 = vmatprep.subr.mxu0 0.0
    %1973 = vmatpush2.msra.mxu0 0.0
    %1974 = vmatprep.subr.mxu0 0.0
    %1975 = vmatpush2.msra.mxu0 0.0
    %1976 = vmatprep.subr.mxu0 0.0
    %1977 = vmatpush2.msra.mxu0 0.0
    %1978 = vmatprep.subr.mxu0 0.0
    %1979 = vmatpush2.msra.mxu0 0.0
    %1980 = vmatprep.subr.mxu0 0.0
    %1981 = vmatpush2.msra.mxu0 0.0
    %1982 = vmatprep.subr.mxu0 0.0
    %1983 = vmatpush2.msra.mxu0 0.0
    %1984 = vmatprep.subr.mxu0 0.0
    %1985 = vmatpush2.msra.mxu0 0.0
    %1986 = vmatprep.subr.mxu0 0.0
    %1987 = vmatpush2.msra.mxu0 0.0
    %1988 = vmatprep.subr.mxu0 0.0
    %1989 = vmatpush2.msra.mxu0 0.0
    %1990 = vmatprep.mubr.f32.mxu0 0.0
    %1991 = vmatmul.mubr.f32.gmra.mxu0 %v1546
    %v1992 = vpop.f32.mrf.mxu0
    %v1993 = vadd.f32 0.0, %v1992
    %v1994 = vpop.f32.mrf.mxu0
    %1995 = vmatprep.mubr.f32.mxu0 0.0
    %1996 = vmatmul.mubr.f32.gmra.mxu0 %v1549
    %v1997 = vpop.f32.mrf.mxu0
    %v1998 = vadd.f32 0.0, %v1997
    %v1999 = vpop.f32.mrf.mxu0
    %2000 = vdwg.mxu0
    %v2002 = vsel %vm1544, %v1916, 0
    %v2005 = vsel %vm1544, %v1917, 0
    %2007 = vmatprep.subr.mxu0 0.0
    %2008 = vmatpush1.msra.mxu0 0.0
    %2009 = vmatprep.subr.mxu0 0.0
    %2010 = vmatpush1.msra.mxu0 0.0
    %2011 = vmatprep.subr.mxu0 0.0
    %2012 = vmatpush1.msra.mxu0 0.0
    %2013 = vmatprep.subr.mxu0 0.0
    %2014 = vmatpush1.msra.mxu0 0.0
    %2015 = vmatprep.subr.mxu0 0.0
    %2016 = vmatpush1.msra.mxu0 0.0
    %2017 = vmatprep.subr.mxu0 0.0
    %2018 = vmatpush1.msra.mxu0 0.0
    %2019 = vmatprep.subr.mxu0 0.0
    %2020 = vmatpush1.msra.mxu0 0.0
    %2021 = vmatprep.subr.mxu0 0.0
    %2022 = vmatpush1.msra.mxu0 0.0
    %2023 = vmatprep.subr.mxu0 0.0
    %2024 = vmatpush1.msra.mxu0 0.0
    %2025 = vmatprep.subr.mxu0 0.0
    %2026 = vmatpush1.msra.mxu0 0.0
    %2027 = vmatprep.subr.mxu0 0.0
    %2028 = vmatpush1.msra.mxu0 0.0
    %2029 = vmatprep.subr.mxu0 0.0
    %2030 = vmatpush1.msra.mxu0 0.0
    %2031 = vmatprep.subr.mxu0 0.0
    %2032 = vmatpush1.msra.mxu0 %v1921
    %2033 = vmatprep.subr.mxu0 0.0
    %2034 = vmatpush1.msra.mxu0 %v1920
    %2035 = vmatprep.subr.mxu0 0.0
    %2036 = vmatpush1.msra.mxu0 %v1919
    %2037 = vmatprep.subr.mxu0 0.0
    %2038 = vmatpush1.msra.mxu0 %v1918
    %2039 = vmatprep.subr.mxu0 0.0
    %2040 = vmatpush2.msra.mxu0 0.0
    %2041 = vmatprep.subr.mxu0 0.0
    %2042 = vmatpush2.msra.mxu0 0.0
    %2043 = vmatprep.subr.mxu0 0.0
    %2044 = vmatpush2.msra.mxu0 0.0
    %2045 = vmatprep.subr.mxu0 0.0
    %2046 = vmatpush2.msra.mxu0 0.0
    %2047 = vmatprep.subr.mxu0 0.0
    %2048 = vmatpush2.msra.mxu0 0.0
    %2049 = vmatprep.subr.mxu0 0.0
    %2050 = vmatpush2.msra.mxu0 0.0
    %2051 = vmatprep.subr.mxu0 0.0
    %2052 = vmatpush2.msra.mxu0 0.0
    %2053 = vmatprep.subr.mxu0 0.0
    %2054 = vmatpush2.msra.mxu0 0.0
    %2055 = vmatprep.subr.mxu0 0.0
    %2056 = vmatpush2.msra.mxu0 0.0
    %2057 = vmatprep.subr.mxu0 0.0
    %2058 = vmatpush2.msra.mxu0 0.0
    %2059 = vmatprep.subr.mxu0 0.0
    %2060 = vmatpush2.msra.mxu0 0.0
    %2061 = vmatprep.subr.mxu0 0.0
    %2062 = vmatpush2.msra.mxu0 0.0
    %2063 = vmatprep.subr.mxu0 0.0
    %2064 = vmatpush2.msra.mxu0 0.0
    %2065 = vmatprep.subr.mxu0 0.0
    %2066 = vmatpush2.msra.mxu0 0.0
    %2067 = vmatprep.subr.mxu0 0.0
    %2068 = vmatpush2.msra.mxu0 0.0
    %2069 = vmatprep.subr.mxu0 0.0
    %2070 = vmatpush2.msra.mxu0 0.0
    %2071 = vmatprep.mubr.f32.mxu0 0.0
    %2072 = vmatmul.mubr.f32.gmra.mxu0 %v2002
    %v2073 = vpop.f32.mrf.mxu0
    %v2074 = vadd.f32 %v1993, %v2073
    %v2075 = vpop.f32.mrf.mxu0
    %2076 = vmatprep.mubr.f32.mxu0 0.0
    %2077 = vmatmul.mubr.f32.gmra.mxu0 %v2005
    %v2078 = vpop.f32.mrf.mxu0
    %v2079 = vadd.f32 %v1998, %v2078
    %v2080 = vpop.f32.mrf.mxu0
    %2081 = vdwg.mxu0
    %v2082 = vld [vmem:[#allocation28] sm:$0x1]
    %v2084 = vlaneseq
    %v2085 = vshrl.u32 %v2084, 7
    %v2086 = vsub.s32 0, %v2085
    %v2087 = vrot.slane %v2082, %v2086
    %v2089 = vadd.f32 %v2074, %v2087
    %v2090 = vadd.f32 %v2079, %v2087
    %2091 = vst.msk [vmem:[#allocation34] sm:$0xff] %vm1544, %v2089
    %2092 = vst.msk [vmem:[#allocation34 + $0x8] sm:$0xff] %vm1544, %v2090
    %v2093 = vld [vmem:[%s41] sm:$0xff]
    %v2094 = vld [vmem:[%s41 + $0x8] sm:$0xff]
    %v2095 = vld [vmem:[%s41 + $0x10] sm:$0xff]
    %v2096 = vld [vmem:[%s41 + $0x18] sm:$0xff]
    %v2098 = vsel %vm1544, %v418, 0
    %v2101 = vsel %vm1544, %v419, 0
    %v2104 = vsel %vm1544, %v420, 0
    %2106 = vmatprep.subr.mxu0 0.0
    %2107 = vmatpush1.msra.mxu0 0.0
    %2108 = vmatprep.subr.mxu0 0.0
    %2109 = vmatpush1.msra.mxu0 0.0
    %2110 = vmatprep.subr.mxu0 0.0
    %2111 = vmatpush1.msra.mxu0 0.0
    %2112 = vmatprep.subr.mxu0 0.0
    %2113 = vmatpush1.msra.mxu0 0.0
    %2114 = vmatprep.subr.mxu0 0.0
    %2115 = vmatpush1.msra.mxu0 0.0
    %2116 = vmatprep.subr.mxu0 0.0
    %2117 = vmatpush1.msra.mxu0 0.0
    %2118 = vmatprep.subr.mxu0 0.0
    %2119 = vmatpush1.msra.mxu0 0.0
    %2120 = vmatprep.subr.mxu0 0.0
    %2121 = vmatpush1.msra.mxu0 0.0
    %2122 = vmatprep.subr.mxu0 0.0
    %2123 = vmatpush1.msra.mxu0 0.0
    %2124 = vmatprep.subr.mxu0 0.0
    %2125 = vmatpush1.msra.mxu0 0.0
    %2126 = vmatprep.subr.mxu0 0.0
    %2127 = vmatpush1.msra.mxu0 0.0
    %2128 = vmatprep.subr.mxu0 0.0
    %2129 = vmatpush1.msra.mxu0 0.0
    %2130 = vmatprep.subr.mxu0 0.0
    %2131 = vmatpush1.msra.mxu0 %v2096
    %2132 = vmatprep.subr.mxu0 0.0
    %2133 = vmatpush1.msra.mxu0 %v2095
    %2134 = vmatprep.subr.mxu0 0.0
    %2135 = vmatpush1.msra.mxu0 %v2094
    %2136 = vmatprep.subr.mxu0 0.0
    %2137 = vmatpush1.msra.mxu0 %v2093
    %2138 = vmatprep.subr.mxu0 0.0
    %2139 = vmatpush2.msra.mxu0 0.0
    %2140 = vmatprep.subr.mxu0 0.0
    %2141 = vmatpush2.msra.mxu0 0.0
    %2142 = vmatprep.subr.mxu0 0.0
    %2143 = vmatpush2.msra.mxu0 0.0
    %2144 = vmatprep.subr.mxu0 0.0
    %2145 = vmatpush2.msra.mxu0 0.0
    %2146 = vmatprep.subr.mxu0 0.0
    %2147 = vmatpush2.msra.mxu0 0.0
    %2148 = vmatprep.subr.mxu0 0.0
    %2149 = vmatpush2.msra.mxu0 0.0
    %2150 = vmatprep.subr.mxu0 0.0
    %2151 = vmatpush2.msra.mxu0 0.0
    %2152 = vmatprep.subr.mxu0 0.0
    %2153 = vmatpush2.msra.mxu0 0.0
    %2154 = vmatprep.subr.mxu0 0.0
    %2155 = vmatpush2.msra.mxu0 0.0
    %2156 = vmatprep.subr.mxu0 0.0
    %2157 = vmatpush2.msra.mxu0 0.0
    %2158 = vmatprep.subr.mxu0 0.0
    %2159 = vmatpush2.msra.mxu0 0.0
    %2160 = vmatprep.subr.mxu0 0.0
    %2161 = vmatpush2.msra.mxu0 0.0
    %2162 = vmatprep.subr.mxu0 0.0
    %2163 = vmatpush2.msra.mxu0 0.0
    %2164 = vmatprep.subr.mxu0 0.0
    %2165 = vmatpush2.msra.mxu0 0.0
    %2166 = vmatprep.subr.mxu0 0.0
    %2167 = vmatpush2.msra.mxu0 0.0
    %2168 = vmatprep.subr.mxu0 0.0
    %2169 = vmatpush2.msra.mxu0 0.0
    %2170 = vmatprep.mubr.f32.mxu0 0.0
    %2171 = vmatmul.mubr.f32.gmra.mxu0 %v2098
    %v2172 = vpop.f32.mrf.mxu0
    %v2173 = vadd.f32 0.0, %v2172
    %v2174 = vpop.f32.mrf.mxu0
    %2175 = vmatprep.mubr.f32.mxu0 0.0
    %2176 = vmatmul.mubr.f32.gmra.mxu0 %v2101
    %v2177 = vpop.f32.mrf.mxu0
    %v2178 = vadd.f32 0.0, %v2177
    %v2179 = vpop.f32.mrf.mxu0
    %2180 = vmatprep.mubr.f32.mxu0 0.0
    %2181 = vmatmul.mubr.f32.gmra.mxu0 %v2104
    %v2182 = vpop.f32.mrf.mxu0
    %v2183 = vadd.f32 0.0, %v2182
    %v2184 = vpop.f32.mrf.mxu0
    %2185 = vdwg.mxu0
    %v2186 = vld [vmem:[#allocation19] sm:$0x1]
    %v2188 = vlaneseq
    %v2189 = vshrl.u32 %v2188, 7
    %v2190 = vsub.s32 0, %v2189
    %v2191 = vrot.slane %v2186, %v2190
    %2193 = vmatprep.subr.mxu0 0.0
    %2194 = vmatpush1.msra.mxu0 0.0
    %2195 = vmatprep.subr.mxu0 0.0
    %2196 = vmatpush1.msra.mxu0 0.0
    %2197 = vmatprep.subr.mxu0 0.0
    %2198 = vmatpush1.msra.mxu0 0.0
    %2199 = vmatprep.subr.mxu0 0.0
    %2200 = vmatpush1.msra.mxu0 0.0
    %2201 = vmatprep.subr.mxu0 0.0
    %2202 = vmatpush1.msra.mxu0 0.0
    %2203 = vmatprep.subr.mxu0 0.0
    %2204 = vmatpush1.msra.mxu0 0.0
    %2205 = vmatprep.subr.mxu0 0.0
    %2206 = vmatpush1.msra.mxu0 0.0
    %2207 = vmatprep.subr.mxu0 0.0
    %2208 = vmatpush1.msra.mxu0 0.0
    %2209 = vmatprep.subr.mxu0 0.0
    %2210 = vmatpush1.msra.mxu0 0.0
    %2211 = vmatprep.subr.mxu0 0.0
    %2212 = vmatpush1.msra.mxu0 0.0
    %2213 = vmatprep.subr.mxu0 0.0
    %2214 = vmatpush1.msra.mxu0 0.0
    %2215 = vmatprep.subr.mxu0 0.0
    %2216 = vmatpush1.msra.mxu0 0.0
    %2217 = vmatprep.subr.mxu0 0.0
    %2218 = vmatpush1.msra.mxu0 0.0
    %2219 = vmatprep.subr.mxu0 0.0
    %2220 = vmatpush1.msra.mxu0 %v2183
    %2221 = vmatprep.subr.mxu0 0.0
    %2222 = vmatpush1.msra.mxu0 %v2178
    %2223 = vmatprep.subr.mxu0 0.0
    %2224 = vmatpush1.msra.mxu0 %v2173
    %2225 = vmatprep.subr.mxu0 0.0
    %2226 = vmatpush2.msra.mxu0 0.0
    %2227 = vmatprep.subr.mxu0 0.0
    %2228 = vmatpush2.msra.mxu0 0.0
    %2229 = vmatprep.subr.mxu0 0.0
    %2230 = vmatpush2.msra.mxu0 0.0
    %2231 = vmatprep.subr.mxu0 0.0
    %2232 = vmatpush2.msra.mxu0 0.0
    %2233 = vmatprep.subr.mxu0 0.0
    %2234 = vmatpush2.msra.mxu0 0.0
    %2235 = vmatprep.subr.mxu0 0.0
    %2236 = vmatpush2.msra.mxu0 0.0
    %2237 = vmatprep.subr.mxu0 0.0
    %2238 = vmatpush2.msra.mxu0 0.0
    %2239 = vmatprep.subr.mxu0 0.0
    %2240 = vmatpush2.msra.mxu0 0.0
    %2241 = vmatprep.subr.mxu0 0.0
    %2242 = vmatpush2.msra.mxu0 0.0
    %2243 = vmatprep.subr.mxu0 0.0
    %2244 = vmatpush2.msra.mxu0 0.0
    %2245 = vmatprep.subr.mxu0 0.0
    %2246 = vmatpush2.msra.mxu0 0.0
    %2247 = vmatprep.subr.mxu0 0.0
    %2248 = vmatpush2.msra.mxu0 0.0
    %2249 = vmatprep.subr.mxu0 0.0
    %2250 = vmatpush2.msra.mxu0 0.0
    %2251 = vmatprep.subr.mxu0 0.0
    %2252 = vmatpush2.msra.mxu0 0.0
    %2253 = vmatprep.subr.mxu0 0.0
    %2254 = vmatpush2.msra.mxu0 0.0
    %2255 = vmatprep.subr.mxu0 0.0
    %2256 = vmatpush2.msra.mxu0 0.0
    %2257 = vmatprep.mubr.f32.mxu0 0.0
    %2258 = vmatmul.mubr.f32.gmra.mxu0 %v1832
    %v2259 = vpop.f32.mrf.mxu0
    %v2260 = vadd.f32 %v2191, %v2259
    %v2261 = vpop.f32.mrf.mxu0
    %2262 = vmatprep.mubr.f32.mxu0 0.0
    %2263 = vmatmul.mubr.f32.gmra.mxu0 %v1835
    %v2264 = vpop.f32.mrf.mxu0
    %v2265 = vadd.f32 %v2191, %v2264
    %v2266 = vpop.f32.mrf.mxu0
    %2267 = vdwg.mxu0
    %vm2268 = vcmp.gt.f32.partialorder %v2260, 0.0
    %vm2269 = vcmp.gt.f32.partialorder %v2265, 0.0
    %v2270 = vmul.f32 %v2260, 0.1
    %v2271 = vmul.f32 %v2265, 0.1
    %v2272 = vsel %vm2268, %v2260, %v2270
    %v2273 = vsel %vm2269, %v2265, %v2271
    %v2274 = vld [vmem:[#allocation23] sm:$0xff]
    %v2275 = vld [vmem:[#allocation23 + $0x8] sm:$0xff]
    %v2277 = vsel %vm1633, %v2272, 0
    %v2280 = vsel %vm1633, %v2273, 0
    %2282 = vmatprep.subr.mxu0 0.0
    %2283 = vmatpush1.msra.mxu0 0.0
    %2284 = vmatprep.subr.mxu0 0.0
    %2285 = vmatpush1.msra.mxu0 0.0
    %2286 = vmatprep.subr.mxu0 0.0
    %2287 = vmatpush1.msra.mxu0 0.0
    %2288 = vmatprep.subr.mxu0 0.0
    %2289 = vmatpush1.msra.mxu0 0.0
    %2290 = vmatprep.subr.mxu0 0.0
    %2291 = vmatpush1.msra.mxu0 0.0
    %2292 = vmatprep.subr.mxu0 0.0
    %2293 = vmatpush1.msra.mxu0 0.0
    %2294 = vmatprep.subr.mxu0 0.0
    %2295 = vmatpush1.msra.mxu0 0.0
    %2296 = vmatprep.subr.mxu0 0.0
    %2297 = vmatpush1.msra.mxu0 0.0
    %2298 = vmatprep.subr.mxu0 0.0
    %2299 = vmatpush1.msra.mxu0 0.0
    %2300 = vmatprep.subr.mxu0 0.0
    %2301 = vmatpush1.msra.mxu0 0.0
    %2302 = vmatprep.subr.mxu0 0.0
    %2303 = vmatpush1.msra.mxu0 0.0
    %2304 = vmatprep.subr.mxu0 0.0
    %2305 = vmatpush1.msra.mxu0 0.0
    %2306 = vmatprep.subr.mxu0 0.0
    %2307 = vmatpush1.msra.mxu0 0.0
    %2308 = vmatprep.subr.mxu0 0.0
    %2309 = vmatpush1.msra.mxu0 0.0
    %2310 = vmatprep.subr.mxu0 0.0
    %2311 = vmatpush1.msra.mxu0 %v2275
    %2312 = vmatprep.subr.mxu0 0.0
    %2313 = vmatpush1.msra.mxu0 %v2274
    %2314 = vmatprep.subr.mxu0 0.0
    %2315 = vmatpush2.msra.mxu0 0.0
    %2316 = vmatprep.subr.mxu0 0.0
    %2317 = vmatpush2.msra.mxu0 0.0
    %2318 = vmatprep.subr.mxu0 0.0
    %2319 = vmatpush2.msra.mxu0 0.0
    %2320 = vmatprep.subr.mxu0 0.0
    %2321 = vmatpush2.msra.mxu0 0.0
    %2322 = vmatprep.subr.mxu0 0.0
    %2323 = vmatpush2.msra.mxu0 0.0
    %2324 = vmatprep.subr.mxu0 0.0
    %2325 = vmatpush2.msra.mxu0 0.0
    %2326 = vmatprep.subr.mxu0 0.0
    %2327 = vmatpush2.msra.mxu0 0.0
    %2328 = vmatprep.subr.mxu0 0.0
    %2329 = vmatpush2.msra.mxu0 0.0
    %2330 = vmatprep.subr.mxu0 0.0
    %2331 = vmatpush2.msra.mxu0 0.0
    %2332 = vmatprep.subr.mxu0 0.0
    %2333 = vmatpush2.msra.mxu0 0.0
    %2334 = vmatprep.subr.mxu0 0.0
    %2335 = vmatpush2.msra.mxu0 0.0
    %2336 = vmatprep.subr.mxu0 0.0
    %2337 = vmatpush2.msra.mxu0 0.0
    %2338 = vmatprep.subr.mxu0 0.0
    %2339 = vmatpush2.msra.mxu0 0.0
    %2340 = vmatprep.subr.mxu0 0.0
    %2341 = vmatpush2.msra.mxu0 0.0
    %2342 = vmatprep.subr.mxu0 0.0
    %2343 = vmatpush2.msra.mxu0 0.0
    %2344 = vmatprep.subr.mxu0 0.0
    %2345 = vmatpush2.msra.mxu0 0.0
    %2346 = vmatprep.mubr.f32.mxu0 0.0
    %2347 = vmatmul.mubr.f32.gmra.mxu0 %v2277
    %v2348 = vpop.f32.mrf.mxu0
    %v2349 = vadd.f32 0.0, %v2348
    %v2350 = vpop.f32.mrf.mxu0
    %2351 = vmatprep.mubr.f32.mxu0 0.0
    %2352 = vmatmul.mubr.f32.gmra.mxu0 %v2280
    %v2353 = vpop.f32.mrf.mxu0
    %v2354 = vadd.f32 0.0, %v2353
    %v2355 = vpop.f32.mrf.mxu0
    %2356 = vdwg.mxu0
    %v2357 = vld [vmem:[#allocation25] sm:$0x1]
    %v2359 = vlaneseq
    %v2360 = vshrl.u32 %v2359, 7
    %v2361 = vsub.s32 0, %v2360
    %v2362 = vrot.slane %v2357, %v2361
    %2364 = vmatprep.subr.mxu0 0.0
    %2365 = vmatpush1.msra.mxu0 0.0
    %2366 = vmatprep.subr.mxu0 0.0
    %2367 = vmatpush1.msra.mxu0 0.0
    %2368 = vmatprep.subr.mxu0 0.0
    %2369 = vmatpush1.msra.mxu0 0.0
    %2370 = vmatprep.subr.mxu0 0.0
    %2371 = vmatpush1.msra.mxu0 0.0
    %2372 = vmatprep.subr.mxu0 0.0
    %2373 = vmatpush1.msra.mxu0 0.0
    %2374 = vmatprep.subr.mxu0 0.0
    %2375 = vmatpush1.msra.mxu0 0.0
    %2376 = vmatprep.subr.mxu0 0.0
    %2377 = vmatpush1.msra.mxu0 0.0
    %2378 = vmatprep.subr.mxu0 0.0
    %2379 = vmatpush1.msra.mxu0 0.0
    %2380 = vmatprep.subr.mxu0 0.0
    %2381 = vmatpush1.msra.mxu0 0.0
    %2382 = vmatprep.subr.mxu0 0.0
    %2383 = vmatpush1.msra.mxu0 0.0
    %2384 = vmatprep.subr.mxu0 0.0
    %2385 = vmatpush1.msra.mxu0 0.0
    %2386 = vmatprep.subr.mxu0 0.0
    %2387 = vmatpush1.msra.mxu0 0.0
    %2388 = vmatprep.subr.mxu0 0.0
    %2389 = vmatpush1.msra.mxu0 0.0
    %2390 = vmatprep.subr.mxu0 0.0
    %2391 = vmatpush1.msra.mxu0 0.0
    %2392 = vmatprep.subr.mxu0 0.0
    %2393 = vmatpush1.msra.mxu0 %v2354
    %2394 = vmatprep.subr.mxu0 0.0
    %2395 = vmatpush1.msra.mxu0 %v2349
    %2396 = vmatprep.subr.mxu0 0.0
    %2397 = vmatpush2.msra.mxu0 0.0
    %2398 = vmatprep.subr.mxu0 0.0
    %2399 = vmatpush2.msra.mxu0 0.0
    %2400 = vmatprep.subr.mxu0 0.0
    %2401 = vmatpush2.msra.mxu0 0.0
    %2402 = vmatprep.subr.mxu0 0.0
    %2403 = vmatpush2.msra.mxu0 0.0
    %2404 = vmatprep.subr.mxu0 0.0
    %2405 = vmatpush2.msra.mxu0 0.0
    %2406 = vmatprep.subr.mxu0 0.0
    %2407 = vmatpush2.msra.mxu0 0.0
    %2408 = vmatprep.subr.mxu0 0.0
    %2409 = vmatpush2.msra.mxu0 0.0
    %2410 = vmatprep.subr.mxu0 0.0
    %2411 = vmatpush2.msra.mxu0 0.0
    %2412 = vmatprep.subr.mxu0 0.0
    %2413 = vmatpush2.msra.mxu0 0.0
    %2414 = vmatprep.subr.mxu0 0.0
    %2415 = vmatpush2.msra.mxu0 0.0
    %2416 = vmatprep.subr.mxu0 0.0
    %2417 = vmatpush2.msra.mxu0 0.0
    %2418 = vmatprep.subr.mxu0 0.0
    %2419 = vmatpush2.msra.mxu0 0.0
    %2420 = vmatprep.subr.mxu0 0.0
    %2421 = vmatpush2.msra.mxu0 0.0
    %2422 = vmatprep.subr.mxu0 0.0
    %2423 = vmatpush2.msra.mxu0 0.0
    %2424 = vmatprep.subr.mxu0 0.0
    %2425 = vmatpush2.msra.mxu0 0.0
    %2426 = vmatprep.subr.mxu0 0.0
    %2427 = vmatpush2.msra.mxu0 0.0
    %2428 = vmatprep.mubr.f32.mxu0 0.0
    %2429 = vmatmul.mubr.f32.gmra.mxu0 %v1635
    %v2430 = vpop.f32.mrf.mxu0
    %v2431 = vadd.f32 %v2362, %v2430
    %v2432 = vpop.f32.mrf.mxu0
    %2433 = vmatprep.mubr.f32.mxu0 0.0
    %2434 = vmatmul.mubr.f32.gmra.mxu0 %v1638
    %v2435 = vpop.f32.mrf.mxu0
    %v2436 = vadd.f32 %v2362, %v2435
    %v2437 = vpop.f32.mrf.mxu0
    %2438 = vmatprep.mubr.f32.mxu0 0.0
    %2439 = vmatmul.mubr.f32.gmra.mxu0 %v1641
    %v2440 = vpop.f32.mrf.mxu0
    %v2441 = vadd.f32 %v2362, %v2440
    %v2442 = vpop.f32.mrf.mxu0
    %2443 = vdwg.mxu0
    %vm2444 = vcmp.gt.f32.partialorder %v2431, 0.0
    %vm2445 = vcmp.gt.f32.partialorder %v2436, 0.0
    %vm2446 = vcmp.gt.f32.partialorder %v2441, 0.0
    %v2447 = vmul.f32 %v2431, 0.1
    %v2448 = vmul.f32 %v2436, 0.1
    %v2449 = vmul.f32 %v2441, 0.1
    %v2450 = vsel %vm2444, %v2431, %v2447
    %v2451 = vsel %vm2445, %v2436, %v2448
    %v2452 = vsel %vm2446, %v2441, %v2449
    %v2453 = vld [vmem:[#allocation29] sm:$0xff]
    %v2454 = vld [vmem:[#allocation29 + $0x8] sm:$0xff]
    %v2455 = vld [vmem:[#allocation29 + $0x10] sm:$0xff]
    %v2456 = vld [vmem:[#allocation29 + $0x18] sm:$0xff]
    %v2457 = vld [vmem:[#allocation31] sm:$0xff]
    %v2458 = vld [vmem:[#allocation31 + $0x8] sm:$0xff]
    %v2459 = vld [vmem:[#allocation31 + $0x10] sm:$0xff]
    %v2460 = vld [vmem:[#allocation31 + $0x18] sm:$0xff]
    %2461 = vmatprep.subr.mxu0 0.0
    %2462 = vmatpush1.msra.mxu0 0.0
    %2463 = vmatprep.subr.mxu0 0.0
    %2464 = vmatpush1.msra.mxu0 0.0
    %2465 = vmatprep.subr.mxu0 0.0
    %2466 = vmatpush1.msra.mxu0 0.0
    %2467 = vmatprep.subr.mxu0 0.0
    %2468 = vmatpush1.msra.mxu0 0.0
    %2469 = vmatprep.subr.mxu0 0.0
    %2470 = vmatpush1.msra.mxu0 0.0
    %2471 = vmatprep.subr.mxu0 0.0
    %2472 = vmatpush1.msra.mxu0 0.0
    %2473 = vmatprep.subr.mxu0 0.0
    %2474 = vmatpush1.msra.mxu0 0.0
    %2475 = vmatprep.subr.mxu0 0.0
    %2476 = vmatpush1.msra.mxu0 0.0
    %2477 = vmatprep.subr.mxu0 0.0
    %2478 = vmatpush1.msra.mxu0 0.0
    %2479 = vmatprep.subr.mxu0 0.0
    %2480 = vmatpush1.msra.mxu0 0.0
    %2481 = vmatprep.subr.mxu0 0.0
    %2482 = vmatpush1.msra.mxu0 0.0
    %2483 = vmatprep.subr.mxu0 0.0
    %2484 = vmatpush1.msra.mxu0 0.0
    %2485 = vmatprep.subr.mxu0 0.0
    %2486 = vmatpush1.msra.mxu0 %v2460
    %2487 = vmatprep.subr.mxu0 0.0
    %2488 = vmatpush1.msra.mxu0 %v2459
    %2489 = vmatprep.subr.mxu0 0.0
    %2490 = vmatpush1.msra.mxu0 %v2458
    %2491 = vmatprep.subr.mxu0 0.0
    %2492 = vmatpush1.msra.mxu0 %v2457
    %2493 = vmatprep.subr.mxu0 0.0
    %2494 = vmatpush2.msra.mxu0 0.0
    %2495 = vmatprep.subr.mxu0 0.0
    %2496 = vmatpush2.msra.mxu0 0.0
    %2497 = vmatprep.subr.mxu0 0.0
    %2498 = vmatpush2.msra.mxu0 0.0
    %2499 = vmatprep.subr.mxu0 0.0
    %2500 = vmatpush2.msra.mxu0 0.0
    %2501 = vmatprep.subr.mxu0 0.0
    %2502 = vmatpush2.msra.mxu0 0.0
    %2503 = vmatprep.subr.mxu0 0.0
    %2504 = vmatpush2.msra.mxu0 0.0
    %2505 = vmatprep.subr.mxu0 0.0
    %2506 = vmatpush2.msra.mxu0 0.0
    %2507 = vmatprep.subr.mxu0 0.0
    %2508 = vmatpush2.msra.mxu0 0.0
    %2509 = vmatprep.subr.mxu0 0.0
    %2510 = vmatpush2.msra.mxu0 0.0
    %2511 = vmatprep.subr.mxu0 0.0
    %2512 = vmatpush2.msra.mxu0 0.0
    %2513 = vmatprep.subr.mxu0 0.0
    %2514 = vmatpush2.msra.mxu0 0.0
    %2515 = vmatprep.subr.mxu0 0.0
    %2516 = vmatpush2.msra.mxu0 0.0
    %2517 = vmatprep.subr.mxu0 0.0
    %2518 = vmatpush2.msra.mxu0 0.0
    %2519 = vmatprep.subr.mxu0 0.0
    %2520 = vmatpush2.msra.mxu0 0.0
    %2521 = vmatprep.subr.mxu0 0.0
    %2522 = vmatpush2.msra.mxu0 0.0
    %2523 = vmatprep.subr.mxu0 0.0
    %2524 = vmatpush2.msra.mxu0 0.0
    %2525 = vmatprep.mubr.f32.mxu0 0.0
    %2526 = vmatmul.mubr.f32.gmra.mxu0 %v2098
    %v2527 = vpop.f32.mrf.mxu0
    %v2528 = vadd.f32 0.0, %v2527
    %v2529 = vpop.f32.mrf.mxu0
    %2530 = vmatprep.mubr.f32.mxu0 0.0
    %2531 = vmatmul.mubr.f32.gmra.mxu0 %v2101
    %v2532 = vpop.f32.mrf.mxu0
    %v2533 = vadd.f32 0.0, %v2532
    %v2534 = vpop.f32.mrf.mxu0
    %2535 = vmatprep.mubr.f32.mxu0 0.0
    %2536 = vmatmul.mubr.f32.gmra.mxu0 %v2104
    %v2537 = vpop.f32.mrf.mxu0
    %v2538 = vadd.f32 0.0, %v2537
    %v2539 = vpop.f32.mrf.mxu0
    %2540 = vdwg.mxu0
    %v2542 = vsel %vm1544, %v2450, 0
    %v2545 = vsel %vm1544, %v2451, 0
    %v2548 = vsel %vm1544, %v2452, 0
    %2550 = vmatprep.subr.mxu0 0.0
    %2551 = vmatpush1.msra.mxu0 0.0
    %2552 = vmatprep.subr.mxu0 0.0
    %2553 = vmatpush1.msra.mxu0 0.0
    %2554 = vmatprep.subr.mxu0 0.0
    %2555 = vmatpush1.msra.mxu0 0.0
    %2556 = vmatprep.subr.mxu0 0.0
    %2557 = vmatpush1.msra.mxu0 0.0
    %2558 = vmatprep.subr.mxu0 0.0
    %2559 = vmatpush1.msra.mxu0 0.0
    %2560 = vmatprep.subr.mxu0 0.0
    %2561 = vmatpush1.msra.mxu0 0.0
    %2562 = vmatprep.subr.mxu0 0.0
    %2563 = vmatpush1.msra.mxu0 0.0
    %2564 = vmatprep.subr.mxu0 0.0
    %2565 = vmatpush1.msra.mxu0 0.0
    %2566 = vmatprep.subr.mxu0 0.0
    %2567 = vmatpush1.msra.mxu0 0.0
    %2568 = vmatprep.subr.mxu0 0.0
    %2569 = vmatpush1.msra.mxu0 0.0
    %2570 = vmatprep.subr.mxu0 0.0
    %2571 = vmatpush1.msra.mxu0 0.0
    %2572 = vmatprep.subr.mxu0 0.0
    %2573 = vmatpush1.msra.mxu0 0.0
    %2574 = vmatprep.subr.mxu0 0.0
    %2575 = vmatpush1.msra.mxu0 %v2456
    %2576 = vmatprep.subr.mxu0 0.0
    %2577 = vmatpush1.msra.mxu0 %v2455
    %2578 = vmatprep.subr.mxu0 0.0
    %2579 = vmatpush1.msra.mxu0 %v2454
    %2580 = vmatprep.subr.mxu0 0.0
    %2581 = vmatpush1.msra.mxu0 %v2453
    %2582 = vmatprep.subr.mxu0 0.0
    %2583 = vmatpush2.msra.mxu0 0.0
    %2584 = vmatprep.subr.mxu0 0.0
    %2585 = vmatpush2.msra.mxu0 0.0
    %2586 = vmatprep.subr.mxu0 0.0
    %2587 = vmatpush2.msra.mxu0 0.0
    %2588 = vmatprep.subr.mxu0 0.0
    %2589 = vmatpush2.msra.mxu0 0.0
    %2590 = vmatprep.subr.mxu0 0.0
    %2591 = vmatpush2.msra.mxu0 0.0
    %2592 = vmatprep.subr.mxu0 0.0
    %2593 = vmatpush2.msra.mxu0 0.0
    %2594 = vmatprep.subr.mxu0 0.0
    %2595 = vmatpush2.msra.mxu0 0.0
    %2596 = vmatprep.subr.mxu0 0.0
    %2597 = vmatpush2.msra.mxu0 0.0
    %2598 = vmatprep.subr.mxu0 0.0
    %2599 = vmatpush2.msra.mxu0 0.0
    %2600 = vmatprep.subr.mxu0 0.0
    %2601 = vmatpush2.msra.mxu0 0.0
    %2602 = vmatprep.subr.mxu0 0.0
    %2603 = vmatpush2.msra.mxu0 0.0
    %2604 = vmatprep.subr.mxu0 0.0
    %2605 = vmatpush2.msra.mxu0 0.0
    %2606 = vmatprep.subr.mxu0 0.0
    %2607 = vmatpush2.msra.mxu0 0.0
    %2608 = vmatprep.subr.mxu0 0.0
    %2609 = vmatpush2.msra.mxu0 0.0
    %2610 = vmatprep.subr.mxu0 0.0
    %2611 = vmatpush2.msra.mxu0 0.0
    %2612 = vmatprep.subr.mxu0 0.0
    %2613 = vmatpush2.msra.mxu0 0.0
    %2614 = vmatprep.mubr.f32.mxu0 0.0
    %2615 = vmatmul.mubr.f32.gmra.mxu0 %v2542
    %v2616 = vpop.f32.mrf.mxu0
    %v2617 = vadd.f32 %v2528, %v2616
    %v2618 = vpop.f32.mrf.mxu0
    %2619 = vmatprep.mubr.f32.mxu0 0.0
    %2620 = vmatmul.mubr.f32.gmra.mxu0 %v2545
    %v2621 = vpop.f32.mrf.mxu0
    %v2622 = vadd.f32 %v2533, %v2621
    %v2623 = vpop.f32.mrf.mxu0
    %2624 = vmatprep.mubr.f32.mxu0 0.0
    %2625 = vmatmul.mubr.f32.gmra.mxu0 %v2548
    %v2626 = vpop.f32.mrf.mxu0
    %v2627 = vadd.f32 %v2538, %v2626
    %v2628 = vpop.f32.mrf.mxu0
    %2629 = vdwg.mxu0
    %v2630 = vld [vmem:[#allocation32] sm:$0x1]
    %v2632 = vlaneseq
    %v2633 = vshrl.u32 %v2632, 7
    %v2634 = vsub.s32 0, %v2633
    %v2635 = vrot.slane %v2630, %v2634
    %v2637 = vadd.f32 %v2617, %v2635
    %v2638 = vadd.f32 %v2622, %v2635
    %v2639 = vadd.f32 %v2627, %v2635
    %2640 = vst.msk [vmem:[#allocation35] sm:$0xff] %vm1544, %v2637
    %2641 = vst.msk [vmem:[#allocation35 + $0x8] sm:$0xff] %vm1544, %v2638
    %2642 = vst.msk [vmem:[#allocation35 + $0x10] sm:$0xff] %vm1544, %v2639
    // Predicated region
    $region217: #{single_vbge_forward.1} parent=1 // pred_check
      _
    $region218: #{single_vbge_forward.1} parent=1 // pred_check_branch
      %2644 = sbr.rel (0) target = $region220
    $region219: #{single_vbge_forward.1} parent=1 // pred_region
      %s2646 = ssub.s32 256, 256
      %2647 = vsyncadd [#allocation4], %s2646
      %s2648 = sshll.u32 [#allocation34], 4
      %s2649 = int_to_ptr.vmem [resolvable:$true] %s2648
      %2654 = dma.vmem_to_hbm [thread:$0]  %s2649, 256, %s65, [#allocation4], 128, 128, 8
    $region220: #{single_vbge_forward.1} parent=1 // pred_fallthru
      _
    // Predicated region
    $region221: #{single_vbge_forward.1} parent=1 // pred_check
      _
    $region222: #{single_vbge_forward.1} parent=1 // pred_check_branch
      %2656 = sbr.rel (0) target = $region224
    $region223: #{single_vbge_forward.1} parent=1 // pred_region
      %s2658 = ssub.s32 384, 384
      %2659 = vsyncadd [#allocation36], %s2658
      %s2660 = sshll.u32 [#allocation35], 4
      %s2661 = int_to_ptr.vmem [resolvable:$true] %s2660
      %2666 = dma.vmem_to_hbm [thread:$0]  %s2661, 384, %s67, [#allocation36], 128, 128, 8
    $region224: #{single_vbge_forward.1} parent=1 // pred_fallthru
      _
    // Predicated region
    $region225: #{single_vbge_forward.1} parent=1 // pred_check
      _
    $region226: #{single_vbge_forward.1} parent=1 // pred_check_branch
      %2668 = sbr.rel (0) target = $region228
    $region227: #{single_vbge_forward.1} parent=1 // pred_region
      %2669 = dma.done [#allocation4], 256
    $region228: #{single_vbge_forward.1} parent=1 // pred_fallthru
      _
    // Predicated region
    $region229: #{single_vbge_forward.1} parent=1 // pred_check
      _
    $region230: #{single_vbge_forward.1} parent=1 // pred_check_branch
      %2671 = sbr.rel (0) target = $region232
    $region231: #{single_vbge_forward.1} parent=1 // pred_region
      %2672 = dma.done [#allocation36], 384
    $region232: #{single_vbge_forward.1} parent=1 // pred_fallthru
      _
    %2673 = vsyncpa [#allocation3], 1
    %2674 = vsyncpa [#allocation6], 1
    %2675 = vsyncpa [#allocation9], 1
    %2676 = vsyncpa [#allocation12], 1
    %2677 = vsyncpa [#allocation15], 1
    %2678 = vsyncpa [#allocation18], 1
    %2679 = vsyncpa [#allocation21], 1
    %2680 = vsyncpa [#allocation24], 1
    %2681 = vsyncpa [#allocation27], 1
    %2682 = vsyncpa [#allocation30], 1
    %2683 = vsyncpa [#allocation33], 1
    %2684 = vsyncpa [#allocation4], 1
    %2685 = vsyncpa [#allocation36], 1

</llo_original>
